<compile_context>
chip_gen: v7x
topology: tpu7x:2x2x1
jax: 0.10.0
libtpu: 0.0.40
codegen_flags: <defaults>
</compile_context>

<pallas_src>
import functools

import jax
import jax.numpy as jnp
from jax.experimental import pallas as pl
from jax.experimental.pallas import tpu as pltpu


# ---------------------------------------------------------------------------
# Parameter-side glue (mirrors DynamicSeparableConv2d.get_active_filter)
# ---------------------------------------------------------------------------
def sub_filter_start_end(kernel_size, sub_kernel_size):
    center = kernel_size // 2
    dev = sub_kernel_size // 2
    start, end = center - dev, center + dev + 1
    assert end - start == sub_kernel_size
    return start, end


def get_same_padding(kernel_size):
    assert kernel_size % 2 > 0, "kernel size should be odd"
    return kernel_size // 2


def get_active_filter(weight, scale_matrices, ks_set, in_channel, kernel_size,
                      kernel_trans=True):
    """weight: (max_C, 1, Kmax, Kmax) -> active filter (in_channel, 1, k, k)."""
    out_channel = in_channel
    max_ks = ks_set[-1]
    start, end = sub_filter_start_end(max_ks, kernel_size)
    filters = weight[:out_channel, :in_channel, start:end, start:end]
    if kernel_trans and kernel_size < max_ks:
        start_filter = weight[:out_channel, :in_channel, :, :]
        for i in range(len(ks_set) - 1, 0, -1):
            src_ks = ks_set[i]
            if src_ks <= kernel_size:
                break
            target_ks = ks_set[i - 1]
            s, e = sub_filter_start_end(src_ks, target_ks)
            _f = start_filter[:, :, s:e, s:e]
            oc, ic = _f.shape[0], _f.shape[1]
            _f = _f.reshape(-1, target_ks * target_ks)
            mat = scale_matrices["%dto%d" % (src_ks, target_ks)]
            _f = _f @ mat.T  # F.linear(x, M) == x @ M.T
            _f = _f.reshape(oc, ic, target_ks, target_ks)
            start_filter = _f
        filters = start_filter
    return filters


# ---------------------------------------------------------------------------
# Pallas depthwise-conv kernel (one image x one channel tile per grid step)
# ---------------------------------------------------------------------------
def _dw_conv_kernel(x_ref, w_ref, o_ref, acc_ref, *, K, stride, dilation, pad):
    """Depthwise conv on one (image, channel-tile) block.

    x_ref:   (H,  W,  TC)  unpadded input tile, channels on lanes
    w_ref:   (K,  K,  TC)  depthwise filter tile
    o_ref:   (Ho, Wo, TC)  output tile
    acc_ref: (Ho, Wo, TC)  f32 VMEM accumulator scratch
    """
    H, W = x_ref.shape[0], x_ref.shape[1]
    Ho, Wo = o_ref.shape[0], o_ref.shape[1]

    # Zero-init required: border outputs receive fewer taps (implicit zero pad).
    acc_ref[...] = jnp.zeros_like(acc_ref)

    # Load the filter tile once (hoisted out of the K*K tap loop).
    w_all = w_ref[...]

    def _valid_range(k, in_size, out_size):
        # Output indices o with 0 <= o*stride + k*dilation - pad < in_size.
        # Everything here is static Python int arithmetic (resolved at trace time).
        a = pad - k * dilation
        lo = max(0, (a + stride - 1) // stride)            # ceil(a / stride), clamped
        hi = min(out_size - 1, (in_size - 1 + a) // stride)
        return lo, hi

    for kh in range(K):
        oh_lo, oh_hi = _valid_range(kh, H, Ho)
        if oh_hi < oh_lo:
            continue
        nh = oh_hi - oh_lo + 1
        ih0 = oh_lo * stride + kh * dilation - pad
        for kw in range(K):
            ow_lo, ow_hi = _valid_range(kw, W, Wo)
            if ow_hi < ow_lo:
                continue
            nw = ow_hi - ow_lo + 1
            iw0 = ow_lo * stride + kw * dilation - pad

            # Shifted (and, for stride>1, strided) window read straight from the
            # Ref -- no full-tile load + value slicing.
            if stride == 1:
                patch = x_ref[pl.ds(ih0, nh), pl.ds(iw0, nw), :]
            else:
                patch = x_ref[pl.ds(ih0, nh, stride=stride),
                              pl.ds(iw0, nw, stride=stride), :]

            # Multiply in the input dtype (bf16 stays bf16 on v6e/v7x VPU),
            # widen only at the f32 accumulate.
            contrib = (patch * w_all[kh, kw]).astype(jnp.float32)
            acc_ref[pl.ds(oh_lo, nh), pl.ds(ow_lo, nw), :] += contrib

    o_ref[...] = acc_ref[...].astype(o_ref.dtype)


def _round_up(a, b):
    return (a + b - 1) // b * b


def _padded_tile_bytes(shape, itemsize):
    # Conservative VMEM footprint of one tile after (8, 128) layout padding.
    s = list(shape)
    s[-1] = _round_up(s[-1], 128)
    if len(s) >= 2:
        s[-2] = _round_up(s[-2], 8)
    n = 1
    for d in s:
        n *= d
    return n * itemsize


def depthwise_conv2d_nhwc(x_nhwc, w_hwc, stride=1, dilation=1):
    """Depthwise 'same'-padded conv.  x_nhwc: (N,H,W,C), w_hwc: (K,K,C) -> (N,Ho,Wo,C).

    NHWC entry point: callers that already live in NHWC avoid the layout
    transposes entirely (the depthwise conv is memory bound).
    """
    N, H, W, C = x_nhwc.shape
    K = w_hwc.shape[0]
    pad = get_same_padding(K)
    Ho = (H + 2 * pad - dilation * (K - 1) - 1) // stride + 1
    Wo = (W + 2 * pad - dilation * (K - 1) - 1) // stride + 1

    # Channel tiling: lane-dense 128-channel tiles for production channel counts.
    # For C <= 128 keep the full channel dim (padding 6 -> 128 would multiply HBM
    # traffic of a memory-bound op; masked stores are the lesser evil here).
    # TODO(synk): for C << 128 a layout folding W*C onto the lane axis would
    # restore lane utilization without extra HBM traffic.
    LANE = 128
    if C <= LANE:
        tc, Cp = C, C
    else:
        tc = LANE
        Cp = _round_up(C, LANE)
    if Cp != C:
        x_nhwc = jnp.pad(x_nhwc, ((0, 0), (0, 0), (0, 0), (0, Cp - C)))
        w_hwc = jnp.pad(w_hwc, ((0, 0), (0, 0), (0, Cp - C)))
    n_ct = Cp // tc

    # Explicit scoped-VMEM budget: 2x (double-buffered) in/w/out tiles + f32 acc.
    itemsize = jnp.dtype(x_nhwc.dtype).itemsize
    need = (2 * (_padded_tile_bytes((H, W, tc), itemsize)
                 + _padded_tile_bytes((K, K, tc), itemsize)
                 + _padded_tile_bytes((Ho, Wo, tc), itemsize))
            + _padded_tile_bytes((Ho, Wo, tc), 4)
            + (2 << 20))
    vmem_limit = int(min(64 << 20, max(32 << 20, need)))

    kern = functools.partial(_dw_conv_kernel, K=K, stride=stride,
                             dilation=dilation, pad=pad)

    # TODO(synk): for very large feature maps, add an H-tiled grid axis with a
    # (K-1)*dilation halo via manual DMA into a zero-initialized VMEM scratch.
    y = pl.pallas_call(
        kern,
        out_shape=jax.ShapeDtypeStruct((N, Ho, Wo, Cp), x_nhwc.dtype),
        grid=(N, n_ct),
        in_specs=[
            pl.BlockSpec((None, H, W, tc), lambda n, ct: (n, 0, 0, ct)),
            pl.BlockSpec((K, K, tc), lambda n, ct: (0, 0, ct)),
        ],
        out_specs=pl.BlockSpec((None, Ho, Wo, tc), lambda n, ct: (n, 0, 0, ct)),
        scratch_shapes=[pltpu.VMEM((Ho, Wo, tc), jnp.float32)],
        compiler_params=pltpu.CompilerParams(
            dimension_semantics=("parallel", "parallel"),
            vmem_limit_bytes=vmem_limit),
    )(x_nhwc, w_hwc)

    if Cp != C:
        y = y[..., :C]
    return y


def dynamic_separable_conv2d(x, weight, scale_matrices, ks_set, kernel_size,
                             stride=1, dilation=1, kernel_trans=True):
    """Forward pass of DynamicSeparableConv2d.  x is NCHW, returns NCHW.

    NOTE: padding = kernel_size // 2 regardless of dilation, matching the
    original module (F.conv2d(..., padding=get_same_padding(k), dilation=d)).
    """
    N, C, H, W = x.shape
    filters = get_active_filter(weight, scale_matrices, ks_set, C, kernel_size,
                                kernel_trans)                 # (C, 1, K, K)
    w_hwc = jnp.transpose(filters[:, 0], (1, 2, 0)).astype(x.dtype)  # (K, K, C)
    x_nhwc = jnp.transpose(x, (0, 2, 3, 1))
    y_nhwc = depthwise_conv2d_nhwc(x_nhwc, w_hwc, stride=stride, dilation=dilation)
    return jnp.transpose(y_nhwc, (0, 3, 1, 2))  # back to NCHW for PyTorch parity


# ---------------------------------------------------------------------------
# Driver
# ---------------------------------------------------------------------------
if __name__ == "__main__":
    key = jax.random.PRNGKey(0)
    kw_key, kx_key = jax.random.split(key)

    # Module config (matches DynamicSeparableConv2d.__init__)
    max_in_channels = 8
    kernel_size_list = [3, 5, 7]
    stride = 1
    dilation = 1
    ks_set = sorted(set(kernel_size_list))
    Kmax = max(kernel_size_list)

    # Deterministic parameter init (synthetic, in-script)
    weight = 0.1 * jax.random.normal(
        kw_key, (max_in_channels, 1, Kmax, Kmax), jnp.float32)
    scale_matrices = {}
    for i in range(len(ks_set) - 1):
        ks_small, ks_larger = ks_set[i], ks_set[i + 1]
        scale_matrices["%dto%d" % (ks_larger, ks_small)] = jnp.eye(
            ks_small ** 2, dtype=jnp.float32)  # matches Parameter(torch.eye(...))

    # Small input: batch=2, channels=6 (< max_in_channels), 16x16 spatial
    N, C, H, W = 2, 6, 16, 16
    x = jax.random.normal(kx_key, (N, C, H, W), jnp.float32)

    for active_kernel_size in (5, 3):   # elastic kernel: 5x5 and 3x3 sub-filters
        y = dynamic_separable_conv2d(x, weight, scale_matrices, ks_set,
                                     kernel_size=active_kernel_size,
                                     stride=stride, dilation=dilation)
        y = jax.block_until_ready(y)

        # Cross-check against XLA's grouped conv (same semantics as F.conv2d)
        filt = get_active_filter(weight, scale_matrices, ks_set, C,
                                 active_kernel_size)
        pad = get_same_padding(active_kernel_size)
        y_ref = jax.lax.conv_general_dilated(
            x, filt, (stride, stride), [(pad, pad), (pad, pad)],
            rhs_dilation=(dilation, dilation),
            dimension_numbers=("NCHW", "OIHW", "NCHW"),
            feature_group_count=C)
        assert y.shape == y_ref.shape, (y.shape, y_ref.shape)
        assert jnp.allclose(y, y_ref, atol=1e-4, rtol=1e-4), \
            "mismatch vs reference (k=%d)" % active_kernel_size

    print("KERNEL_OK")
</pallas_src>

<mosaic_0001>
module attributes {stable_mosaic.version = 11 : i64} {
  func.func @_dw_conv_kernel(%arg0: i32, %arg1: i32, %arg2: memref<1x16x16x6xf32, #tpu.memory_space<vmem>>, %arg3: memref<5x5x6xf32, #tpu.memory_space<vmem>>, %arg4: memref<1x16x16x6xf32, #tpu.memory_space<vmem>>, %arg5: memref<16x16x6xf32, #tpu.memory_space<vmem>>) attributes {dimension_semantics = [#tpu.dimension_semantics<parallel>, #tpu.dimension_semantics<parallel>], iteration_bounds = array<i64: 2, 1>, scalar_prefetch = 0 : i64, scratch_operands = 1 : i64, tpu.core_type = #tpu.core_type<tc>, window_params = [{transform_indices = @transform_0, window_bounds = array<i64: 1, 16, 16, 6>}, {transform_indices = @transform_1, window_bounds = array<i64: 5, 5, 6>}, {transform_indices = @transform_2, window_bounds = array<i64: 1, 16, 16, 6>}]} {
    %cst = arith.constant 0.000000e+00 : f32
    %0 = vector.broadcast %cst : f32 to vector<16x16x6xf32>
    %c0 = arith.constant 0 : index
    %c0_0 = arith.constant 0 : index
    %c0_1 = arith.constant 0 : index
    %1 = vector.load %arg5[%c0, %c0_0, %c0_1] : memref<16x16x6xf32, #tpu.memory_space<vmem>>, vector<16x16x6xf32>
    tpu.vector_store %arg5[%c0, %c0_0, %c0_1], %0 {strides = array<i32>} : memref<16x16x6xf32, #tpu.memory_space<vmem>>, vector<16x16x6xf32>,
    %c0_2 = arith.constant 0 : index
    %c0_3 = arith.constant 0 : index
    %c0_4 = arith.constant 0 : index
    %2 = vector.load %arg3[%c0_2, %c0_3, %c0_4] : memref<5x5x6xf32, #tpu.memory_space<vmem>>, vector<5x5x6xf32>
    %c0_5 = arith.constant 0 : index
    %c0_6 = arith.constant 0 : index
    %c0_7 = arith.constant 0 : index
    %c0_8 = arith.constant 0 : index
    %3 = vector.load %arg2[%c0_5, %c0_6, %c0_7, %c0_8] : memref<1x16x16x6xf32, #tpu.memory_space<vmem>>, vector<1x14x14x6xf32>
    %4 = vector.shape_cast %3 : vector<1x14x14x6xf32> to vector<14x14x6xf32>
    %5 = vector.extract_strided_slice %2 {offsets = [0, 0, 0], sizes = [1, 1, 6], strides = [1, 1, 1]} : vector<5x5x6xf32> to vector<1x1x6xf32>
    %6 = vector.shape_cast %5 : vector<1x1x6xf32> to vector<6xf32>
    %7 = vector.shape_cast %6 : vector<6xf32> to vector<1x1x6xf32>
    %8 = vector.broadcast %7 : vector<1x1x6xf32> to vector<14x14x6xf32>
    %9 = arith.mulf %4, %8 : vector<14x14x6xf32>
    %c2 = arith.constant 2 : index
    %c2_9 = arith.constant 2 : index
    %c0_10 = arith.constant 0 : index
    %10 = vector.load %arg5[%c2, %c2_9, %c0_10] : memref<16x16x6xf32, #tpu.memory_space<vmem>>, vector<14x14x6xf32>
    %11 = arith.addf %10, %9 : vector<14x14x6xf32>
    %c2_11 = arith.constant 2 : index
    %c2_12 = arith.constant 2 : index
    %c0_13 = arith.constant 0 : index
    %12 = vector.load %arg5[%c2_11, %c2_12, %c0_13] : memref<16x16x6xf32, #tpu.memory_space<vmem>>, vector<14x14x6xf32>
    tpu.vector_store %arg5[%c2_11, %c2_12, %c0_13], %11 {strides = array<i32>} : memref<16x16x6xf32, #tpu.memory_space<vmem>>, vector<14x14x6xf32>,
    %c0_14 = arith.constant 0 : index
    %c0_15 = arith.constant 0 : index
    %c0_16 = arith.constant 0 : index
    %c0_17 = arith.constant 0 : index
    %13 = vector.load %arg2[%c0_14, %c0_15, %c0_16, %c0_17] : memref<1x16x16x6xf32, #tpu.memory_space<vmem>>, vector<1x14x15x6xf32>
    %14 = vector.shape_cast %13 : vector<1x14x15x6xf32> to vector<14x15x6xf32>
    %15 = vector.extract_strided_slice %2 {offsets = [0, 1, 0], sizes = [1, 1, 6], strides = [1, 1, 1]} : vector<5x5x6xf32> to vector<1x1x6xf32>
    %16 = vector.shape_cast %15 : vector<1x1x6xf32> to vector<6xf32>
    %17 = vector.shape_cast %16 : vector<6xf32> to vector<1x1x6xf32>
    %18 = vector.broadcast %17 : vector<1x1x6xf32> to vector<14x15x6xf32>
    %19 = arith.mulf %14, %18 : vector<14x15x6xf32>
    %c2_18 = arith.constant 2 : index
    %c1 = arith.constant 1 : index
    %c0_19 = arith.constant 0 : index
    %20 = vector.load %arg5[%c2_18, %c1, %c0_19] : memref<16x16x6xf32, #tpu.memory_space<vmem>>, vector<14x15x6xf32>
    %21 = arith.addf %20, %19 : vector<14x15x6xf32>
    %c2_20 = arith.constant 2 : index
    %c1_21 = arith.constant 1 : index
    %c0_22 = arith.constant 0 : index
    %22 = vector.load %arg5[%c2_20, %c1_21, %c0_22] : memref<16x16x6xf32, #tpu.memory_space<vmem>>, vector<14x15x6xf32>
    tpu.vector_store %arg5[%c2_20, %c1_21, %c0_22], %21 {strides = array<i32>} : memref<16x16x6xf32, #tpu.memory_space<vmem>>, vector<14x15x6xf32>,
    %c0_23 = arith.constant 0 : index
    %c0_24 = arith.constant 0 : index
    %c0_25 = arith.constant 0 : index
    %c0_26 = arith.constant 0 : index
    %23 = vector.load %arg2[%c0_23, %c0_24, %c0_25, %c0_26] : memref<1x16x16x6xf32, #tpu.memory_space<vmem>>, vector<1x14x16x6xf32>
    %24 = vector.shape_cast %23 : vector<1x14x16x6xf32> to vector<14x16x6xf32>
    %25 = vector.extract_strided_slice %2 {offsets = [0, 2, 0], sizes = [1, 1, 6], strides = [1, 1, 1]} : vector<5x5x6xf32> to vector<1x1x6xf32>
    %26 = vector.shape_cast %25 : vector<1x1x6xf32> to vector<6xf32>
    %27 = vector.shape_cast %26 : vector<6xf32> to vector<1x1x6xf32>
    %28 = vector.broadcast %27 : vector<1x1x6xf32> to vector<14x16x6xf32>
    %29 = arith.mulf %24, %28 : vector<14x16x6xf32>
    %c2_27 = arith.constant 2 : index
    %c0_28 = arith.constant 0 : index
    %c0_29 = arith.constant 0 : index
    %30 = vector.load %arg5[%c2_27, %c0_28, %c0_29] : memref<16x16x6xf32, #tpu.memory_space<vmem>>, vector<14x16x6xf32>
    %31 = arith.addf %30, %29 : vector<14x16x6xf32>
    %c2_30 = arith.constant 2 : index
    %c0_31 = arith.constant 0 : index
    %c0_32 = arith.constant 0 : index
    %32 = vector.load %arg5[%c2_30, %c0_31, %c0_32] : memref<16x16x6xf32, #tpu.memory_space<vmem>>, vector<14x16x6xf32>
    tpu.vector_store %arg5[%c2_30, %c0_31, %c0_32], %31 {strides = array<i32>} : memref<16x16x6xf32, #tpu.memory_space<vmem>>, vector<14x16x6xf32>,
    %c0_33 = arith.constant 0 : index
    %c0_34 = arith.constant 0 : index
    %c1_35 = arith.constant 1 : index
    %c0_36 = arith.constant 0 : index
    %33 = vector.load %arg2[%c0_33, %c0_34, %c1_35, %c0_36] : memref<1x16x16x6xf32, #tpu.memory_space<vmem>>, vector<1x14x15x6xf32>
    %34 = vector.shape_cast %33 : vector<1x14x15x6xf32> to vector<14x15x6xf32>
    %35 = vector.extract_strided_slice %2 {offsets = [0, 3, 0], sizes = [1, 1, 6], strides = [1, 1, 1]} : vector<5x5x6xf32> to vector<1x1x6xf32>
    %36 = vector.shape_cast %35 : vector<1x1x6xf32> to vector<6xf32>
    %37 = vector.shape_cast %36 : vector<6xf32> to vector<1x1x6xf32>
    %38 = vector.broadcast %37 : vector<1x1x6xf32> to vector<14x15x6xf32>
    %39 = arith.mulf %34, %38 : vector<14x15x6xf32>
    %c2_37 = arith.constant 2 : index
    %c0_38 = arith.constant 0 : index
    %c0_39 = arith.constant 0 : index
    %40 = vector.load %arg5[%c2_37, %c0_38, %c0_39] : memref<16x16x6xf32, #tpu.memory_space<vmem>>, vector<14x15x6xf32>
    %41 = arith.addf %40, %39 : vector<14x15x6xf32>
    %c2_40 = arith.constant 2 : index
    %c0_41 = arith.constant 0 : index
    %c0_42 = arith.constant 0 : index
    %42 = vector.load %arg5[%c2_40, %c0_41, %c0_42] : memref<16x16x6xf32, #tpu.memory_space<vmem>>, vector<14x15x6xf32>
    tpu.vector_store %arg5[%c2_40, %c0_41, %c0_42], %41 {strides = array<i32>} : memref<16x16x6xf32, #tpu.memory_space<vmem>>, vector<14x15x6xf32>,
    %c0_43 = arith.constant 0 : index
    %c0_44 = arith.constant 0 : index
    %c2_45 = arith.constant 2 : index
    %c0_46 = arith.constant 0 : index
    %43 = vector.load %arg2[%c0_43, %c0_44, %c2_45, %c0_46] : memref<1x16x16x6xf32, #tpu.memory_space<vmem>>, vector<1x14x14x6xf32>
    %44 = vector.shape_cast %43 : vector<1x14x14x6xf32> to vector<14x14x6xf32>
    %45 = vector.extract_strided_slice %2 {offsets = [0, 4, 0], sizes = [1, 1, 6], strides = [1, 1, 1]} : vector<5x5x6xf32> to vector<1x1x6xf32>
    %46 = vector.shape_cast %45 : vector<1x1x6xf32> to vector<6xf32>
    %47 = vector.shape_cast %46 : vector<6xf32> to vector<1x1x6xf32>
    %48 = vector.broadcast %47 : vector<1x1x6xf32> to vector<14x14x6xf32>
    %49 = arith.mulf %44, %48 : vector<14x14x6xf32>
    %c2_47 = arith.constant 2 : index
    %c0_48 = arith.constant 0 : index
    %c0_49 = arith.constant 0 : index
    %50 = vector.load %arg5[%c2_47, %c0_48, %c0_49] : memref<16x16x6xf32, #tpu.memory_space<vmem>>, vector<14x14x6xf32>
    %51 = arith.addf %50, %49 : vector<14x14x6xf32>
    %c2_50 = arith.constant 2 : index
    %c0_51 = arith.constant 0 : index
    %c0_52 = arith.constant 0 : index
    %52 = vector.load %arg5[%c2_50, %c0_51, %c0_52] : memref<16x16x6xf32, #tpu.memory_space<vmem>>, vector<14x14x6xf32>
    tpu.vector_store %arg5[%c2_50, %c0_51, %c0_52], %51 {strides = array<i32>} : memref<16x16x6xf32, #tpu.memory_space<vmem>>, vector<14x14x6xf32>,
    %c0_53 = arith.constant 0 : index
    %c0_54 = arith.constant 0 : index
    %c0_55 = arith.constant 0 : index
    %c0_56 = arith.constant 0 : index
    %53 = vector.load %arg2[%c0_53, %c0_54, %c0_55, %c0_56] : memref<1x16x16x6xf32, #tpu.memory_space<vmem>>, vector<1x15x14x6xf32>
    %54 = vector.shape_cast %53 : vector<1x15x14x6xf32> to vector<15x14x6xf32>
    %55 = vector.extract_strided_slice %2 {offsets = [1, 0, 0], sizes = [1, 1, 6], strides = [1, 1, 1]} : vector<5x5x6xf32> to vector<1x1x6xf32>
    %56 = vector.shape_cast %55 : vector<1x1x6xf32> to vector<6xf32>
    %57 = vector.shape_cast %56 : vector<6xf32> to vector<1x1x6xf32>
    %58 = vector.broadcast %57 : vector<1x1x6xf32> to vector<15x14x6xf32>
    %59 = arith.mulf %54, %58 : vector<15x14x6xf32>
    %c1_57 = arith.constant 1 : index
    %c2_58 = arith.constant 2 : index
    %c0_59 = arith.constant 0 : index
    %60 = vector.load %arg5[%c1_57, %c2_58, %c0_59] : memref<16x16x6xf32, #tpu.memory_space<vmem>>, vector<15x14x6xf32>
    %61 = arith.addf %60, %59 : vector<15x14x6xf32>
    %c1_60 = arith.constant 1 : index
    %c2_61 = arith.constant 2 : index
    %c0_62 = arith.constant 0 : index
    %62 = vector.load %arg5[%c1_60, %c2_61, %c0_62] : memref<16x16x6xf32, #tpu.memory_space<vmem>>, vector<15x14x6xf32>
    tpu.vector_store %arg5[%c1_60, %c2_61, %c0_62], %61 {strides = array<i32>} : memref<16x16x6xf32, #tpu.memory_space<vmem>>, vector<15x14x6xf32>,
    %c0_63 = arith.constant 0 : index
    %c0_64 = arith.constant 0 : index
    %c0_65 = arith.constant 0 : index
    %c0_66 = arith.constant 0 : index
    %63 = vector.load %arg2[%c0_63, %c0_64, %c0_65, %c0_66] : memref<1x16x16x6xf32, #tpu.memory_space<vmem>>, vector<1x15x15x6xf32>
    %64 = vector.shape_cast %63 : vector<1x15x15x6xf32> to vector<15x15x6xf32>
    %65 = vector.extract_strided_slice %2 {offsets = [1, 1, 0], sizes = [1, 1, 6], strides = [1, 1, 1]} : vector<5x5x6xf32> to vector<1x1x6xf32>
    %66 = vector.shape_cast %65 : vector<1x1x6xf32> to vector<6xf32>
    %67 = vector.shape_cast %66 : vector<6xf32> to vector<1x1x6xf32>
    %68 = vector.broadcast %67 : vector<1x1x6xf32> to vector<15x15x6xf32>
    %69 = arith.mulf %64, %68 : vector<15x15x6xf32>
    %c1_67 = arith.constant 1 : index
    %c1_68 = arith.constant 1 : index
    %c0_69 = arith.constant 0 : index
    %70 = vector.load %arg5[%c1_67, %c1_68, %c0_69] : memref<16x16x6xf32, #tpu.memory_space<vmem>>, vector<15x15x6xf32>
    %71 = arith.addf %70, %69 : vector<15x15x6xf32>
    %c1_70 = arith.constant 1 : index
    %c1_71 = arith.constant 1 : index
    %c0_72 = arith.constant 0 : index
    %72 = vector.load %arg5[%c1_70, %c1_71, %c0_72] : memref<16x16x6xf32, #tpu.memory_space<vmem>>, vector<15x15x6xf32>
    tpu.vector_store %arg5[%c1_70, %c1_71, %c0_72], %71 {strides = array<i32>} : memref<16x16x6xf32, #tpu.memory_space<vmem>>, vector<15x15x6xf32>,
    %c0_73 = arith.constant 0 : index
    %c0_74 = arith.constant 0 : index
    %c0_75 = arith.constant 0 : index
    %c0_76 = arith.constant 0 : index
    %73 = vector.load %arg2[%c0_73, %c0_74, %c0_75, %c0_76] : memref<1x16x16x6xf32, #tpu.memory_space<vmem>>, vector<1x15x16x6xf32>
    %74 = vector.shape_cast %73 : vector<1x15x16x6xf32> to vector<15x16x6xf32>
    %75 = vector.extract_strided_slice %2 {offsets = [1, 2, 0], sizes = [1, 1, 6], strides = [1, 1, 1]} : vector<5x5x6xf32> to vector<1x1x6xf32>
    %76 = vector.shape_cast %75 : vector<1x1x6xf32> to vector<6xf32>
    %77 = vector.shape_cast %76 : vector<6xf32> to vector<1x1x6xf32>
    %78 = vector.broadcast %77 : vector<1x1x6xf32> to vector<15x16x6xf32>
    %79 = arith.mulf %74, %78 : vector<15x16x6xf32>
    %c1_77 = arith.constant 1 : index
    %c0_78 = arith.constant 0 : index
    %c0_79 = arith.constant 0 : index
    %80 = vector.load %arg5[%c1_77, %c0_78, %c0_79] : memref<16x16x6xf32, #tpu.memory_space<vmem>>, vector<15x16x6xf32>
    %81 = arith.addf %80, %79 : vector<15x16x6xf32>
    %c1_80 = arith.constant 1 : index
    %c0_81 = arith.constant 0 : index
    %c0_82 = arith.constant 0 : index
    %82 = vector.load %arg5[%c1_80, %c0_81, %c0_82] : memref<16x16x6xf32, #tpu.memory_space<vmem>>, vector<15x16x6xf32>
    tpu.vector_store %arg5[%c1_80, %c0_81, %c0_82], %81 {strides = array<i32>} : memref<16x16x6xf32, #tpu.memory_space<vmem>>, vector<15x16x6xf32>,
    %c0_83 = arith.constant 0 : index
    %c0_84 = arith.constant 0 : index
    %c1_85 = arith.constant 1 : index
    %c0_86 = arith.constant 0 : index
    %83 = vector.load %arg2[%c0_83, %c0_84, %c1_85, %c0_86] : memref<1x16x16x6xf32, #tpu.memory_space<vmem>>, vector<1x15x15x6xf32>
    %84 = vector.shape_cast %83 : vector<1x15x15x6xf32> to vector<15x15x6xf32>
    %85 = vector.extract_strided_slice %2 {offsets = [1, 3, 0], sizes = [1, 1, 6], strides = [1, 1, 1]} : vector<5x5x6xf32> to vector<1x1x6xf32>
    %86 = vector.shape_cast %85 : vector<1x1x6xf32> to vector<6xf32>
    %87 = vector.shape_cast %86 : vector<6xf32> to vector<1x1x6xf32>
    %88 = vector.broadcast %87 : vector<1x1x6xf32> to vector<15x15x6xf32>
    %89 = arith.mulf %84, %88 : vector<15x15x6xf32>
    %c1_87 = arith.constant 1 : index
    %c0_88 = arith.constant 0 : index
    %c0_89 = arith.constant 0 : index
    %90 = vector.load %arg5[%c1_87, %c0_88, %c0_89] : memref<16x16x6xf32, #tpu.memory_space<vmem>>, vector<15x15x6xf32>
    %91 = arith.addf %90, %89 : vector<15x15x6xf32>
    %c1_90 = arith.constant 1 : index
    %c0_91 = arith.constant 0 : index
    %c0_92 = arith.constant 0 : index
    %92 = vector.load %arg5[%c1_90, %c0_91, %c0_92] : memref<16x16x6xf32, #tpu.memory_space<vmem>>, vector<15x15x6xf32>
    tpu.vector_store %arg5[%c1_90, %c0_91, %c0_92], %91 {strides = array<i32>} : memref<16x16x6xf32, #tpu.memory_space<vmem>>, vector<15x15x6xf32>,
    %c0_93 = arith.constant 0 : index
    %c0_94 = arith.constant 0 : index
    %c2_95 = arith.constant 2 : index
    %c0_96 = arith.constant 0 : index
    %93 = vector.load %arg2[%c0_93, %c0_94, %c2_95, %c0_96] : memref<1x16x16x6xf32, #tpu.memory_space<vmem>>, vector<1x15x14x6xf32>
    %94 = vector.shape_cast %93 : vector<1x15x14x6xf32> to vector<15x14x6xf32>
    %95 = vector.extract_strided_slice %2 {offsets = [1, 4, 0], sizes = [1, 1, 6], strides = [1, 1, 1]} : vector<5x5x6xf32> to vector<1x1x6xf32>
    %96 = vector.shape_cast %95 : vector<1x1x6xf32> to vector<6xf32>
    %97 = vector.shape_cast %96 : vector<6xf32> to vector<1x1x6xf32>
    %98 = vector.broadcast %97 : vector<1x1x6xf32> to vector<15x14x6xf32>
    %99 = arith.mulf %94, %98 : vector<15x14x6xf32>
    %c1_97 = arith.constant 1 : index
    %c0_98 = arith.constant 0 : index
    %c0_99 = arith.constant 0 : index
    %100 = vector.load %arg5[%c1_97, %c0_98, %c0_99] : memref<16x16x6xf32, #tpu.memory_space<vmem>>, vector<15x14x6xf32>
    %101 = arith.addf %100, %99 : vector<15x14x6xf32>
    %c1_100 = arith.constant 1 : index
    %c0_101 = arith.constant 0 : index
    %c0_102 = arith.constant 0 : index
    %102 = vector.load %arg5[%c1_100, %c0_101, %c0_102] : memref<16x16x6xf32, #tpu.memory_space<vmem>>, vector<15x14x6xf32>
    tpu.vector_store %arg5[%c1_100, %c0_101, %c0_102], %101 {strides = array<i32>} : memref<16x16x6xf32, #tpu.memory_space<vmem>>, vector<15x14x6xf32>,
    %c0_103 = arith.constant 0 : index
    %c0_104 = arith.constant 0 : index
    %c0_105 = arith.constant 0 : index
    %c0_106 = arith.constant 0 : index
    %103 = vector.load %arg2[%c0_103, %c0_104, %c0_105, %c0_106] : memref<1x16x16x6xf32, #tpu.memory_space<vmem>>, vector<1x16x14x6xf32>
    %104 = vector.shape_cast %103 : vector<1x16x14x6xf32> to vector<16x14x6xf32>
    %105 = vector.extract_strided_slice %2 {offsets = [2, 0, 0], sizes = [1, 1, 6], strides = [1, 1, 1]} : vector<5x5x6xf32> to vector<1x1x6xf32>
    %106 = vector.shape_cast %105 : vector<1x1x6xf32> to vector<6xf32>
    %107 = vector.shape_cast %106 : vector<6xf32> to vector<1x1x6xf32>
    %108 = vector.broadcast %107 : vector<1x1x6xf32> to vector<16x14x6xf32>
    %109 = arith.mulf %104, %108 : vector<16x14x6xf32>
    %c0_107 = arith.constant 0 : index
    %c2_108 = arith.constant 2 : index
    %c0_109 = arith.constant 0 : index
    %110 = vector.load %arg5[%c0_107, %c2_108, %c0_109] : memref<16x16x6xf32, #tpu.memory_space<vmem>>, vector<16x14x6xf32>
    %111 = arith.addf %110, %109 : vector<16x14x6xf32>
    %c0_110 = arith.constant 0 : index
    %c2_111 = arith.constant 2 : index
    %c0_112 = arith.constant 0 : index
    %112 = vector.load %arg5[%c0_110, %c2_111, %c0_112] : memref<16x16x6xf32, #tpu.memory_space<vmem>>, vector<16x14x6xf32>
    tpu.vector_store %arg5[%c0_110, %c2_111, %c0_112], %111 {strides = array<i32>} : memref<16x16x6xf32, #tpu.memory_space<vmem>>, vector<16x14x6xf32>,
    %c0_113 = arith.constant 0 : index
    %c0_114 = arith.constant 0 : index
    %c0_115 = arith.constant 0 : index
    %c0_116 = arith.constant 0 : index
    %113 = vector.load %arg2[%c0_113, %c0_114, %c0_115, %c0_116] : memref<1x16x16x6xf32, #tpu.memory_space<vmem>>, vector<1x16x15x6xf32>
    %114 = vector.shape_cast %113 : vector<1x16x15x6xf32> to vector<16x15x6xf32>
    %115 = vector.extract_strided_slice %2 {offsets = [2, 1, 0], sizes = [1, 1, 6], strides = [1, 1, 1]} : vector<5x5x6xf32> to vector<1x1x6xf32>
    %116 = vector.shape_cast %115 : vector<1x1x6xf32> to vector<6xf32>
    %117 = vector.shape_cast %116 : vector<6xf32> to vector<1x1x6xf32>
    %118 = vector.broadcast %117 : vector<1x1x6xf32> to vector<16x15x6xf32>
    %119 = arith.mulf %114, %118 : vector<16x15x6xf32>
    %c0_117 = arith.constant 0 : index
    %c1_118 = arith.constant 1 : index
    %c0_119 = arith.constant 0 : index
    %120 = vector.load %arg5[%c0_117, %c1_118, %c0_119] : memref<16x16x6xf32, #tpu.memory_space<vmem>>, vector<16x15x6xf32>
    %121 = arith.addf %120, %119 : vector<16x15x6xf32>
    %c0_120 = arith.constant 0 : index
    %c1_121 = arith.constant 1 : index
    %c0_122 = arith.constant 0 : index
    %122 = vector.load %arg5[%c0_120, %c1_121, %c0_122] : memref<16x16x6xf32, #tpu.memory_space<vmem>>, vector<16x15x6xf32>
    tpu.vector_store %arg5[%c0_120, %c1_121, %c0_122], %121 {strides = array<i32>} : memref<16x16x6xf32, #tpu.memory_space<vmem>>, vector<16x15x6xf32>,
    %c0_123 = arith.constant 0 : index
    %c0_124 = arith.constant 0 : index
    %c0_125 = arith.constant 0 : index
    %c0_126 = arith.constant 0 : index
    %123 = vector.load %arg2[%c0_123, %c0_124, %c0_125, %c0_126] : memref<1x16x16x6xf32, #tpu.memory_space<vmem>>, vector<1x16x16x6xf32>
    %124 = vector.shape_cast %123 : vector<1x16x16x6xf32> to vector<16x16x6xf32>
    %125 = vector.extract_strided_slice %2 {offsets = [2, 2, 0], sizes = [1, 1, 6], strides = [1, 1, 1]} : vector<5x5x6xf32> to vector<1x1x6xf32>
    %126 = vector.shape_cast %125 : vector<1x1x6xf32> to vector<6xf32>
    %127 = vector.shape_cast %126 : vector<6xf32> to vector<1x1x6xf32>
    %128 = vector.broadcast %127 : vector<1x1x6xf32> to vector<16x16x6xf32>
    %129 = arith.mulf %124, %128 : vector<16x16x6xf32>
    %c0_127 = arith.constant 0 : index
    %c0_128 = arith.constant 0 : index
    %c0_129 = arith.constant 0 : index
    %130 = vector.load %arg5[%c0_127, %c0_128, %c0_129] : memref<16x16x6xf32, #tpu.memory_space<vmem>>, vector<16x16x6xf32>
    %131 = arith.addf %130, %129 : vector<16x16x6xf32>
    %c0_130 = arith.constant 0 : index
    %c0_131 = arith.constant 0 : index
    %c0_132 = arith.constant 0 : index
    %132 = vector.load %arg5[%c0_130, %c0_131, %c0_132] : memref<16x16x6xf32, #tpu.memory_space<vmem>>, vector<16x16x6xf32>
    tpu.vector_store %arg5[%c0_130, %c0_131, %c0_132], %131 {strides = array<i32>} : memref<16x16x6xf32, #tpu.memory_space<vmem>>, vector<16x16x6xf32>,
    %c0_133 = arith.constant 0 : index
    %c0_134 = arith.constant 0 : index
    %c1_135 = arith.constant 1 : index
    %c0_136 = arith.constant 0 : index
    %133 = vector.load %arg2[%c0_133, %c0_134, %c1_135, %c0_136] : memref<1x16x16x6xf32, #tpu.memory_space<vmem>>, vector<1x16x15x6xf32>
    %134 = vector.shape_cast %133 : vector<1x16x15x6xf32> to vector<16x15x6xf32>
    %135 = vector.extract_strided_slice %2 {offsets = [2, 3, 0], sizes = [1, 1, 6], strides = [1, 1, 1]} : vector<5x5x6xf32> to vector<1x1x6xf32>
    %136 = vector.shape_cast %135 : vector<1x1x6xf32> to vector<6xf32>
    %137 = vector.shape_cast %136 : vector<6xf32> to vector<1x1x6xf32>
    %138 = vector.broadcast %137 : vector<1x1x6xf32> to vector<16x15x6xf32>
    %139 = arith.mulf %134, %138 : vector<16x15x6xf32>
    %c0_137 = arith.constant 0 : index
    %c0_138 = arith.constant 0 : index
    %c0_139 = arith.constant 0 : index
    %140 = vector.load %arg5[%c0_137, %c0_138, %c0_139] : memref<16x16x6xf32, #tpu.memory_space<vmem>>, vector<16x15x6xf32>
    %141 = arith.addf %140, %139 : vector<16x15x6xf32>
    %c0_140 = arith.constant 0 : index
    %c0_141 = arith.constant 0 : index
    %c0_142 = arith.constant 0 : index
    %142 = vector.load %arg5[%c0_140, %c0_141, %c0_142] : memref<16x16x6xf32, #tpu.memory_space<vmem>>, vector<16x15x6xf32>
    tpu.vector_store %arg5[%c0_140, %c0_141, %c0_142], %141 {strides = array<i32>} : memref<16x16x6xf32, #tpu.memory_space<vmem>>, vector<16x15x6xf32>,
    %c0_143 = arith.constant 0 : index
    %c0_144 = arith.constant 0 : index
    %c2_145 = arith.constant 2 : index
    %c0_146 = arith.constant 0 : index
    %143 = vector.load %arg2[%c0_143, %c0_144, %c2_145, %c0_146] : memref<1x16x16x6xf32, #tpu.memory_space<vmem>>, vector<1x16x14x6xf32>
    %144 = vector.shape_cast %143 : vector<1x16x14x6xf32> to vector<16x14x6xf32>
    %145 = vector.extract_strided_slice %2 {offsets = [2, 4, 0], sizes = [1, 1, 6], strides = [1, 1, 1]} : vector<5x5x6xf32> to vector<1x1x6xf32>
    %146 = vector.shape_cast %145 : vector<1x1x6xf32> to vector<6xf32>
    %147 = vector.shape_cast %146 : vector<6xf32> to vector<1x1x6xf32>
    %148 = vector.broadcast %147 : vector<1x1x6xf32> to vector<16x14x6xf32>
    %149 = arith.mulf %144, %148 : vector<16x14x6xf32>
    %c0_147 = arith.constant 0 : index
    %c0_148 = arith.constant 0 : index
    %c0_149 = arith.constant 0 : index
    %150 = vector.load %arg5[%c0_147, %c0_148, %c0_149] : memref<16x16x6xf32, #tpu.memory_space<vmem>>, vector<16x14x6xf32>
    %151 = arith.addf %150, %149 : vector<16x14x6xf32>
    %c0_150 = arith.constant 0 : index
    %c0_151 = arith.constant 0 : index
    %c0_152 = arith.constant 0 : index
    %152 = vector.load %arg5[%c0_150, %c0_151, %c0_152] : memref<16x16x6xf32, #tpu.memory_space<vmem>>, vector<16x14x6xf32>
    tpu.vector_store %arg5[%c0_150, %c0_151, %c0_152], %151 {strides = array<i32>} : memref<16x16x6xf32, #tpu.memory_space<vmem>>, vector<16x14x6xf32>,
    %c0_153 = arith.constant 0 : index
    %c1_154 = arith.constant 1 : index
    %c0_155 = arith.constant 0 : index
    %c0_156 = arith.constant 0 : index
    %153 = vector.load %arg2[%c0_153, %c1_154, %c0_155, %c0_156] : memref<1x16x16x6xf32, #tpu.memory_space<vmem>>, vector<1x15x14x6xf32>
    %154 = vector.shape_cast %153 : vector<1x15x14x6xf32> to vector<15x14x6xf32>
    %155 = vector.extract_strided_slice %2 {offsets = [3, 0, 0], sizes = [1, 1, 6], strides = [1, 1, 1]} : vector<5x5x6xf32> to vector<1x1x6xf32>
    %156 = vector.shape_cast %155 : vector<1x1x6xf32> to vector<6xf32>
    %157 = vector.shape_cast %156 : vector<6xf32> to vector<1x1x6xf32>
    %158 = vector.broadcast %157 : vector<1x1x6xf32> to vector<15x14x6xf32>
    %159 = arith.mulf %154, %158 : vector<15x14x6xf32>
    %c0_157 = arith.constant 0 : index
    %c2_158 = arith.constant 2 : index
    %c0_159 = arith.constant 0 : index
    %160 = vector.load %arg5[%c0_157, %c2_158, %c0_159] : memref<16x16x6xf32, #tpu.memory_space<vmem>>, vector<15x14x6xf32>
    %161 = arith.addf %160, %159 : vector<15x14x6xf32>
    %c0_160 = arith.constant 0 : index
    %c2_161 = arith.constant 2 : index
    %c0_162 = arith.constant 0 : index
    %162 = vector.load %arg5[%c0_160, %c2_161, %c0_162] : memref<16x16x6xf32, #tpu.memory_space<vmem>>, vector<15x14x6xf32>
    tpu.vector_store %arg5[%c0_160, %c2_161, %c0_162], %161 {strides = array<i32>} : memref<16x16x6xf32, #tpu.memory_space<vmem>>, vector<15x14x6xf32>,
    %c0_163 = arith.constant 0 : index
    %c1_164 = arith.constant 1 : index
    %c0_165 = arith.constant 0 : index
    %c0_166 = arith.constant 0 : index
    %163 = vector.load %arg2[%c0_163, %c1_164, %c0_165, %c0_166] : memref<1x16x16x6xf32, #tpu.memory_space<vmem>>, vector<1x15x15x6xf32>
    %164 = vector.shape_cast %163 : vector<1x15x15x6xf32> to vector<15x15x6xf32>
    %165 = vector.extract_strided_slice %2 {offsets = [3, 1, 0], sizes = [1, 1, 6], strides = [1, 1, 1]} : vector<5x5x6xf32> to vector<1x1x6xf32>
    %166 = vector.shape_cast %165 : vector<1x1x6xf32> to vector<6xf32>
    %167 = vector.shape_cast %166 : vector<6xf32> to vector<1x1x6xf32>
    %168 = vector.broadcast %167 : vector<1x1x6xf32> to vector<15x15x6xf32>
    %169 = arith.mulf %164, %168 : vector<15x15x6xf32>
    %c0_167 = arith.constant 0 : index
    %c1_168 = arith.constant 1 : index
    %c0_169 = arith.constant 0 : index
    %170 = vector.load %arg5[%c0_167, %c1_168, %c0_169] : memref<16x16x6xf32, #tpu.memory_space<vmem>>, vector<15x15x6xf32>
    %171 = arith.addf %170, %169 : vector<15x15x6xf32>
    %c0_170 = arith.constant 0 : index
    %c1_171 = arith.constant 1 : index
    %c0_172 = arith.constant 0 : index
    %172 = vector.load %arg5[%c0_170, %c1_171, %c0_172] : memref<16x16x6xf32, #tpu.memory_space<vmem>>, vector<15x15x6xf32>
    tpu.vector_store %arg5[%c0_170, %c1_171, %c0_172], %171 {strides = array<i32>} : memref<16x16x6xf32, #tpu.memory_space<vmem>>, vector<15x15x6xf32>,
    %c0_173 = arith.constant 0 : index
    %c1_174 = arith.constant 1 : index
    %c0_175 = arith.constant 0 : index
    %c0_176 = arith.constant 0 : index
    %173 = vector.load %arg2[%c0_173, %c1_174, %c0_175, %c0_176] : memref<1x16x16x6xf32, #tpu.memory_space<vmem>>, vector<1x15x16x6xf32>
    %174 = vector.shape_cast %173 : vector<1x15x16x6xf32> to vector<15x16x6xf32>
    %175 = vector.extract_strided_slice %2 {offsets = [3, 2, 0], sizes = [1, 1, 6], strides = [1, 1, 1]} : vector<5x5x6xf32> to vector<1x1x6xf32>
    %176 = vector.shape_cast %175 : vector<1x1x6xf32> to vector<6xf32>
    %177 = vector.shape_cast %176 : vector<6xf32> to vector<1x1x6xf32>
    %178 = vector.broadcast %177 : vector<1x1x6xf32> to vector<15x16x6xf32>
    %179 = arith.mulf %174, %178 : vector<15x16x6xf32>
    %c0_177 = arith.constant 0 : index
    %c0_178 = arith.constant 0 : index
    %c0_179 = arith.constant 0 : index
    %180 = vector.load %arg5[%c0_177, %c0_178, %c0_179] : memref<16x16x6xf32, #tpu.memory_space<vmem>>, vector<15x16x6xf32>
    %181 = arith.addf %180, %179 : vector<15x16x6xf32>
    %c0_180 = arith.constant 0 : index
    %c0_181 = arith.constant 0 : index
    %c0_182 = arith.constant 0 : index
    %182 = vector.load %arg5[%c0_180, %c0_181, %c0_182] : memref<16x16x6xf32, #tpu.memory_space<vmem>>, vector<15x16x6xf32>
    tpu.vector_store %arg5[%c0_180, %c0_181, %c0_182], %181 {strides = array<i32>} : memref<16x16x6xf32, #tpu.memory_space<vmem>>, vector<15x16x6xf32>,
    %c0_183 = arith.constant 0 : index
    %c1_184 = arith.constant 1 : index
    %c1_185 = arith.constant 1 : index
    %c0_186 = arith.constant 0 : index
    %183 = vector.load %arg2[%c0_183, %c1_184, %c1_185, %c0_186] : memref<1x16x16x6xf32, #tpu.memory_space<vmem>>, vector<1x15x15x6xf32>
    %184 = vector.shape_cast %183 : vector<1x15x15x6xf32> to vector<15x15x6xf32>
    %185 = vector.extract_strided_slice %2 {offsets = [3, 3, 0], sizes = [1, 1, 6], strides = [1, 1, 1]} : vector<5x5x6xf32> to vector<1x1x6xf32>
    %186 = vector.shape_cast %185 : vector<1x1x6xf32> to vector<6xf32>
    %187 = vector.shape_cast %186 : vector<6xf32> to vector<1x1x6xf32>
    %188 = vector.broadcast %187 : vector<1x1x6xf32> to vector<15x15x6xf32>
    %189 = arith.mulf %184, %188 : vector<15x15x6xf32>
    %c0_187 = arith.constant 0 : index
    %c0_188 = arith.constant 0 : index
    %c0_189 = arith.constant 0 : index
    %190 = vector.load %arg5[%c0_187, %c0_188, %c0_189] : memref<16x16x6xf32, #tpu.memory_space<vmem>>, vector<15x15x6xf32>
    %191 = arith.addf %190, %189 : vector<15x15x6xf32>
    %c0_190 = arith.constant 0 : index
    %c0_191 = arith.constant 0 : index
    %c0_192 = arith.constant 0 : index
    %192 = vector.load %arg5[%c0_190, %c0_191, %c0_192] : memref<16x16x6xf32, #tpu.memory_space<vmem>>, vector<15x15x6xf32>
    tpu.vector_store %arg5[%c0_190, %c0_191, %c0_192], %191 {strides = array<i32>} : memref<16x16x6xf32, #tpu.memory_space<vmem>>, vector<15x15x6xf32>,
    %c0_193 = arith.constant 0 : index
    %c1_194 = arith.constant 1 : index
    %c2_195 = arith.constant 2 : index
    %c0_196 = arith.constant 0 : index
    %193 = vector.load %arg2[%c0_193, %c1_194, %c2_195, %c0_196] : memref<1x16x16x6xf32, #tpu.memory_space<vmem>>, vector<1x15x14x6xf32>
    %194 = vector.shape_cast %193 : vector<1x15x14x6xf32> to vector<15x14x6xf32>
    %195 = vector.extract_strided_slice %2 {offsets = [3, 4, 0], sizes = [1, 1, 6], strides = [1, 1, 1]} : vector<5x5x6xf32> to vector<1x1x6xf32>
    %196 = vector.shape_cast %195 : vector<1x1x6xf32> to vector<6xf32>
    %197 = vector.shape_cast %196 : vector<6xf32> to vector<1x1x6xf32>
    %198 = vector.broadcast %197 : vector<1x1x6xf32> to vector<15x14x6xf32>
    %199 = arith.mulf %194, %198 : vector<15x14x6xf32>
    %c0_197 = arith.constant 0 : index
    %c0_198 = arith.constant 0 : index
    %c0_199 = arith.constant 0 : index
    %200 = vector.load %arg5[%c0_197, %c0_198, %c0_199] : memref<16x16x6xf32, #tpu.memory_space<vmem>>, vector<15x14x6xf32>
    %201 = arith.addf %200, %199 : vector<15x14x6xf32>
    %c0_200 = arith.constant 0 : index
    %c0_201 = arith.constant 0 : index
    %c0_202 = arith.constant 0 : index
    %202 = vector.load %arg5[%c0_200, %c0_201, %c0_202] : memref<16x16x6xf32, #tpu.memory_space<vmem>>, vector<15x14x6xf32>
    tpu.vector_store %arg5[%c0_200, %c0_201, %c0_202], %201 {strides = array<i32>} : memref<16x16x6xf32, #tpu.memory_space<vmem>>, vector<15x14x6xf32>,
    %c0_203 = arith.constant 0 : index
    %c2_204 = arith.constant 2 : index
    %c0_205 = arith.constant 0 : index
    %c0_206 = arith.constant 0 : index
    %203 = vector.load %arg2[%c0_203, %c2_204, %c0_205, %c0_206] : memref<1x16x16x6xf32, #tpu.memory_space<vmem>>, vector<1x14x14x6xf32>
    %204 = vector.shape_cast %203 : vector<1x14x14x6xf32> to vector<14x14x6xf32>
    %205 = vector.extract_strided_slice %2 {offsets = [4, 0, 0], sizes = [1, 1, 6], strides = [1, 1, 1]} : vector<5x5x6xf32> to vector<1x1x6xf32>
    %206 = vector.shape_cast %205 : vector<1x1x6xf32> to vector<6xf32>
    %207 = vector.shape_cast %206 : vector<6xf32> to vector<1x1x6xf32>
    %208 = vector.broadcast %207 : vector<1x1x6xf32> to vector<14x14x6xf32>
    %209 = arith.mulf %204, %208 : vector<14x14x6xf32>
    %c0_207 = arith.constant 0 : index
    %c2_208 = arith.constant 2 : index
    %c0_209 = arith.constant 0 : index
    %210 = vector.load %arg5[%c0_207, %c2_208, %c0_209] : memref<16x16x6xf32, #tpu.memory_space<vmem>>, vector<14x14x6xf32>
    %211 = arith.addf %210, %209 : vector<14x14x6xf32>
    %c0_210 = arith.constant 0 : index
    %c2_211 = arith.constant 2 : index
    %c0_212 = arith.constant 0 : index
    %212 = vector.load %arg5[%c0_210, %c2_211, %c0_212] : memref<16x16x6xf32, #tpu.memory_space<vmem>>, vector<14x14x6xf32>
    tpu.vector_store %arg5[%c0_210, %c2_211, %c0_212], %211 {strides = array<i32>} : memref<16x16x6xf32, #tpu.memory_space<vmem>>, vector<14x14x6xf32>,
    %c0_213 = arith.constant 0 : index
    %c2_214 = arith.constant 2 : index
    %c0_215 = arith.constant 0 : index
    %c0_216 = arith.constant 0 : index
    %213 = vector.load %arg2[%c0_213, %c2_214, %c0_215, %c0_216] : memref<1x16x16x6xf32, #tpu.memory_space<vmem>>, vector<1x14x15x6xf32>
    %214 = vector.shape_cast %213 : vector<1x14x15x6xf32> to vector<14x15x6xf32>
    %215 = vector.extract_strided_slice %2 {offsets = [4, 1, 0], sizes = [1, 1, 6], strides = [1, 1, 1]} : vector<5x5x6xf32> to vector<1x1x6xf32>
    %216 = vector.shape_cast %215 : vector<1x1x6xf32> to vector<6xf32>
    %217 = vector.shape_cast %216 : vector<6xf32> to vector<1x1x6xf32>
    %218 = vector.broadcast %217 : vector<1x1x6xf32> to vector<14x15x6xf32>
    %219 = arith.mulf %214, %218 : vector<14x15x6xf32>
    %c0_217 = arith.constant 0 : index
    %c1_218 = arith.constant 1 : index
    %c0_219 = arith.constant 0 : index
    %220 = vector.load %arg5[%c0_217, %c1_218, %c0_219] : memref<16x16x6xf32, #tpu.memory_space<vmem>>, vector<14x15x6xf32>
    %221 = arith.addf %220, %219 : vector<14x15x6xf32>
    %c0_220 = arith.constant 0 : index
    %c1_221 = arith.constant 1 : index
    %c0_222 = arith.constant 0 : index
    %222 = vector.load %arg5[%c0_220, %c1_221, %c0_222] : memref<16x16x6xf32, #tpu.memory_space<vmem>>, vector<14x15x6xf32>
    tpu.vector_store %arg5[%c0_220, %c1_221, %c0_222], %221 {strides = array<i32>} : memref<16x16x6xf32, #tpu.memory_space<vmem>>, vector<14x15x6xf32>,
    %c0_223 = arith.constant 0 : index
    %c2_224 = arith.constant 2 : index
    %c0_225 = arith.constant 0 : index
    %c0_226 = arith.constant 0 : index
    %223 = vector.load %arg2[%c0_223, %c2_224, %c0_225, %c0_226] : memref<1x16x16x6xf32, #tpu.memory_space<vmem>>, vector<1x14x16x6xf32>
    %224 = vector.shape_cast %223 : vector<1x14x16x6xf32> to vector<14x16x6xf32>
    %225 = vector.extract_strided_slice %2 {offsets = [4, 2, 0], sizes = [1, 1, 6], strides = [1, 1, 1]} : vector<5x5x6xf32> to vector<1x1x6xf32>
    %226 = vector.shape_cast %225 : vector<1x1x6xf32> to vector<6xf32>
    %227 = vector.shape_cast %226 : vector<6xf32> to vector<1x1x6xf32>
    %228 = vector.broadcast %227 : vector<1x1x6xf32> to vector<14x16x6xf32>
    %229 = arith.mulf %224, %228 : vector<14x16x6xf32>
    %c0_227 = arith.constant 0 : index
    %c0_228 = arith.constant 0 : index
    %c0_229 = arith.constant 0 : index
    %230 = vector.load %arg5[%c0_227, %c0_228, %c0_229] : memref<16x16x6xf32, #tpu.memory_space<vmem>>, vector<14x16x6xf32>
    %231 = arith.addf %230, %229 : vector<14x16x6xf32>
    %c0_230 = arith.constant 0 : index
    %c0_231 = arith.constant 0 : index
    %c0_232 = arith.constant 0 : index
    %232 = vector.load %arg5[%c0_230, %c0_231, %c0_232] : memref<16x16x6xf32, #tpu.memory_space<vmem>>, vector<14x16x6xf32>
    tpu.vector_store %arg5[%c0_230, %c0_231, %c0_232], %231 {strides = array<i32>} : memref<16x16x6xf32, #tpu.memory_space<vmem>>, vector<14x16x6xf32>,
    %c0_233 = arith.constant 0 : index
    %c2_234 = arith.constant 2 : index
    %c1_235 = arith.constant 1 : index
    %c0_236 = arith.constant 0 : index
    %233 = vector.load %arg2[%c0_233, %c2_234, %c1_235, %c0_236] : memref<1x16x16x6xf32, #tpu.memory_space<vmem>>, vector<1x14x15x6xf32>
    %234 = vector.shape_cast %233 : vector<1x14x15x6xf32> to vector<14x15x6xf32>
    %235 = vector.extract_strided_slice %2 {offsets = [4, 3, 0], sizes = [1, 1, 6], strides = [1, 1, 1]} : vector<5x5x6xf32> to vector<1x1x6xf32>
    %236 = vector.shape_cast %235 : vector<1x1x6xf32> to vector<6xf32>
    %237 = vector.shape_cast %236 : vector<6xf32> to vector<1x1x6xf32>
    %238 = vector.broadcast %237 : vector<1x1x6xf32> to vector<14x15x6xf32>
    %239 = arith.mulf %234, %238 : vector<14x15x6xf32>
    %c0_237 = arith.constant 0 : index
    %c0_238 = arith.constant 0 : index
    %c0_239 = arith.constant 0 : index
    %240 = vector.load %arg5[%c0_237, %c0_238, %c0_239] : memref<16x16x6xf32, #tpu.memory_space<vmem>>, vector<14x15x6xf32>
    %241 = arith.addf %240, %239 : vector<14x15x6xf32>
    %c0_240 = arith.constant 0 : index
    %c0_241 = arith.constant 0 : index
    %c0_242 = arith.constant 0 : index
    %242 = vector.load %arg5[%c0_240, %c0_241, %c0_242] : memref<16x16x6xf32, #tpu.memory_space<vmem>>, vector<14x15x6xf32>
    tpu.vector_store %arg5[%c0_240, %c0_241, %c0_242], %241 {strides = array<i32>} : memref<16x16x6xf32, #tpu.memory_space<vmem>>, vector<14x15x6xf32>,
    %c0_243 = arith.constant 0 : index
    %c2_244 = arith.constant 2 : index
    %c2_245 = arith.constant 2 : index
    %c0_246 = arith.constant 0 : index
    %243 = vector.load %arg2[%c0_243, %c2_244, %c2_245, %c0_246] : memref<1x16x16x6xf32, #tpu.memory_space<vmem>>, vector<1x14x14x6xf32>
    %244 = vector.shape_cast %243 : vector<1x14x14x6xf32> to vector<14x14x6xf32>
    %245 = vector.extract_strided_slice %2 {offsets = [4, 4, 0], sizes = [1, 1, 6], strides = [1, 1, 1]} : vector<5x5x6xf32> to vector<1x1x6xf32>
    %246 = vector.shape_cast %245 : vector<1x1x6xf32> to vector<6xf32>
    %247 = vector.shape_cast %246 : vector<6xf32> to vector<1x1x6xf32>
    %248 = vector.broadcast %247 : vector<1x1x6xf32> to vector<14x14x6xf32>
    %249 = arith.mulf %244, %248 : vector<14x14x6xf32>
    %c0_247 = arith.constant 0 : index
    %c0_248 = arith.constant 0 : index
    %c0_249 = arith.constant 0 : index
    %250 = vector.load %arg5[%c0_247, %c0_248, %c0_249] : memref<16x16x6xf32, #tpu.memory_space<vmem>>, vector<14x14x6xf32>
    %251 = arith.addf %250, %249 : vector<14x14x6xf32>
    %c0_250 = arith.constant 0 : index
    %c0_251 = arith.constant 0 : index
    %c0_252 = arith.constant 0 : index
    %252 = vector.load %arg5[%c0_250, %c0_251, %c0_252] : memref<16x16x6xf32, #tpu.memory_space<vmem>>, vector<14x14x6xf32>
    tpu.vector_store %arg5[%c0_250, %c0_251, %c0_252], %251 {strides = array<i32>} : memref<16x16x6xf32, #tpu.memory_space<vmem>>, vector<14x14x6xf32>,
    %c0_253 = arith.constant 0 : index
    %c0_254 = arith.constant 0 : index
    %c0_255 = arith.constant 0 : index
    %253 = vector.load %arg5[%c0_253, %c0_254, %c0_255] : memref<16x16x6xf32, #tpu.memory_space<vmem>>, vector<16x16x6xf32>
    %c0_256 = arith.constant 0 : index
    %c0_257 = arith.constant 0 : index
    %c0_258 = arith.constant 0 : index
    %c0_259 = arith.constant 0 : index
    %254 = vector.load %arg4[%c0_256, %c0_257, %c0_258, %c0_259] : memref<1x16x16x6xf32, #tpu.memory_space<vmem>>, vector<1x16x16x6xf32>
    %255 = vector.shape_cast %254 : vector<1x16x16x6xf32> to vector<16x16x6xf32>
    %256 = vector.shape_cast %253 : vector<16x16x6xf32> to vector<1x16x16x6xf32>
    tpu.vector_store %arg4[%c0_256, %c0_257, %c0_258, %c0_259], %256 {strides = array<i32>} : memref<1x16x16x6xf32, #tpu.memory_space<vmem>>, vector<1x16x16x6xf32>,
    return
  }
  func.func @transform_0(%arg0: i32, %arg1: i32) -> (i32, i32, i32, i32) {
    %c0_i32 = arith.constant 0 : i32
    %c0_i32_0 = arith.constant 0 : i32
    %c0_i32_1 = arith.constant 0 : i32
    return %arg0, %c0_i32, %c0_i32_0, %arg1 : i32, i32, i32, i32
  }
  func.func @transform_1(%arg0: i32, %arg1: i32) -> (i32, i32, i32) {
    %c0_i32 = arith.constant 0 : i32
    %c0_i32_0 = arith.constant 0 : i32
    %c0_i32_1 = arith.constant 0 : i32
    return %c0_i32, %c0_i32_0, %arg1 : i32, i32, i32
  }
  func.func @transform_2(%arg0: i32, %arg1: i32) -> (i32, i32, i32, i32) {
    %c0_i32 = arith.constant 0 : i32
    %c0_i32_0 = arith.constant 0 : i32
    %c0_i32_1 = arith.constant 0 : i32
    return %arg0, %c0_i32, %c0_i32_0, %arg1 : i32, i32, i32, i32
  }
}

</mosaic_0001>

<llo_original>
// kernel: tpu_custom_call.1
$region0: #{tpu_custom_call.1}
  #allocation0 [shape = 'u32[]', space=smem, size = 0x4, offset = 0x4, fixed_abs, tag = 'smem constant byte address 0x4 - core index']
  #allocation1 [shape = 'u32[144,128]{1,0:T(1,128)}', space=vmem, size = 0x12000, scoped, tag = 'internal scratch']
  #allocation2 [shape = 'f32[16,16,6]{2,1,0:T(8,128)}', space=vmem, size = 0x20000, scoped, tag = 'scratch operand']
  %s0 = inlined_call_operand.vmem [shape: f32[2,16,16,6], index: 0, kind: input, shape index: {}]
  %s1 = inlined_call_operand.vmem [shape: f32[5,5,6], index: 1, kind: input, shape index: {}]
  %s2 = inlined_call_operand.vmem [shape: f32[2,16,16,6], index: 2, kind: output, shape index: {}]
  %s3 = sld [smem:[#allocation0]]
  $region41: #{tpu_custom_call.1} parent=0
    _
  %s5 = ssub.s32 1, %s3
  %s6 = scalar_select 0, %s5, %s3
  loop: start=0, step=1, limit=4
  $region2: #{tpu_custom_call.1} parent=0 // loop_pre_header
    _
  $region3: #{tpu_custom_call.1} parent=0 // loop_header
    %s8 = sphi 0, %s12
    %p9 = scmp.ge.s32.totalorder %s8, 4
    %s15 = sphi 0, %s27
    %s16 = sphi 0, %s23
    %s17 = sphi 0, %s15
    %s18 = sphi 0, %s16
    %s19 = sphi 0, %s17
    %s20 = sphi 0, %s18
    %s32 = sphi 0, %s34
    %s35 = sphi 0, %s32
    %s36 = sphi 0, %s35
    %s52 = sphi 0, %s36
    %s58 = sphi 0, %s60
    %s61 = sphi 0, %s58
    %s62 = sphi 0, %s61
    %s78 = sphi 0, %s62
    %s86 = sphi 0, %s88
    %s89 = sphi 0, %s86
    %s90 = sphi 0, %s89
    %s106 = sphi 0, %s90
  $region4: #{tpu_custom_call.1} parent=0 // loop_header_branch
    %11 = sbr.rel (%p9) target = $region8
  $region5: #{tpu_custom_call.1} parent=0 // loop_body
    %s13 = ssub.s32 %s8, 1
    %s14 = ssub.s32 %s8, 2
    %s21 = sadd.s32 1, %s16
    %p22 = scmp.ge.s32.totalorder %s21, 1
    %s23 = scalar_select %p22, 0, %s21
    %s24 = sadd.s32 1, %s15
    %s25 = scalar_select %p22, %s24, %s15
    %p26 = scmp.ge.s32.totalorder %s25, 2
    %s27 = scalar_select %p26, 0, %s25
    %s28 = ssub.s32 %s15, %s27
    %s29 = ssub.s32 %s16, %s23
    %s30 = sor.u32 %s28, %s29
    %p31 = scmp.eq.s32.totalorder %s30, 0
    %s33 = sadd.s32 %s32, 1
    %s34 = scalar_select %p31, %s32, %s33
    %p37 = pneg %p31
    %p38 = scmp.eq.s32.totalorder %s8, 1
    %p39 = por %p37, %p38
    %p40 = scmp.ne.s32.totalorder %s32, %s35
    %p41 = scmp.eq.s32.totalorder %s8, 0
    %p42 = por %p40, %p41
    %p43 = scmp.ne.s32.totalorder %s32, %s35
    %p44 = scmp.eq.s32.totalorder %s13, 1
    %p45 = por %p43, %p44
    %p46 = scmp.ne.s32.totalorder %s35, %s36
    %p47 = scmp.eq.s32.totalorder %s13, 0
    %p48 = por %p46, %p47
    %p49 = scmp.ne.s32.totalorder %s35, %s36
    %p50 = scmp.eq.s32.totalorder %s14, 1
    %p51 = por %p49, %p50
    %p53 = scmp.ne.s32.totalorder %s36, %s52
    %p54 = scmp.eq.s32.totalorder %s14, 0
    %p55 = por %p53, %p54
    %s56 = ssub.s32 %s16, %s23
    %p57 = scmp.eq.s32.totalorder %s56, 0
    %s59 = sadd.s32 %s58, 1
    %s60 = scalar_select %p57, %s58, %s59
    %p63 = pneg %p57
    %p64 = scmp.eq.s32.totalorder %s8, 1
    %p65 = por %p63, %p64
    %p66 = scmp.ne.s32.totalorder %s58, %s61
    %p67 = scmp.eq.s32.totalorder %s8, 0
    %p68 = por %p66, %p67
    %p69 = scmp.ne.s32.totalorder %s58, %s61
    %p70 = scmp.eq.s32.totalorder %s13, 1
    %p71 = por %p69, %p70
    %p72 = scmp.ne.s32.totalorder %s61, %s62
    %p73 = scmp.eq.s32.totalorder %s13, 0
    %p74 = por %p72, %p73
    %p75 = scmp.ne.s32.totalorder %s61, %s62
    %p76 = scmp.eq.s32.totalorder %s14, 1
    %p77 = por %p75, %p76
    %p79 = scmp.ne.s32.totalorder %s62, %s78
    %p80 = scmp.eq.s32.totalorder %s14, 0
    %p81 = por %p79, %p80
    %s82 = ssub.s32 %s15, %s27
    %s83 = ssub.s32 %s16, %s23
    %s84 = sor.u32 %s82, %s83
    %p85 = scmp.eq.s32.totalorder %s84, 0
    %s87 = sadd.s32 %s86, 1
    %s88 = scalar_select %p85, %s86, %s87
    %p91 = pneg %p85
    %p92 = scmp.eq.s32.totalorder %s8, 1
    %p93 = por %p91, %p92
    %p94 = scmp.ne.s32.totalorder %s86, %s89
    %p95 = scmp.eq.s32.totalorder %s8, 0
    %p96 = por %p94, %p95
    %p97 = scmp.ne.s32.totalorder %s86, %s89
    %p98 = scmp.eq.s32.totalorder %s13, 1
    %p99 = por %p97, %p98
    %p100 = scmp.ne.s32.totalorder %s89, %s90
    %p101 = scmp.eq.s32.totalorder %s13, 0
    %p102 = por %p100, %p101
    %p103 = scmp.ne.s32.totalorder %s89, %s90
    %p104 = scmp.eq.s32.totalorder %s14, 1
    %p105 = por %p103, %p104
    %p107 = scmp.ne.s32.totalorder %s90, %s106
    %p108 = scmp.eq.s32.totalorder %s14, 0
    %p109 = por %p107, %p108
    %p110 = scmp.le.s32.totalorder 1, %s8
    %p111 = scmp.lt.s32.totalorder %s8, 3
    %p112 = pnand %p110, %p111
    %p113 = pneg %p112
    // Predicated region
    $region9: #{tpu_custom_call.1} parent=5 // pred_check
      _
    $region10: #{tpu_custom_call.1} parent=5 // pred_check_branch
      %115 = sbr.rel (%p112) target = $region12
    $region11: #{tpu_custom_call.1} parent=5 // pred_region
      %s116 = ssub.s32 %s8, 1
      // Predicated region
      $region13: #{tpu_custom_call.1} parent=11 // pred_check
        %p117 = pneg %p74
      $region14: #{tpu_custom_call.1} parent=11 // pred_check_branch
        %119 = sbr.rel (%p117) target = $region16
      $region15: #{tpu_custom_call.1} parent=11 // pred_region
        %p120 = scmp.lt.s32.totalorder %s18, 0
        %s121 = scalar_select %p120, %s18, 0
        %s122 = smul.addr %s121, 8
        %s123 = scalar_lea.vmem %s1, %s122
      $region16: #{tpu_custom_call.1} parent=11 // pred_fallthru
        _
    $region12: #{tpu_custom_call.1} parent=5 // pred_fallthru
      _
    %p124 = scmp.lt.s32.totalorder %s8, 2
    // Predicated region
    $region17: #{tpu_custom_call.1} parent=5 // pred_check
      %p125 = pneg %p124
    $region18: #{tpu_custom_call.1} parent=5 // pred_check_branch
      %127 = sbr.rel (%p125) target = $region20
    $region19: #{tpu_custom_call.1} parent=5 // pred_region
      // Predicated region
      $region21: #{tpu_custom_call.1} parent=19 // pred_check
        %p128 = pneg %p42
      $region22: #{tpu_custom_call.1} parent=19 // pred_check_branch
        %130 = sbr.rel (%p128) target = $region24
      $region23: #{tpu_custom_call.1} parent=19 // pred_region
        %p131 = scmp.lt.s32.totalorder %s15, 1
        %s132 = scalar_select %p131, %s15, 1
        %p133 = scmp.lt.s32.totalorder %s16, 0
        %s134 = scalar_select %p133, %s16, 0
        %s135 = smul.addr %s132, 32
        %s136 = sadd.s32 %s134, %s135
        %s137 = smul.addr %s136, 8
        %s138 = scalar_lea.vmem %s0, %s137
      $region24: #{tpu_custom_call.1} parent=19 // pred_fallthru
        _
    $region20: #{tpu_custom_call.1} parent=5 // pred_fallthru
      _
    %p139 = scmp.le.s32.totalorder 1, %s8
    %p140 = scmp.lt.s32.totalorder %s8, 3
    %p141 = pnand %p139, %p140
    %p142 = pneg %p141
    // Predicated region
    $region25: #{tpu_custom_call.1} parent=5 // pred_check
      _
    $region26: #{tpu_custom_call.1} parent=5 // pred_check_branch
      %144 = sbr.rel (%p141) target = $region28
    $region27: #{tpu_custom_call.1} parent=5 // pred_region
      %s145 = ssub.s32 %s8, 1
      %p146 = scmp.lt.s32.totalorder %s17, 1
      %s147 = scalar_select %p146, %s17, 1
      %p148 = scmp.lt.s32.totalorder %s18, 0
      %s149 = scalar_select %p148, %s18, 0
      %s150 = smul.addr %s147, 32
      %s151 = sadd.s32 %s149, %s150
      %s152 = smul.addr %s151, 8
      %s153 = scalar_lea.vmem %s0, %s152
      %p154 = pneg %p48
      %p155 = pneg %p45
      %p156 = scmp.lt.s32.totalorder %s18, 0
      %s157 = scalar_select %p156, %s18, 0
      %s158 = smul.addr %s157, 8
      %s159 = scalar_lea.vmem %s1, %s158
      %p160 = pneg %p74
      %p161 = pneg %p71
      %p162 = pneg %p102
      %p163 = pneg %p99
      %p164 = scmp.lt.s32.totalorder %s17, 1
      %s165 = scalar_select %p164, %s17, 1
      %p166 = scmp.lt.s32.totalorder %s18, 0
      %s167 = scalar_select %p166, %s18, 0
      %s168 = smul.addr %s165, 32
      %s169 = sadd.s32 %s167, %s168
      %s170 = smul.addr %s169, 8
      %s171 = scalar_lea.vmem %s2, %s170
      %p172 = scmp.lt.s32.totalorder %s17, 1
      %s173 = scalar_select %p172, %s17, 1
      %p174 = scmp.lt.s32.totalorder %s18, 0
      %s175 = scalar_select %p174, %s18, 0
      %s176 = smul.addr %s173, 32
      %s177 = sadd.s32 %s175, %s176
      %s178 = smul.addr %s177, 8
      %s179 = scalar_lea.vmem %s0, %s178
      %p180 = scmp.lt.s32.totalorder %s18, 0
      %s181 = scalar_select %p180, %s18, 0
      %s182 = smul.addr %s181, 8
      %s183 = scalar_lea.vmem %s1, %s182
      %p184 = scmp.lt.s32.totalorder %s17, 1
      %s185 = scalar_select %p184, %s17, 1
      %p186 = scmp.lt.s32.totalorder %s18, 0
      %s187 = scalar_select %p186, %s18, 0
      %s188 = smul.addr %s185, 32
      %s189 = sadd.s32 %s187, %s188
      %s190 = smul.addr %s189, 8
      %s191 = scalar_lea.vmem %s2, %s190
      %vm192 = vcmask 48128
      %193 = vst.msk [vmem:[#allocation2] sm:$0xff] %vm192, 0.0
      %194 = vst.msk [vmem:[#allocation2 + $0x8] sm:$0xff] %vm192, 0.0
      %195 = vst.msk [vmem:[#allocation2 + $0x10] sm:$0xff] %vm192, 0.0
      %196 = vst.msk [vmem:[#allocation2 + $0x18] sm:$0xff] %vm192, 0.0
      %197 = vst.msk [vmem:[#allocation2 + $0x20] sm:$0xff] %vm192, 0.0
      %198 = vst.msk [vmem:[#allocation2 + $0x28] sm:$0xff] %vm192, 0.0
      %199 = vst.msk [vmem:[#allocation2 + $0x30] sm:$0xff] %vm192, 0.0
      %200 = vst.msk [vmem:[#allocation2 + $0x38] sm:$0xff] %vm192, 0.0
      %201 = vst.msk [vmem:[#allocation2 + $0x40] sm:$0xff] %vm192, 0.0
      %202 = vst.msk [vmem:[#allocation2 + $0x48] sm:$0xff] %vm192, 0.0
      %203 = vst.msk [vmem:[#allocation2 + $0x50] sm:$0xff] %vm192, 0.0
      %204 = vst.msk [vmem:[#allocation2 + $0x58] sm:$0xff] %vm192, 0.0
      %205 = vst.msk [vmem:[#allocation2 + $0x60] sm:$0xff] %vm192, 0.0
      %206 = vst.msk [vmem:[#allocation2 + $0x68] sm:$0xff] %vm192, 0.0
      %207 = vst.msk [vmem:[#allocation2 + $0x70] sm:$0xff] %vm192, 0.0
      %208 = vst.msk [vmem:[#allocation2 + $0x78] sm:$0xff] %vm192, 0.0
      %209 = vst.msk [vmem:[#allocation2 + $0x80] sm:$0xff] %vm192, 0.0
      %210 = vst.msk [vmem:[#allocation2 + $0x88] sm:$0xff] %vm192, 0.0
      %211 = vst.msk [vmem:[#allocation2 + $0x90] sm:$0xff] %vm192, 0.0
      %212 = vst.msk [vmem:[#allocation2 + $0x98] sm:$0xff] %vm192, 0.0
      %213 = vst.msk [vmem:[#allocation2 + $0xa0] sm:$0xff] %vm192, 0.0
      %214 = vst.msk [vmem:[#allocation2 + $0xa8] sm:$0xff] %vm192, 0.0
      %215 = vst.msk [vmem:[#allocation2 + $0xb0] sm:$0xff] %vm192, 0.0
      %216 = vst.msk [vmem:[#allocation2 + $0xb8] sm:$0xff] %vm192, 0.0
      %217 = vst.msk [vmem:[#allocation2 + $0xc0] sm:$0xff] %vm192, 0.0
      %218 = vst.msk [vmem:[#allocation2 + $0xc8] sm:$0xff] %vm192, 0.0
      %219 = vst.msk [vmem:[#allocation2 + $0xd0] sm:$0xff] %vm192, 0.0
      %220 = vst.msk [vmem:[#allocation2 + $0xd8] sm:$0xff] %vm192, 0.0
      %221 = vst.msk [vmem:[#allocation2 + $0xe0] sm:$0xff] %vm192, 0.0
      %222 = vst.msk [vmem:[#allocation2 + $0xe8] sm:$0xff] %vm192, 0.0
      %223 = vst.msk [vmem:[#allocation2 + $0xf0] sm:$0xff] %vm192, 0.0
      %224 = vst.msk [vmem:[#allocation2 + $0xf8] sm:$0xff] %vm192, 0.0
      %v225 = vld [vmem:[%s183] sm:$0x1f]
      %v226 = vld [vmem:[%s183 + $0x8] sm:$0x1f]
      %v227 = vld [vmem:[%s183 + $0x10] sm:$0x1f]
      %v228 = vld [vmem:[%s183 + $0x18] sm:$0x1f]
      %v229 = vld [vmem:[%s183 + $0x20] sm:$0x1f]
      %v230 = vld [vmem:[%s179] sm:$0xff]
      %v231 = vld [vmem:[%s179 + $0x8] sm:$0x3f]
      %v232 = vld [vmem:[%s179 + $0x10] sm:$0xff]
      %v233 = vld [vmem:[%s179 + $0x18] sm:$0x3f]
      %v234 = vld [vmem:[%s179 + $0x20] sm:$0xff]
      %v235 = vld [vmem:[%s179 + $0x28] sm:$0x3f]
      %v236 = vld [vmem:[%s179 + $0x30] sm:$0xff]
      %v237 = vld [vmem:[%s179 + $0x38] sm:$0x3f]
      %v238 = vld [vmem:[%s179 + $0x40] sm:$0xff]
      %v239 = vld [vmem:[%s179 + $0x48] sm:$0x3f]
      %v240 = vld [vmem:[%s179 + $0x50] sm:$0xff]
      %v241 = vld [vmem:[%s179 + $0x58] sm:$0x3f]
      %v242 = vld [vmem:[%s179 + $0x60] sm:$0xff]
      %v243 = vld [vmem:[%s179 + $0x68] sm:$0x3f]
      %v244 = vld [vmem:[%s179 + $0x70] sm:$0xff]
      %v245 = vld [vmem:[%s179 + $0x78] sm:$0x3f]
      %v246 = vld [vmem:[%s179 + $0x80] sm:$0xff]
      %v247 = vld [vmem:[%s179 + $0x88] sm:$0x3f]
      %v248 = vld [vmem:[%s179 + $0x90] sm:$0xff]
      %v249 = vld [vmem:[%s179 + $0x98] sm:$0x3f]
      %v250 = vld [vmem:[%s179 + $0xa0] sm:$0xff]
      %v251 = vld [vmem:[%s179 + $0xa8] sm:$0x3f]
      %v252 = vld [vmem:[%s179 + $0xb0] sm:$0xff]
      %v253 = vld [vmem:[%s179 + $0xb8] sm:$0x3f]
      %v254 = vld [vmem:[%s179 + $0xc0] sm:$0xff]
      %v255 = vld [vmem:[%s179 + $0xc8] sm:$0x3f]
      %v256 = vld [vmem:[%s179 + $0xd0] sm:$0xff]
      %v257 = vld [vmem:[%s179 + $0xd8] sm:$0x3f]
      %v258 = vlaneseq
      %v259 = vshrl.u32 %v258, 7
      %v260 = vsub.s32 0, %v259
      %v261 = vrot.slane %v225, %v260
      %v262 = vmul.f32 %v230, %v261
      %v263 = vmul.f32 %v231, %v261
      %v264 = vmul.f32 %v232, %v261
      %v265 = vmul.f32 %v233, %v261
      %v266 = vmul.f32 %v234, %v261
      %v267 = vmul.f32 %v235, %v261
      %v268 = vmul.f32 %v236, %v261
      %v269 = vmul.f32 %v237, %v261
      %v270 = vmul.f32 %v238, %v261
      %v271 = vmul.f32 %v239, %v261
      %v272 = vmul.f32 %v240, %v261
      %v273 = vmul.f32 %v241, %v261
      %v274 = vmul.f32 %v242, %v261
      %v275 = vmul.f32 %v243, %v261
      %v276 = vmul.f32 %v244, %v261
      %v277 = vmul.f32 %v245, %v261
      %v278 = vmul.f32 %v246, %v261
      %v279 = vmul.f32 %v247, %v261
      %v280 = vmul.f32 %v248, %v261
      %v281 = vmul.f32 %v249, %v261
      %v282 = vmul.f32 %v250, %v261
      %v283 = vmul.f32 %v251, %v261
      %v284 = vmul.f32 %v252, %v261
      %v285 = vmul.f32 %v253, %v261
      %v286 = vmul.f32 %v254, %v261
      %v287 = vmul.f32 %v255, %v261
      %v288 = vmul.f32 %v256, %v261
      %v289 = vmul.f32 %v257, %v261
      %s290 = scalar_lea.vmem [#allocation2], 32
      %v291 = vld [vmem:[%s290 + $0x2] sm:$0xff]
      %v292 = vld [vmem:[%s290 + $0xa] sm:$0x3f]
      %v293 = vld [vmem:[%s290 + $0x12] sm:$0xff]
      %v294 = vld [vmem:[%s290 + $0x1a] sm:$0x3f]
      %v295 = vld [vmem:[%s290 + $0x22] sm:$0xff]
      %v296 = vld [vmem:[%s290 + $0x2a] sm:$0x3f]
      %v297 = vld [vmem:[%s290 + $0x32] sm:$0xff]
      %v298 = vld [vmem:[%s290 + $0x3a] sm:$0x3f]
      %v299 = vld [vmem:[%s290 + $0x42] sm:$0xff]
      %v300 = vld [vmem:[%s290 + $0x4a] sm:$0x3f]
      %v301 = vld [vmem:[%s290 + $0x52] sm:$0xff]
      %v302 = vld [vmem:[%s290 + $0x5a] sm:$0x3f]
      %v303 = vld [vmem:[%s290 + $0x62] sm:$0xff]
      %v304 = vld [vmem:[%s290 + $0x6a] sm:$0x3f]
      %v305 = vld [vmem:[%s290 + $0x72] sm:$0xff]
      %v306 = vld [vmem:[%s290 + $0x7a] sm:$0x3f]
      %v307 = vld [vmem:[%s290 + $0x82] sm:$0xff]
      %v308 = vld [vmem:[%s290 + $0x8a] sm:$0x3f]
      %v309 = vld [vmem:[%s290 + $0x92] sm:$0xff]
      %v310 = vld [vmem:[%s290 + $0x9a] sm:$0x3f]
      %v311 = vld [vmem:[%s290 + $0xa2] sm:$0xff]
      %v312 = vld [vmem:[%s290 + $0xaa] sm:$0x3f]
      %v313 = vld [vmem:[%s290 + $0xb2] sm:$0xff]
      %v314 = vld [vmem:[%s290 + $0xba] sm:$0x3f]
      %v315 = vld [vmem:[%s290 + $0xc2] sm:$0xff]
      %v316 = vld [vmem:[%s290 + $0xca] sm:$0x3f]
      %v317 = vld [vmem:[%s290 + $0xd2] sm:$0xff]
      %v318 = vld [vmem:[%s290 + $0xda] sm:$0x3f]
      %v319 = vadd.f32 %v291, %v262
      %v320 = vadd.f32 %v292, %v263
      %v321 = vadd.f32 %v293, %v264
      %v322 = vadd.f32 %v294, %v265
      %v323 = vadd.f32 %v295, %v266
      %v324 = vadd.f32 %v296, %v267
      %v325 = vadd.f32 %v297, %v268
      %v326 = vadd.f32 %v298, %v269
      %v327 = vadd.f32 %v299, %v270
      %v328 = vadd.f32 %v300, %v271
      %v329 = vadd.f32 %v301, %v272
      %v330 = vadd.f32 %v302, %v273
      %v331 = vadd.f32 %v303, %v274
      %v332 = vadd.f32 %v304, %v275
      %v333 = vadd.f32 %v305, %v276
      %v334 = vadd.f32 %v306, %v277
      %v335 = vadd.f32 %v307, %v278
      %v336 = vadd.f32 %v308, %v279
      %v337 = vadd.f32 %v309, %v280
      %v338 = vadd.f32 %v310, %v281
      %v339 = vadd.f32 %v311, %v282
      %v340 = vadd.f32 %v312, %v283
      %v341 = vadd.f32 %v313, %v284
      %v342 = vadd.f32 %v314, %v285
      %v343 = vadd.f32 %v315, %v286
      %v344 = vadd.f32 %v316, %v287
      %v345 = vadd.f32 %v317, %v288
      %v346 = vadd.f32 %v318, %v289
      %347 = vst.msk [vmem:[%s290 + $0x2] sm:$0xff] %vm192, %v319
      %vm348 = vcmask 46080
      %349 = vst.msk [vmem:[%s290 + $0xa] sm:$0x3f] %vm348, %v320
      %350 = vst.msk [vmem:[%s290 + $0x12] sm:$0xff] %vm192, %v321
      %351 = vst.msk [vmem:[%s290 + $0x1a] sm:$0x3f] %vm348, %v322
      %352 = vst.msk [vmem:[%s290 + $0x22] sm:$0xff] %vm192, %v323
      %353 = vst.msk [vmem:[%s290 + $0x2a] sm:$0x3f] %vm348, %v324
      %354 = vst.msk [vmem:[%s290 + $0x32] sm:$0xff] %vm192, %v325
      %355 = vst.msk [vmem:[%s290 + $0x3a] sm:$0x3f] %vm348, %v326
      %356 = vst.msk [vmem:[%s290 + $0x42] sm:$0xff] %vm192, %v327
      %357 = vst.msk [vmem:[%s290 + $0x4a] sm:$0x3f] %vm348, %v328
      %358 = vst.msk [vmem:[%s290 + $0x52] sm:$0xff] %vm192, %v329
      %359 = vst.msk [vmem:[%s290 + $0x5a] sm:$0x3f] %vm348, %v330
      %360 = vst.msk [vmem:[%s290 + $0x62] sm:$0xff] %vm192, %v331
      %361 = vst.msk [vmem:[%s290 + $0x6a] sm:$0x3f] %vm348, %v332
      %362 = vst.msk [vmem:[%s290 + $0x72] sm:$0xff] %vm192, %v333
      %363 = vst.msk [vmem:[%s290 + $0x7a] sm:$0x3f] %vm348, %v334
      %364 = vst.msk [vmem:[%s290 + $0x82] sm:$0xff] %vm192, %v335
      %365 = vst.msk [vmem:[%s290 + $0x8a] sm:$0x3f] %vm348, %v336
      %366 = vst.msk [vmem:[%s290 + $0x92] sm:$0xff] %vm192, %v337
      %367 = vst.msk [vmem:[%s290 + $0x9a] sm:$0x3f] %vm348, %v338
      %368 = vst.msk [vmem:[%s290 + $0xa2] sm:$0xff] %vm192, %v339
      %369 = vst.msk [vmem:[%s290 + $0xaa] sm:$0x3f] %vm348, %v340
      %370 = vst.msk [vmem:[%s290 + $0xb2] sm:$0xff] %vm192, %v341
      %371 = vst.msk [vmem:[%s290 + $0xba] sm:$0x3f] %vm348, %v342
      %372 = vst.msk [vmem:[%s290 + $0xc2] sm:$0xff] %vm192, %v343
      %373 = vst.msk [vmem:[%s290 + $0xca] sm:$0x3f] %vm348, %v344
      %374 = vst.msk [vmem:[%s290 + $0xd2] sm:$0xff] %vm192, %v345
      %375 = vst.msk [vmem:[%s290 + $0xda] sm:$0x3f] %vm348, %v346
      %v376 = vld [vmem:[%s179] sm:$0xff]
      %v377 = vld [vmem:[%s179 + $0x8] sm:$0x7f]
      %v378 = vld [vmem:[%s179 + $0x10] sm:$0xff]
      %v379 = vld [vmem:[%s179 + $0x18] sm:$0x7f]
      %v380 = vld [vmem:[%s179 + $0x20] sm:$0xff]
      %v381 = vld [vmem:[%s179 + $0x28] sm:$0x7f]
      %v382 = vld [vmem:[%s179 + $0x30] sm:$0xff]
      %v383 = vld [vmem:[%s179 + $0x38] sm:$0x7f]
      %v384 = vld [vmem:[%s179 + $0x40] sm:$0xff]
      %v385 = vld [vmem:[%s179 + $0x48] sm:$0x7f]
      %v386 = vld [vmem:[%s179 + $0x50] sm:$0xff]
      %v387 = vld [vmem:[%s179 + $0x58] sm:$0x7f]
      %v388 = vld [vmem:[%s179 + $0x60] sm:$0xff]
      %v389 = vld [vmem:[%s179 + $0x68] sm:$0x7f]
      %v390 = vld [vmem:[%s179 + $0x70] sm:$0xff]
      %v391 = vld [vmem:[%s179 + $0x78] sm:$0x7f]
      %v392 = vld [vmem:[%s179 + $0x80] sm:$0xff]
      %v393 = vld [vmem:[%s179 + $0x88] sm:$0x7f]
      %v394 = vld [vmem:[%s179 + $0x90] sm:$0xff]
      %v395 = vld [vmem:[%s179 + $0x98] sm:$0x7f]
      %v396 = vld [vmem:[%s179 + $0xa0] sm:$0xff]
      %v397 = vld [vmem:[%s179 + $0xa8] sm:$0x7f]
      %v398 = vld [vmem:[%s179 + $0xb0] sm:$0xff]
      %v399 = vld [vmem:[%s179 + $0xb8] sm:$0x7f]
      %v400 = vld [vmem:[%s179 + $0xc0] sm:$0xff]
      %v401 = vld [vmem:[%s179 + $0xc8] sm:$0x7f]
      %v402 = vld [vmem:[%s179 + $0xd0] sm:$0xff]
      %v403 = vld [vmem:[%s179 + $0xd8] sm:$0x7f]
      %v404 = vlaneseq
      %v405 = vshrl.u32 %v404, 7
      %v406 = vsub.s32 1, %v405
      %v407 = vrot.slane %v225, %v406
      %v408 = vmul.f32 %v376, %v407
      %v409 = vmul.f32 %v377, %v407
      %v410 = vmul.f32 %v378, %v407
      %v411 = vmul.f32 %v379, %v407
      %v412 = vmul.f32 %v380, %v407
      %v413 = vmul.f32 %v381, %v407
      %v414 = vmul.f32 %v382, %v407
      %v415 = vmul.f32 %v383, %v407
      %v416 = vmul.f32 %v384, %v407
      %v417 = vmul.f32 %v385, %v407
      %v418 = vmul.f32 %v386, %v407
      %v419 = vmul.f32 %v387, %v407
      %v420 = vmul.f32 %v388, %v407
      %v421 = vmul.f32 %v389, %v407
      %v422 = vmul.f32 %v390, %v407
      %v423 = vmul.f32 %v391, %v407
      %v424 = vmul.f32 %v392, %v407
      %v425 = vmul.f32 %v393, %v407
      %v426 = vmul.f32 %v394, %v407
      %v427 = vmul.f32 %v395, %v407
      %v428 = vmul.f32 %v396, %v407
      %v429 = vmul.f32 %v397, %v407
      %v430 = vmul.f32 %v398, %v407
      %v431 = vmul.f32 %v399, %v407
      %v432 = vmul.f32 %v400, %v407
      %v433 = vmul.f32 %v401, %v407
      %v434 = vmul.f32 %v402, %v407
      %v435 = vmul.f32 %v403, %v407
      %v436 = vld [vmem:[%s290 + $0x1] sm:$0xff]
      %v437 = vld [vmem:[%s290 + $0x9] sm:$0x7f]
      %v438 = vld [vmem:[%s290 + $0x11] sm:$0xff]
      %v439 = vld [vmem:[%s290 + $0x19] sm:$0x7f]
      %v440 = vld [vmem:[%s290 + $0x21] sm:$0xff]
      %v441 = vld [vmem:[%s290 + $0x29] sm:$0x7f]
      %v442 = vld [vmem:[%s290 + $0x31] sm:$0xff]
      %v443 = vld [vmem:[%s290 + $0x39] sm:$0x7f]
      %v444 = vld [vmem:[%s290 + $0x41] sm:$0xff]
      %v445 = vld [vmem:[%s290 + $0x49] sm:$0x7f]
      %v446 = vld [vmem:[%s290 + $0x51] sm:$0xff]
      %v447 = vld [vmem:[%s290 + $0x59] sm:$0x7f]
      %v448 = vld [vmem:[%s290 + $0x61] sm:$0xff]
      %v449 = vld [vmem:[%s290 + $0x69] sm:$0x7f]
      %v450 = vld [vmem:[%s290 + $0x71] sm:$0xff]
      %v451 = vld [vmem:[%s290 + $0x79] sm:$0x7f]
      %v452 = vld [vmem:[%s290 + $0x81] sm:$0xff]
      %v453 = vld [vmem:[%s290 + $0x89] sm:$0x7f]
      %v454 = vld [vmem:[%s290 + $0x91] sm:$0xff]
      %v455 = vld [vmem:[%s290 + $0x99] sm:$0x7f]
      %v456 = vld [vmem:[%s290 + $0xa1] sm:$0xff]
      %v457 = vld [vmem:[%s290 + $0xa9] sm:$0x7f]
      %v458 = vld [vmem:[%s290 + $0xb1] sm:$0xff]
      %v459 = vld [vmem:[%s290 + $0xb9] sm:$0x7f]
      %v460 = vld [vmem:[%s290 + $0xc1] sm:$0xff]
      %v461 = vld [vmem:[%s290 + $0xc9] sm:$0x7f]
      %v462 = vld [vmem:[%s290 + $0xd1] sm:$0xff]
      %v463 = vld [vmem:[%s290 + $0xd9] sm:$0x7f]
      %v464 = vadd.f32 %v436, %v408
      %v465 = vadd.f32 %v437, %v409
      %v466 = vadd.f32 %v438, %v410
      %v467 = vadd.f32 %v439, %v411
      %v468 = vadd.f32 %v440, %v412
      %v469 = vadd.f32 %v441, %v413
      %v470 = vadd.f32 %v442, %v414
      %v471 = vadd.f32 %v443, %v415
      %v472 = vadd.f32 %v444, %v416
      %v473 = vadd.f32 %v445, %v417
      %v474 = vadd.f32 %v446, %v418
      %v475 = vadd.f32 %v447, %v419
      %v476 = vadd.f32 %v448, %v420
      %v477 = vadd.f32 %v449, %v421
      %v478 = vadd.f32 %v450, %v422
      %v479 = vadd.f32 %v451, %v423
      %v480 = vadd.f32 %v452, %v424
      %v481 = vadd.f32 %v453, %v425
      %v482 = vadd.f32 %v454, %v426
      %v483 = vadd.f32 %v455, %v427
      %v484 = vadd.f32 %v456, %v428
      %v485 = vadd.f32 %v457, %v429
      %v486 = vadd.f32 %v458, %v430
      %v487 = vadd.f32 %v459, %v431
      %v488 = vadd.f32 %v460, %v432
      %v489 = vadd.f32 %v461, %v433
      %v490 = vadd.f32 %v462, %v434
      %v491 = vadd.f32 %v463, %v435
      %492 = vst.msk [vmem:[%s290 + $0x1] sm:$0xff] %vm192, %v464
      %vm493 = vcmask 47104
      %494 = vst.msk [vmem:[%s290 + $0x9] sm:$0x7f] %vm493, %v465
      %495 = vst.msk [vmem:[%s290 + $0x11] sm:$0xff] %vm192, %v466
      %496 = vst.msk [vmem:[%s290 + $0x19] sm:$0x7f] %vm493, %v467
      %497 = vst.msk [vmem:[%s290 + $0x21] sm:$0xff] %vm192, %v468
      %498 = vst.msk [vmem:[%s290 + $0x29] sm:$0x7f] %vm493, %v469
      %499 = vst.msk [vmem:[%s290 + $0x31] sm:$0xff] %vm192, %v470
      %500 = vst.msk [vmem:[%s290 + $0x39] sm:$0x7f] %vm493, %v471
      %501 = vst.msk [vmem:[%s290 + $0x41] sm:$0xff] %vm192, %v472
      %502 = vst.msk [vmem:[%s290 + $0x49] sm:$0x7f] %vm493, %v473
      %503 = vst.msk [vmem:[%s290 + $0x51] sm:$0xff] %vm192, %v474
      %504 = vst.msk [vmem:[%s290 + $0x59] sm:$0x7f] %vm493, %v475
      %505 = vst.msk [vmem:[%s290 + $0x61] sm:$0xff] %vm192, %v476
      %506 = vst.msk [vmem:[%s290 + $0x69] sm:$0x7f] %vm493, %v477
      %507 = vst.msk [vmem:[%s290 + $0x71] sm:$0xff] %vm192, %v478
      %508 = vst.msk [vmem:[%s290 + $0x79] sm:$0x7f] %vm493, %v479
      %509 = vst.msk [vmem:[%s290 + $0x81] sm:$0xff] %vm192, %v480
      %510 = vst.msk [vmem:[%s290 + $0x89] sm:$0x7f] %vm493, %v481
      %511 = vst.msk [vmem:[%s290 + $0x91] sm:$0xff] %vm192, %v482
      %512 = vst.msk [vmem:[%s290 + $0x99] sm:$0x7f] %vm493, %v483
      %513 = vst.msk [vmem:[%s290 + $0xa1] sm:$0xff] %vm192, %v484
      %514 = vst.msk [vmem:[%s290 + $0xa9] sm:$0x7f] %vm493, %v485
      %515 = vst.msk [vmem:[%s290 + $0xb1] sm:$0xff] %vm192, %v486
      %516 = vst.msk [vmem:[%s290 + $0xb9] sm:$0x7f] %vm493, %v487
      %517 = vst.msk [vmem:[%s290 + $0xc1] sm:$0xff] %vm192, %v488
      %518 = vst.msk [vmem:[%s290 + $0xc9] sm:$0x7f] %vm493, %v489
      %519 = vst.msk [vmem:[%s290 + $0xd1] sm:$0xff] %vm192, %v490
      %520 = vst.msk [vmem:[%s290 + $0xd9] sm:$0x7f] %vm493, %v491
      %v521 = vld [vmem:[%s179] sm:$0xff]
      %v522 = vld [vmem:[%s179 + $0x8] sm:$0xff]
      %v523 = vld [vmem:[%s179 + $0x10] sm:$0xff]
      %v524 = vld [vmem:[%s179 + $0x18] sm:$0xff]
      %v525 = vld [vmem:[%s179 + $0x20] sm:$0xff]
      %v526 = vld [vmem:[%s179 + $0x28] sm:$0xff]
      %v527 = vld [vmem:[%s179 + $0x30] sm:$0xff]
      %v528 = vld [vmem:[%s179 + $0x38] sm:$0xff]
      %v529 = vld [vmem:[%s179 + $0x40] sm:$0xff]
      %v530 = vld [vmem:[%s179 + $0x48] sm:$0xff]
      %v531 = vld [vmem:[%s179 + $0x50] sm:$0xff]
      %v532 = vld [vmem:[%s179 + $0x58] sm:$0xff]
      %v533 = vld [vmem:[%s179 + $0x60] sm:$0xff]
      %v534 = vld [vmem:[%s179 + $0x68] sm:$0xff]
      %v535 = vld [vmem:[%s179 + $0x70] sm:$0xff]
      %v536 = vld [vmem:[%s179 + $0x78] sm:$0xff]
      %v537 = vld [vmem:[%s179 + $0x80] sm:$0xff]
      %v538 = vld [vmem:[%s179 + $0x88] sm:$0xff]
      %v539 = vld [vmem:[%s179 + $0x90] sm:$0xff]
      %v540 = vld [vmem:[%s179 + $0x98] sm:$0xff]
      %v541 = vld [vmem:[%s179 + $0xa0] sm:$0xff]
      %v542 = vld [vmem:[%s179 + $0xa8] sm:$0xff]
      %v543 = vld [vmem:[%s179 + $0xb0] sm:$0xff]
      %v544 = vld [vmem:[%s179 + $0xb8] sm:$0xff]
      %v545 = vld [vmem:[%s179 + $0xc0] sm:$0xff]
      %v546 = vld [vmem:[%s179 + $0xc8] sm:$0xff]
      %v547 = vld [vmem:[%s179 + $0xd0] sm:$0xff]
      %v548 = vld [vmem:[%s179 + $0xd8] sm:$0xff]
      %v549 = vlaneseq
      %v550 = vshrl.u32 %v549, 7
      %v551 = vsub.s32 2, %v550
      %v552 = vrot.slane %v225, %v551
      %v553 = vmul.f32 %v521, %v552
      %v554 = vmul.f32 %v522, %v552
      %v555 = vmul.f32 %v523, %v552
      %v556 = vmul.f32 %v524, %v552
      %v557 = vmul.f32 %v525, %v552
      %v558 = vmul.f32 %v526, %v552
      %v559 = vmul.f32 %v527, %v552
      %v560 = vmul.f32 %v528, %v552
      %v561 = vmul.f32 %v529, %v552
      %v562 = vmul.f32 %v530, %v552
      %v563 = vmul.f32 %v531, %v552
      %v564 = vmul.f32 %v532, %v552
      %v565 = vmul.f32 %v533, %v552
      %v566 = vmul.f32 %v534, %v552
      %v567 = vmul.f32 %v535, %v552
      %v568 = vmul.f32 %v536, %v552
      %v569 = vmul.f32 %v537, %v552
      %v570 = vmul.f32 %v538, %v552
      %v571 = vmul.f32 %v539, %v552
      %v572 = vmul.f32 %v540, %v552
      %v573 = vmul.f32 %v541, %v552
      %v574 = vmul.f32 %v542, %v552
      %v575 = vmul.f32 %v543, %v552
      %v576 = vmul.f32 %v544, %v552
      %v577 = vmul.f32 %v545, %v552
      %v578 = vmul.f32 %v546, %v552
      %v579 = vmul.f32 %v547, %v552
      %v580 = vmul.f32 %v548, %v552
      %v581 = vld [vmem:[%s290] sm:$0xff]
      %v582 = vld [vmem:[%s290 + $0x8] sm:$0xff]
      %v583 = vld [vmem:[%s290 + $0x10] sm:$0xff]
      %v584 = vld [vmem:[%s290 + $0x18] sm:$0xff]
      %v585 = vld [vmem:[%s290 + $0x20] sm:$0xff]
      %v586 = vld [vmem:[%s290 + $0x28] sm:$0xff]
      %v587 = vld [vmem:[%s290 + $0x30] sm:$0xff]
      %v588 = vld [vmem:[%s290 + $0x38] sm:$0xff]
      %v589 = vld [vmem:[%s290 + $0x40] sm:$0xff]
      %v590 = vld [vmem:[%s290 + $0x48] sm:$0xff]
      %v591 = vld [vmem:[%s290 + $0x50] sm:$0xff]
      %v592 = vld [vmem:[%s290 + $0x58] sm:$0xff]
      %v593 = vld [vmem:[%s290 + $0x60] sm:$0xff]
      %v594 = vld [vmem:[%s290 + $0x68] sm:$0xff]
      %v595 = vld [vmem:[%s290 + $0x70] sm:$0xff]
      %v596 = vld [vmem:[%s290 + $0x78] sm:$0xff]
      %v597 = vld [vmem:[%s290 + $0x80] sm:$0xff]
      %v598 = vld [vmem:[%s290 + $0x88] sm:$0xff]
      %v599 = vld [vmem:[%s290 + $0x90] sm:$0xff]
      %v600 = vld [vmem:[%s290 + $0x98] sm:$0xff]
      %v601 = vld [vmem:[%s290 + $0xa0] sm:$0xff]
      %v602 = vld [vmem:[%s290 + $0xa8] sm:$0xff]
      %v603 = vld [vmem:[%s290 + $0xb0] sm:$0xff]
      %v604 = vld [vmem:[%s290 + $0xb8] sm:$0xff]
      %v605 = vld [vmem:[%s290 + $0xc0] sm:$0xff]
      %v606 = vld [vmem:[%s290 + $0xc8] sm:$0xff]
      %v607 = vld [vmem:[%s290 + $0xd0] sm:$0xff]
      %v608 = vld [vmem:[%s290 + $0xd8] sm:$0xff]
      %v609 = vadd.f32 %v581, %v553
      %v610 = vadd.f32 %v582, %v554
      %v611 = vadd.f32 %v583, %v555
      %v612 = vadd.f32 %v584, %v556
      %v613 = vadd.f32 %v585, %v557
      %v614 = vadd.f32 %v586, %v558
      %v615 = vadd.f32 %v587, %v559
      %v616 = vadd.f32 %v588, %v560
      %v617 = vadd.f32 %v589, %v561
      %v618 = vadd.f32 %v590, %v562
      %v619 = vadd.f32 %v591, %v563
      %v620 = vadd.f32 %v592, %v564
      %v621 = vadd.f32 %v593, %v565
      %v622 = vadd.f32 %v594, %v566
      %v623 = vadd.f32 %v595, %v567
      %v624 = vadd.f32 %v596, %v568
      %v625 = vadd.f32 %v597, %v569
      %v626 = vadd.f32 %v598, %v570
      %v627 = vadd.f32 %v599, %v571
      %v628 = vadd.f32 %v600, %v572
      %v629 = vadd.f32 %v601, %v573
      %v630 = vadd.f32 %v602, %v574
      %v631 = vadd.f32 %v603, %v575
      %v632 = vadd.f32 %v604, %v576
      %v633 = vadd.f32 %v605, %v577
      %v634 = vadd.f32 %v606, %v578
      %v635 = vadd.f32 %v607, %v579
      %v636 = vadd.f32 %v608, %v580
      %637 = vst.msk [vmem:[%s290] sm:$0xff] %vm192, %v609
      %638 = vst.msk [vmem:[%s290 + $0x8] sm:$0xff] %vm192, %v610
      %639 = vst.msk [vmem:[%s290 + $0x10] sm:$0xff] %vm192, %v611
      %640 = vst.msk [vmem:[%s290 + $0x18] sm:$0xff] %vm192, %v612
      %641 = vst.msk [vmem:[%s290 + $0x20] sm:$0xff] %vm192, %v613
      %642 = vst.msk [vmem:[%s290 + $0x28] sm:$0xff] %vm192, %v614
      %643 = vst.msk [vmem:[%s290 + $0x30] sm:$0xff] %vm192, %v615
      %644 = vst.msk [vmem:[%s290 + $0x38] sm:$0xff] %vm192, %v616
      %645 = vst.msk [vmem:[%s290 + $0x40] sm:$0xff] %vm192, %v617
      %646 = vst.msk [vmem:[%s290 + $0x48] sm:$0xff] %vm192, %v618
      %647 = vst.msk [vmem:[%s290 + $0x50] sm:$0xff] %vm192, %v619
      %648 = vst.msk [vmem:[%s290 + $0x58] sm:$0xff] %vm192, %v620
      %649 = vst.msk [vmem:[%s290 + $0x60] sm:$0xff] %vm192, %v621
      %650 = vst.msk [vmem:[%s290 + $0x68] sm:$0xff] %vm192, %v622
      %651 = vst.msk [vmem:[%s290 + $0x70] sm:$0xff] %vm192, %v623
      %652 = vst.msk [vmem:[%s290 + $0x78] sm:$0xff] %vm192, %v624
      %653 = vst.msk [vmem:[%s290 + $0x80] sm:$0xff] %vm192, %v625
      %654 = vst.msk [vmem:[%s290 + $0x88] sm:$0xff] %vm192, %v626
      %655 = vst.msk [vmem:[%s290 + $0x90] sm:$0xff] %vm192, %v627
      %656 = vst.msk [vmem:[%s290 + $0x98] sm:$0xff] %vm192, %v628
      %657 = vst.msk [vmem:[%s290 + $0xa0] sm:$0xff] %vm192, %v629
      %658 = vst.msk [vmem:[%s290 + $0xa8] sm:$0xff] %vm192, %v630
      %659 = vst.msk [vmem:[%s290 + $0xb0] sm:$0xff] %vm192, %v631
      %660 = vst.msk [vmem:[%s290 + $0xb8] sm:$0xff] %vm192, %v632
      %661 = vst.msk [vmem:[%s290 + $0xc0] sm:$0xff] %vm192, %v633
      %662 = vst.msk [vmem:[%s290 + $0xc8] sm:$0xff] %vm192, %v634
      %663 = vst.msk [vmem:[%s290 + $0xd0] sm:$0xff] %vm192, %v635
      %664 = vst.msk [vmem:[%s290 + $0xd8] sm:$0xff] %vm192, %v636
      %v665 = vld [vmem:[%s179 + $0x1] sm:$0xff]
      %v666 = vld [vmem:[%s179 + $0x9] sm:$0x7f]
      %v667 = vld [vmem:[%s179 + $0x11] sm:$0xff]
      %v668 = vld [vmem:[%s179 + $0x19] sm:$0x7f]
      %v669 = vld [vmem:[%s179 + $0x21] sm:$0xff]
      %v670 = vld [vmem:[%s179 + $0x29] sm:$0x7f]
      %v671 = vld [vmem:[%s179 + $0x31] sm:$0xff]
      %v672 = vld [vmem:[%s179 + $0x39] sm:$0x7f]
      %v673 = vld [vmem:[%s179 + $0x41] sm:$0xff]
      %v674 = vld [vmem:[%s179 + $0x49] sm:$0x7f]
      %v675 = vld [vmem:[%s179 + $0x51] sm:$0xff]
      %v676 = vld [vmem:[%s179 + $0x59] sm:$0x7f]
      %v677 = vld [vmem:[%s179 + $0x61] sm:$0xff]
      %v678 = vld [vmem:[%s179 + $0x69] sm:$0x7f]
      %v679 = vld [vmem:[%s179 + $0x71] sm:$0xff]
      %v680 = vld [vmem:[%s179 + $0x79] sm:$0x7f]
      %v681 = vld [vmem:[%s179 + $0x81] sm:$0xff]
      %v682 = vld [vmem:[%s179 + $0x89] sm:$0x7f]
      %v683 = vld [vmem:[%s179 + $0x91] sm:$0xff]
      %v684 = vld [vmem:[%s179 + $0x99] sm:$0x7f]
      %v685 = vld [vmem:[%s179 + $0xa1] sm:$0xff]
      %v686 = vld [vmem:[%s179 + $0xa9] sm:$0x7f]
      %v687 = vld [vmem:[%s179 + $0xb1] sm:$0xff]
      %v688 = vld [vmem:[%s179 + $0xb9] sm:$0x7f]
      %v689 = vld [vmem:[%s179 + $0xc1] sm:$0xff]
      %v690 = vld [vmem:[%s179 + $0xc9] sm:$0x7f]
      %v691 = vld [vmem:[%s179 + $0xd1] sm:$0xff]
      %v692 = vld [vmem:[%s179 + $0xd9] sm:$0x7f]
      %v693 = vlaneseq
      %v694 = vshrl.u32 %v693, 7
      %v695 = vsub.s32 3, %v694
      %v696 = vrot.slane %v225, %v695
      %v697 = vmul.f32 %v665, %v696
      %v698 = vmul.f32 %v666, %v696
      %v699 = vmul.f32 %v667, %v696
      %v700 = vmul.f32 %v668, %v696
      %v701 = vmul.f32 %v669, %v696
      %v702 = vmul.f32 %v670, %v696
      %v703 = vmul.f32 %v671, %v696
      %v704 = vmul.f32 %v672, %v696
      %v705 = vmul.f32 %v673, %v696
      %v706 = vmul.f32 %v674, %v696
      %v707 = vmul.f32 %v675, %v696
      %v708 = vmul.f32 %v676, %v696
      %v709 = vmul.f32 %v677, %v696
      %v710 = vmul.f32 %v678, %v696
      %v711 = vmul.f32 %v679, %v696
      %v712 = vmul.f32 %v680, %v696
      %v713 = vmul.f32 %v681, %v696
      %v714 = vmul.f32 %v682, %v696
      %v715 = vmul.f32 %v683, %v696
      %v716 = vmul.f32 %v684, %v696
      %v717 = vmul.f32 %v685, %v696
      %v718 = vmul.f32 %v686, %v696
      %v719 = vmul.f32 %v687, %v696
      %v720 = vmul.f32 %v688, %v696
      %v721 = vmul.f32 %v689, %v696
      %v722 = vmul.f32 %v690, %v696
      %v723 = vmul.f32 %v691, %v696
      %v724 = vmul.f32 %v692, %v696
      %v725 = vld [vmem:[%s290] sm:$0xff]
      %v726 = vld [vmem:[%s290 + $0x8] sm:$0x7f]
      %v727 = vld [vmem:[%s290 + $0x10] sm:$0xff]
      %v728 = vld [vmem:[%s290 + $0x18] sm:$0x7f]
      %v729 = vld [vmem:[%s290 + $0x20] sm:$0xff]
      %v730 = vld [vmem:[%s290 + $0x28] sm:$0x7f]
      %v731 = vld [vmem:[%s290 + $0x30] sm:$0xff]
      %v732 = vld [vmem:[%s290 + $0x38] sm:$0x7f]
      %v733 = vld [vmem:[%s290 + $0x40] sm:$0xff]
      %v734 = vld [vmem:[%s290 + $0x48] sm:$0x7f]
      %v735 = vld [vmem:[%s290 + $0x50] sm:$0xff]
      %v736 = vld [vmem:[%s290 + $0x58] sm:$0x7f]
      %v737 = vld [vmem:[%s290 + $0x60] sm:$0xff]
      %v738 = vld [vmem:[%s290 + $0x68] sm:$0x7f]
      %v739 = vld [vmem:[%s290 + $0x70] sm:$0xff]
      %v740 = vld [vmem:[%s290 + $0x78] sm:$0x7f]
      %v741 = vld [vmem:[%s290 + $0x80] sm:$0xff]
      %v742 = vld [vmem:[%s290 + $0x88] sm:$0x7f]
      %v743 = vld [vmem:[%s290 + $0x90] sm:$0xff]
      %v744 = vld [vmem:[%s290 + $0x98] sm:$0x7f]
      %v745 = vld [vmem:[%s290 + $0xa0] sm:$0xff]
      %v746 = vld [vmem:[%s290 + $0xa8] sm:$0x7f]
      %v747 = vld [vmem:[%s290 + $0xb0] sm:$0xff]
      %v748 = vld [vmem:[%s290 + $0xb8] sm:$0x7f]
      %v749 = vld [vmem:[%s290 + $0xc0] sm:$0xff]
      %v750 = vld [vmem:[%s290 + $0xc8] sm:$0x7f]
      %v751 = vld [vmem:[%s290 + $0xd0] sm:$0xff]
      %v752 = vld [vmem:[%s290 + $0xd8] sm:$0x7f]
      %v753 = vadd.f32 %v725, %v697
      %v754 = vadd.f32 %v726, %v698
      %v755 = vadd.f32 %v727, %v699
      %v756 = vadd.f32 %v728, %v700
      %v757 = vadd.f32 %v729, %v701
      %v758 = vadd.f32 %v730, %v702
      %v759 = vadd.f32 %v731, %v703
      %v760 = vadd.f32 %v732, %v704
      %v761 = vadd.f32 %v733, %v705
      %v762 = vadd.f32 %v734, %v706
      %v763 = vadd.f32 %v735, %v707
      %v764 = vadd.f32 %v736, %v708
      %v765 = vadd.f32 %v737, %v709
      %v766 = vadd.f32 %v738, %v710
      %v767 = vadd.f32 %v739, %v711
      %v768 = vadd.f32 %v740, %v712
      %v769 = vadd.f32 %v741, %v713
      %v770 = vadd.f32 %v742, %v714
      %v771 = vadd.f32 %v743, %v715
      %v772 = vadd.f32 %v744, %v716
      %v773 = vadd.f32 %v745, %v717
      %v774 = vadd.f32 %v746, %v718
      %v775 = vadd.f32 %v747, %v719
      %v776 = vadd.f32 %v748, %v720
      %v777 = vadd.f32 %v749, %v721
      %v778 = vadd.f32 %v750, %v722
      %v779 = vadd.f32 %v751, %v723
      %v780 = vadd.f32 %v752, %v724
      %781 = vst.msk [vmem:[%s290] sm:$0xff] %vm192, %v753
      %782 = vst.msk [vmem:[%s290 + $0x8] sm:$0x7f] %vm493, %v754
      %783 = vst.msk [vmem:[%s290 + $0x10] sm:$0xff] %vm192, %v755
      %784 = vst.msk [vmem:[%s290 + $0x18] sm:$0x7f] %vm493, %v756
      %785 = vst.msk [vmem:[%s290 + $0x20] sm:$0xff] %vm192, %v757
      %786 = vst.msk [vmem:[%s290 + $0x28] sm:$0x7f] %vm493, %v758
      %787 = vst.msk [vmem:[%s290 + $0x30] sm:$0xff] %vm192, %v759
      %788 = vst.msk [vmem:[%s290 + $0x38] sm:$0x7f] %vm493, %v760
      %789 = vst.msk [vmem:[%s290 + $0x40] sm:$0xff] %vm192, %v761
      %790 = vst.msk [vmem:[%s290 + $0x48] sm:$0x7f] %vm493, %v762
      %791 = vst.msk [vmem:[%s290 + $0x50] sm:$0xff] %vm192, %v763
      %792 = vst.msk [vmem:[%s290 + $0x58] sm:$0x7f] %vm493, %v764
      %793 = vst.msk [vmem:[%s290 + $0x60] sm:$0xff] %vm192, %v765
      %794 = vst.msk [vmem:[%s290 + $0x68] sm:$0x7f] %vm493, %v766
      %795 = vst.msk [vmem:[%s290 + $0x70] sm:$0xff] %vm192, %v767
      %796 = vst.msk [vmem:[%s290 + $0x78] sm:$0x7f] %vm493, %v768
      %797 = vst.msk [vmem:[%s290 + $0x80] sm:$0xff] %vm192, %v769
      %798 = vst.msk [vmem:[%s290 + $0x88] sm:$0x7f] %vm493, %v770
      %799 = vst.msk [vmem:[%s290 + $0x90] sm:$0xff] %vm192, %v771
      %800 = vst.msk [vmem:[%s290 + $0x98] sm:$0x7f] %vm493, %v772
      %801 = vst.msk [vmem:[%s290 + $0xa0] sm:$0xff] %vm192, %v773
      %802 = vst.msk [vmem:[%s290 + $0xa8] sm:$0x7f] %vm493, %v774
      %803 = vst.msk [vmem:[%s290 + $0xb0] sm:$0xff] %vm192, %v775
      %804 = vst.msk [vmem:[%s290 + $0xb8] sm:$0x7f] %vm493, %v776
      %805 = vst.msk [vmem:[%s290 + $0xc0] sm:$0xff] %vm192, %v777
      %806 = vst.msk [vmem:[%s290 + $0xc8] sm:$0x7f] %vm493, %v778
      %807 = vst.msk [vmem:[%s290 + $0xd0] sm:$0xff] %vm192, %v779
      %808 = vst.msk [vmem:[%s290 + $0xd8] sm:$0x7f] %vm493, %v780
      %v809 = vld [vmem:[%s179 + $0x2] sm:$0xff]
      %v810 = vld [vmem:[%s179 + $0xa] sm:$0x3f]
      %v811 = vld [vmem:[%s179 + $0x12] sm:$0xff]
      %v812 = vld [vmem:[%s179 + $0x1a] sm:$0x3f]
      %v813 = vld [vmem:[%s179 + $0x22] sm:$0xff]
      %v814 = vld [vmem:[%s179 + $0x2a] sm:$0x3f]
      %v815 = vld [vmem:[%s179 + $0x32] sm:$0xff]
      %v816 = vld [vmem:[%s179 + $0x3a] sm:$0x3f]
      %v817 = vld [vmem:[%s179 + $0x42] sm:$0xff]
      %v818 = vld [vmem:[%s179 + $0x4a] sm:$0x3f]
      %v819 = vld [vmem:[%s179 + $0x52] sm:$0xff]
      %v820 = vld [vmem:[%s179 + $0x5a] sm:$0x3f]
      %v821 = vld [vmem:[%s179 + $0x62] sm:$0xff]
      %v822 = vld [vmem:[%s179 + $0x6a] sm:$0x3f]
      %v823 = vld [vmem:[%s179 + $0x72] sm:$0xff]
      %v824 = vld [vmem:[%s179 + $0x7a] sm:$0x3f]
      %v825 = vld [vmem:[%s179 + $0x82] sm:$0xff]
      %v826 = vld [vmem:[%s179 + $0x8a] sm:$0x3f]
      %v827 = vld [vmem:[%s179 + $0x92] sm:$0xff]
      %v828 = vld [vmem:[%s179 + $0x9a] sm:$0x3f]
      %v829 = vld [vmem:[%s179 + $0xa2] sm:$0xff]
      %v830 = vld [vmem:[%s179 + $0xaa] sm:$0x3f]
      %v831 = vld [vmem:[%s179 + $0xb2] sm:$0xff]
      %v832 = vld [vmem:[%s179 + $0xba] sm:$0x3f]
      %v833 = vld [vmem:[%s179 + $0xc2] sm:$0xff]
      %v834 = vld [vmem:[%s179 + $0xca] sm:$0x3f]
      %v835 = vld [vmem:[%s179 + $0xd2] sm:$0xff]
      %v836 = vld [vmem:[%s179 + $0xda] sm:$0x3f]
      %v837 = vlaneseq
      %v838 = vshrl.u32 %v837, 7
      %v839 = vsub.s32 4, %v838
      %v840 = vrot.slane %v225, %v839
      %v841 = vmul.f32 %v809, %v840
      %v842 = vmul.f32 %v810, %v840
      %v843 = vmul.f32 %v811, %v840
      %v844 = vmul.f32 %v812, %v840
      %v845 = vmul.f32 %v813, %v840
      %v846 = vmul.f32 %v814, %v840
      %v847 = vmul.f32 %v815, %v840
      %v848 = vmul.f32 %v816, %v840
      %v849 = vmul.f32 %v817, %v840
      %v850 = vmul.f32 %v818, %v840
      %v851 = vmul.f32 %v819, %v840
      %v852 = vmul.f32 %v820, %v840
      %v853 = vmul.f32 %v821, %v840
      %v854 = vmul.f32 %v822, %v840
      %v855 = vmul.f32 %v823, %v840
      %v856 = vmul.f32 %v824, %v840
      %v857 = vmul.f32 %v825, %v840
      %v858 = vmul.f32 %v826, %v840
      %v859 = vmul.f32 %v827, %v840
      %v860 = vmul.f32 %v828, %v840
      %v861 = vmul.f32 %v829, %v840
      %v862 = vmul.f32 %v830, %v840
      %v863 = vmul.f32 %v831, %v840
      %v864 = vmul.f32 %v832, %v840
      %v865 = vmul.f32 %v833, %v840
      %v866 = vmul.f32 %v834, %v840
      %v867 = vmul.f32 %v835, %v840
      %v868 = vmul.f32 %v836, %v840
      %v869 = vld [vmem:[%s290] sm:$0xff]
      %v870 = vld [vmem:[%s290 + $0x8] sm:$0x3f]
      %v871 = vld [vmem:[%s290 + $0x10] sm:$0xff]
      %v872 = vld [vmem:[%s290 + $0x18] sm:$0x3f]
      %v873 = vld [vmem:[%s290 + $0x20] sm:$0xff]
      %v874 = vld [vmem:[%s290 + $0x28] sm:$0x3f]
      %v875 = vld [vmem:[%s290 + $0x30] sm:$0xff]
      %v876 = vld [vmem:[%s290 + $0x38] sm:$0x3f]
      %v877 = vld [vmem:[%s290 + $0x40] sm:$0xff]
      %v878 = vld [vmem:[%s290 + $0x48] sm:$0x3f]
      %v879 = vld [vmem:[%s290 + $0x50] sm:$0xff]
      %v880 = vld [vmem:[%s290 + $0x58] sm:$0x3f]
      %v881 = vld [vmem:[%s290 + $0x60] sm:$0xff]
      %v882 = vld [vmem:[%s290 + $0x68] sm:$0x3f]
      %v883 = vld [vmem:[%s290 + $0x70] sm:$0xff]
      %v884 = vld [vmem:[%s290 + $0x78] sm:$0x3f]
      %v885 = vld [vmem:[%s290 + $0x80] sm:$0xff]
      %v886 = vld [vmem:[%s290 + $0x88] sm:$0x3f]
      %v887 = vld [vmem:[%s290 + $0x90] sm:$0xff]
      %v888 = vld [vmem:[%s290 + $0x98] sm:$0x3f]
      %v889 = vld [vmem:[%s290 + $0xa0] sm:$0xff]
      %v890 = vld [vmem:[%s290 + $0xa8] sm:$0x3f]
      %v891 = vld [vmem:[%s290 + $0xb0] sm:$0xff]
      %v892 = vld [vmem:[%s290 + $0xb8] sm:$0x3f]
      %v893 = vld [vmem:[%s290 + $0xc0] sm:$0xff]
      %v894 = vld [vmem:[%s290 + $0xc8] sm:$0x3f]
      %v895 = vld [vmem:[%s290 + $0xd0] sm:$0xff]
      %v896 = vld [vmem:[%s290 + $0xd8] sm:$0x3f]
      %v897 = vadd.f32 %v869, %v841
      %v898 = vadd.f32 %v870, %v842
      %v899 = vadd.f32 %v871, %v843
      %v900 = vadd.f32 %v872, %v844
      %v901 = vadd.f32 %v873, %v845
      %v902 = vadd.f32 %v874, %v846
      %v903 = vadd.f32 %v875, %v847
      %v904 = vadd.f32 %v876, %v848
      %v905 = vadd.f32 %v877, %v849
      %v906 = vadd.f32 %v878, %v850
      %v907 = vadd.f32 %v879, %v851
      %v908 = vadd.f32 %v880, %v852
      %v909 = vadd.f32 %v881, %v853
      %v910 = vadd.f32 %v882, %v854
      %v911 = vadd.f32 %v883, %v855
      %v912 = vadd.f32 %v884, %v856
      %v913 = vadd.f32 %v885, %v857
      %v914 = vadd.f32 %v886, %v858
      %v915 = vadd.f32 %v887, %v859
      %v916 = vadd.f32 %v888, %v860
      %v917 = vadd.f32 %v889, %v861
      %v918 = vadd.f32 %v890, %v862
      %v919 = vadd.f32 %v891, %v863
      %v920 = vadd.f32 %v892, %v864
      %v921 = vadd.f32 %v893, %v865
      %v922 = vadd.f32 %v894, %v866
      %v923 = vadd.f32 %v895, %v867
      %v924 = vadd.f32 %v896, %v868
      %925 = vst.msk [vmem:[%s290] sm:$0xff] %vm192, %v897
      %926 = vst.msk [vmem:[%s290 + $0x8] sm:$0x3f] %vm348, %v898
      %927 = vst.msk [vmem:[%s290 + $0x10] sm:$0xff] %vm192, %v899
      %928 = vst.msk [vmem:[%s290 + $0x18] sm:$0x3f] %vm348, %v900
      %929 = vst.msk [vmem:[%s290 + $0x20] sm:$0xff] %vm192, %v901
      %930 = vst.msk [vmem:[%s290 + $0x28] sm:$0x3f] %vm348, %v902
      %931 = vst.msk [vmem:[%s290 + $0x30] sm:$0xff] %vm192, %v903
      %932 = vst.msk [vmem:[%s290 + $0x38] sm:$0x3f] %vm348, %v904
      %933 = vst.msk [vmem:[%s290 + $0x40] sm:$0xff] %vm192, %v905
      %934 = vst.msk [vmem:[%s290 + $0x48] sm:$0x3f] %vm348, %v906
      %935 = vst.msk [vmem:[%s290 + $0x50] sm:$0xff] %vm192, %v907
      %936 = vst.msk [vmem:[%s290 + $0x58] sm:$0x3f] %vm348, %v908
      %937 = vst.msk [vmem:[%s290 + $0x60] sm:$0xff] %vm192, %v909
      %938 = vst.msk [vmem:[%s290 + $0x68] sm:$0x3f] %vm348, %v910
      %939 = vst.msk [vmem:[%s290 + $0x70] sm:$0xff] %vm192, %v911
      %940 = vst.msk [vmem:[%s290 + $0x78] sm:$0x3f] %vm348, %v912
      %941 = vst.msk [vmem:[%s290 + $0x80] sm:$0xff] %vm192, %v913
      %942 = vst.msk [vmem:[%s290 + $0x88] sm:$0x3f] %vm348, %v914
      %943 = vst.msk [vmem:[%s290 + $0x90] sm:$0xff] %vm192, %v915
      %944 = vst.msk [vmem:[%s290 + $0x98] sm:$0x3f] %vm348, %v916
      %945 = vst.msk [vmem:[%s290 + $0xa0] sm:$0xff] %vm192, %v917
      %946 = vst.msk [vmem:[%s290 + $0xa8] sm:$0x3f] %vm348, %v918
      %947 = vst.msk [vmem:[%s290 + $0xb0] sm:$0xff] %vm192, %v919
      %948 = vst.msk [vmem:[%s290 + $0xb8] sm:$0x3f] %vm348, %v920
      %949 = vst.msk [vmem:[%s290 + $0xc0] sm:$0xff] %vm192, %v921
      %950 = vst.msk [vmem:[%s290 + $0xc8] sm:$0x3f] %vm348, %v922
      %951 = vst.msk [vmem:[%s290 + $0xd0] sm:$0xff] %vm192, %v923
      %952 = vst.msk [vmem:[%s290 + $0xd8] sm:$0x3f] %vm348, %v924
      %v953 = vld [vmem:[%s179] sm:$0xff]
      %v954 = vld [vmem:[%s179 + $0x8] sm:$0x3f]
      %v955 = vld [vmem:[%s179 + $0x10] sm:$0xff]
      %v956 = vld [vmem:[%s179 + $0x18] sm:$0x3f]
      %v957 = vld [vmem:[%s179 + $0x20] sm:$0xff]
      %v958 = vld [vmem:[%s179 + $0x28] sm:$0x3f]
      %v959 = vld [vmem:[%s179 + $0x30] sm:$0xff]
      %v960 = vld [vmem:[%s179 + $0x38] sm:$0x3f]
      %v961 = vld [vmem:[%s179 + $0x40] sm:$0xff]
      %v962 = vld [vmem:[%s179 + $0x48] sm:$0x3f]
      %v963 = vld [vmem:[%s179 + $0x50] sm:$0xff]
      %v964 = vld [vmem:[%s179 + $0x58] sm:$0x3f]
      %v965 = vld [vmem:[%s179 + $0x60] sm:$0xff]
      %v966 = vld [vmem:[%s179 + $0x68] sm:$0x3f]
      %v967 = vld [vmem:[%s179 + $0x70] sm:$0xff]
      %v968 = vld [vmem:[%s179 + $0x78] sm:$0x3f]
      %v969 = vld [vmem:[%s179 + $0x80] sm:$0xff]
      %v970 = vld [vmem:[%s179 + $0x88] sm:$0x3f]
      %v971 = vld [vmem:[%s179 + $0x90] sm:$0xff]
      %v972 = vld [vmem:[%s179 + $0x98] sm:$0x3f]
      %v973 = vld [vmem:[%s179 + $0xa0] sm:$0xff]
      %v974 = vld [vmem:[%s179 + $0xa8] sm:$0x3f]
      %v975 = vld [vmem:[%s179 + $0xb0] sm:$0xff]
      %v976 = vld [vmem:[%s179 + $0xb8] sm:$0x3f]
      %v977 = vld [vmem:[%s179 + $0xc0] sm:$0xff]
      %v978 = vld [vmem:[%s179 + $0xc8] sm:$0x3f]
      %v979 = vld [vmem:[%s179 + $0xd0] sm:$0xff]
      %v980 = vld [vmem:[%s179 + $0xd8] sm:$0x3f]
      %v981 = vld [vmem:[%s179 + $0xe0] sm:$0xff]
      %v982 = vld [vmem:[%s179 + $0xe8] sm:$0x3f]
      %v983 = vlaneseq
      %v984 = vshrl.u32 %v983, 7
      %v985 = vsub.s32 0, %v984
      %v986 = vrot.slane %v226, %v985
      %v987 = vmul.f32 %v953, %v986
      %v988 = vmul.f32 %v954, %v986
      %v989 = vmul.f32 %v955, %v986
      %v990 = vmul.f32 %v956, %v986
      %v991 = vmul.f32 %v957, %v986
      %v992 = vmul.f32 %v958, %v986
      %v993 = vmul.f32 %v959, %v986
      %v994 = vmul.f32 %v960, %v986
      %v995 = vmul.f32 %v961, %v986
      %v996 = vmul.f32 %v962, %v986
      %v997 = vmul.f32 %v963, %v986
      %v998 = vmul.f32 %v964, %v986
      %v999 = vmul.f32 %v965, %v986
      %v1000 = vmul.f32 %v966, %v986
      %v1001 = vmul.f32 %v967, %v986
      %v1002 = vmul.f32 %v968, %v986
      %v1003 = vmul.f32 %v969, %v986
      %v1004 = vmul.f32 %v970, %v986
      %v1005 = vmul.f32 %v971, %v986
      %v1006 = vmul.f32 %v972, %v986
      %v1007 = vmul.f32 %v973, %v986
      %v1008 = vmul.f32 %v974, %v986
      %v1009 = vmul.f32 %v975, %v986
      %v1010 = vmul.f32 %v976, %v986
      %v1011 = vmul.f32 %v977, %v986
      %v1012 = vmul.f32 %v978, %v986
      %v1013 = vmul.f32 %v979, %v986
      %v1014 = vmul.f32 %v980, %v986
      %v1015 = vmul.f32 %v981, %v986
      %v1016 = vmul.f32 %v982, %v986
      %s1017 = scalar_lea.vmem [#allocation2], 16
      %v1018 = vld [vmem:[%s1017 + $0x2] sm:$0xff]
      %v1019 = vld [vmem:[%s1017 + $0xa] sm:$0x3f]
      %v1020 = vld [vmem:[%s1017 + $0x12] sm:$0xff]
      %v1021 = vld [vmem:[%s1017 + $0x1a] sm:$0x3f]
      %v1022 = vld [vmem:[%s1017 + $0x22] sm:$0xff]
      %v1023 = vld [vmem:[%s1017 + $0x2a] sm:$0x3f]
      %v1024 = vld [vmem:[%s1017 + $0x32] sm:$0xff]
      %v1025 = vld [vmem:[%s1017 + $0x3a] sm:$0x3f]
      %v1026 = vld [vmem:[%s1017 + $0x42] sm:$0xff]
      %v1027 = vld [vmem:[%s1017 + $0x4a] sm:$0x3f]
      %v1028 = vld [vmem:[%s1017 + $0x52] sm:$0xff]
      %v1029 = vld [vmem:[%s1017 + $0x5a] sm:$0x3f]
      %v1030 = vld [vmem:[%s1017 + $0x62] sm:$0xff]
      %v1031 = vld [vmem:[%s1017 + $0x6a] sm:$0x3f]
      %v1032 = vld [vmem:[%s1017 + $0x72] sm:$0xff]
      %v1033 = vld [vmem:[%s1017 + $0x7a] sm:$0x3f]
      %v1034 = vld [vmem:[%s1017 + $0x82] sm:$0xff]
      %v1035 = vld [vmem:[%s1017 + $0x8a] sm:$0x3f]
      %v1036 = vld [vmem:[%s1017 + $0x92] sm:$0xff]
      %v1037 = vld [vmem:[%s1017 + $0x9a] sm:$0x3f]
      %v1038 = vld [vmem:[%s1017 + $0xa2] sm:$0xff]
      %v1039 = vld [vmem:[%s1017 + $0xaa] sm:$0x3f]
      %v1040 = vld [vmem:[%s1017 + $0xb2] sm:$0xff]
      %v1041 = vld [vmem:[%s1017 + $0xba] sm:$0x3f]
      %v1042 = vld [vmem:[%s1017 + $0xc2] sm:$0xff]
      %v1043 = vld [vmem:[%s1017 + $0xca] sm:$0x3f]
      %v1044 = vld [vmem:[%s1017 + $0xd2] sm:$0xff]
      %v1045 = vld [vmem:[%s1017 + $0xda] sm:$0x3f]
      %v1046 = vld [vmem:[%s1017 + $0xe2] sm:$0xff]
      %v1047 = vld [vmem:[%s1017 + $0xea] sm:$0x3f]
      %v1048 = vadd.f32 %v1018, %v987
      %v1049 = vadd.f32 %v1019, %v988
      %v1050 = vadd.f32 %v1020, %v989
      %v1051 = vadd.f32 %v1021, %v990
      %v1052 = vadd.f32 %v1022, %v991
      %v1053 = vadd.f32 %v1023, %v992
      %v1054 = vadd.f32 %v1024, %v993
      %v1055 = vadd.f32 %v1025, %v994
      %v1056 = vadd.f32 %v1026, %v995
      %v1057 = vadd.f32 %v1027, %v996
      %v1058 = vadd.f32 %v1028, %v997
      %v1059 = vadd.f32 %v1029, %v998
      %v1060 = vadd.f32 %v1030, %v999
      %v1061 = vadd.f32 %v1031, %v1000
      %v1062 = vadd.f32 %v1032, %v1001
      %v1063 = vadd.f32 %v1033, %v1002
      %v1064 = vadd.f32 %v1034, %v1003
      %v1065 = vadd.f32 %v1035, %v1004
      %v1066 = vadd.f32 %v1036, %v1005
      %v1067 = vadd.f32 %v1037, %v1006
      %v1068 = vadd.f32 %v1038, %v1007
      %v1069 = vadd.f32 %v1039, %v1008
      %v1070 = vadd.f32 %v1040, %v1009
      %v1071 = vadd.f32 %v1041, %v1010
      %v1072 = vadd.f32 %v1042, %v1011
      %v1073 = vadd.f32 %v1043, %v1012
      %v1074 = vadd.f32 %v1044, %v1013
      %v1075 = vadd.f32 %v1045, %v1014
      %v1076 = vadd.f32 %v1046, %v1015
      %v1077 = vadd.f32 %v1047, %v1016
      %1078 = vst.msk [vmem:[%s1017 + $0x2] sm:$0xff] %vm192, %v1048
      %1079 = vst.msk [vmem:[%s1017 + $0xa] sm:$0x3f] %vm348, %v1049
      %1080 = vst.msk [vmem:[%s1017 + $0x12] sm:$0xff] %vm192, %v1050
      %1081 = vst.msk [vmem:[%s1017 + $0x1a] sm:$0x3f] %vm348, %v1051
      %1082 = vst.msk [vmem:[%s1017 + $0x22] sm:$0xff] %vm192, %v1052
      %1083 = vst.msk [vmem:[%s1017 + $0x2a] sm:$0x3f] %vm348, %v1053
      %1084 = vst.msk [vmem:[%s1017 + $0x32] sm:$0xff] %vm192, %v1054
      %1085 = vst.msk [vmem:[%s1017 + $0x3a] sm:$0x3f] %vm348, %v1055
      %1086 = vst.msk [vmem:[%s1017 + $0x42] sm:$0xff] %vm192, %v1056
      %1087 = vst.msk [vmem:[%s1017 + $0x4a] sm:$0x3f] %vm348, %v1057
      %1088 = vst.msk [vmem:[%s1017 + $0x52] sm:$0xff] %vm192, %v1058
      %1089 = vst.msk [vmem:[%s1017 + $0x5a] sm:$0x3f] %vm348, %v1059
      %1090 = vst.msk [vmem:[%s1017 + $0x62] sm:$0xff] %vm192, %v1060
      %1091 = vst.msk [vmem:[%s1017 + $0x6a] sm:$0x3f] %vm348, %v1061
      %1092 = vst.msk [vmem:[%s1017 + $0x72] sm:$0xff] %vm192, %v1062
      %1093 = vst.msk [vmem:[%s1017 + $0x7a] sm:$0x3f] %vm348, %v1063
      %1094 = vst.msk [vmem:[%s1017 + $0x82] sm:$0xff] %vm192, %v1064
      %1095 = vst.msk [vmem:[%s1017 + $0x8a] sm:$0x3f] %vm348, %v1065
      %1096 = vst.msk [vmem:[%s1017 + $0x92] sm:$0xff] %vm192, %v1066
      %1097 = vst.msk [vmem:[%s1017 + $0x9a] sm:$0x3f] %vm348, %v1067
      %1098 = vst.msk [vmem:[%s1017 + $0xa2] sm:$0xff] %vm192, %v1068
      %1099 = vst.msk [vmem:[%s1017 + $0xaa] sm:$0x3f] %vm348, %v1069
      %1100 = vst.msk [vmem:[%s1017 + $0xb2] sm:$0xff] %vm192, %v1070
      %1101 = vst.msk [vmem:[%s1017 + $0xba] sm:$0x3f] %vm348, %v1071
      %1102 = vst.msk [vmem:[%s1017 + $0xc2] sm:$0xff] %vm192, %v1072
      %1103 = vst.msk [vmem:[%s1017 + $0xca] sm:$0x3f] %vm348, %v1073
      %1104 = vst.msk [vmem:[%s1017 + $0xd2] sm:$0xff] %vm192, %v1074
      %1105 = vst.msk [vmem:[%s1017 + $0xda] sm:$0x3f] %vm348, %v1075
      %1106 = vst.msk [vmem:[%s1017 + $0xe2] sm:$0xff] %vm192, %v1076
      %1107 = vst.msk [vmem:[%s1017 + $0xea] sm:$0x3f] %vm348, %v1077
      %v1108 = vld [vmem:[%s179] sm:$0xff]
      %v1109 = vld [vmem:[%s179 + $0x8] sm:$0x7f]
      %v1110 = vld [vmem:[%s179 + $0x10] sm:$0xff]
      %v1111 = vld [vmem:[%s179 + $0x18] sm:$0x7f]
      %v1112 = vld [vmem:[%s179 + $0x20] sm:$0xff]
      %v1113 = vld [vmem:[%s179 + $0x28] sm:$0x7f]
      %v1114 = vld [vmem:[%s179 + $0x30] sm:$0xff]
      %v1115 = vld [vmem:[%s179 + $0x38] sm:$0x7f]
      %v1116 = vld [vmem:[%s179 + $0x40] sm:$0xff]
      %v1117 = vld [vmem:[%s179 + $0x48] sm:$0x7f]
      %v1118 = vld [vmem:[%s179 + $0x50] sm:$0xff]
      %v1119 = vld [vmem:[%s179 + $0x58] sm:$0x7f]
      %v1120 = vld [vmem:[%s179 + $0x60] sm:$0xff]
      %v1121 = vld [vmem:[%s179 + $0x68] sm:$0x7f]
      %v1122 = vld [vmem:[%s179 + $0x70] sm:$0xff]
      %v1123 = vld [vmem:[%s179 + $0x78] sm:$0x7f]
      %v1124 = vld [vmem:[%s179 + $0x80] sm:$0xff]
      %v1125 = vld [vmem:[%s179 + $0x88] sm:$0x7f]
      %v1126 = vld [vmem:[%s179 + $0x90] sm:$0xff]
      %v1127 = vld [vmem:[%s179 + $0x98] sm:$0x7f]
      %v1128 = vld [vmem:[%s179 + $0xa0] sm:$0xff]
      %v1129 = vld [vmem:[%s179 + $0xa8] sm:$0x7f]
      %v1130 = vld [vmem:[%s179 + $0xb0] sm:$0xff]
      %v1131 = vld [vmem:[%s179 + $0xb8] sm:$0x7f]
      %v1132 = vld [vmem:[%s179 + $0xc0] sm:$0xff]
      %v1133 = vld [vmem:[%s179 + $0xc8] sm:$0x7f]
      %v1134 = vld [vmem:[%s179 + $0xd0] sm:$0xff]
      %v1135 = vld [vmem:[%s179 + $0xd8] sm:$0x7f]
      %v1136 = vld [vmem:[%s179 + $0xe0] sm:$0xff]
      %v1137 = vld [vmem:[%s179 + $0xe8] sm:$0x7f]
      %v1138 = vlaneseq
      %v1139 = vshrl.u32 %v1138, 7
      %v1140 = vsub.s32 1, %v1139
      %v1141 = vrot.slane %v226, %v1140
      %v1142 = vmul.f32 %v1108, %v1141
      %v1143 = vmul.f32 %v1109, %v1141
      %v1144 = vmul.f32 %v1110, %v1141
      %v1145 = vmul.f32 %v1111, %v1141
      %v1146 = vmul.f32 %v1112, %v1141
      %v1147 = vmul.f32 %v1113, %v1141
      %v1148 = vmul.f32 %v1114, %v1141
      %v1149 = vmul.f32 %v1115, %v1141
      %v1150 = vmul.f32 %v1116, %v1141
      %v1151 = vmul.f32 %v1117, %v1141
      %v1152 = vmul.f32 %v1118, %v1141
      %v1153 = vmul.f32 %v1119, %v1141
      %v1154 = vmul.f32 %v1120, %v1141
      %v1155 = vmul.f32 %v1121, %v1141
      %v1156 = vmul.f32 %v1122, %v1141
      %v1157 = vmul.f32 %v1123, %v1141
      %v1158 = vmul.f32 %v1124, %v1141
      %v1159 = vmul.f32 %v1125, %v1141
      %v1160 = vmul.f32 %v1126, %v1141
      %v1161 = vmul.f32 %v1127, %v1141
      %v1162 = vmul.f32 %v1128, %v1141
      %v1163 = vmul.f32 %v1129, %v1141
      %v1164 = vmul.f32 %v1130, %v1141
      %v1165 = vmul.f32 %v1131, %v1141
      %v1166 = vmul.f32 %v1132, %v1141
      %v1167 = vmul.f32 %v1133, %v1141
      %v1168 = vmul.f32 %v1134, %v1141
      %v1169 = vmul.f32 %v1135, %v1141
      %v1170 = vmul.f32 %v1136, %v1141
      %v1171 = vmul.f32 %v1137, %v1141
      %v1172 = vld [vmem:[%s1017 + $0x1] sm:$0xff]
      %v1173 = vld [vmem:[%s1017 + $0x9] sm:$0x7f]
      %v1174 = vld [vmem:[%s1017 + $0x11] sm:$0xff]
      %v1175 = vld [vmem:[%s1017 + $0x19] sm:$0x7f]
      %v1176 = vld [vmem:[%s1017 + $0x21] sm:$0xff]
      %v1177 = vld [vmem:[%s1017 + $0x29] sm:$0x7f]
      %v1178 = vld [vmem:[%s1017 + $0x31] sm:$0xff]
      %v1179 = vld [vmem:[%s1017 + $0x39] sm:$0x7f]
      %v1180 = vld [vmem:[%s1017 + $0x41] sm:$0xff]
      %v1181 = vld [vmem:[%s1017 + $0x49] sm:$0x7f]
      %v1182 = vld [vmem:[%s1017 + $0x51] sm:$0xff]
      %v1183 = vld [vmem:[%s1017 + $0x59] sm:$0x7f]
      %v1184 = vld [vmem:[%s1017 + $0x61] sm:$0xff]
      %v1185 = vld [vmem:[%s1017 + $0x69] sm:$0x7f]
      %v1186 = vld [vmem:[%s1017 + $0x71] sm:$0xff]
      %v1187 = vld [vmem:[%s1017 + $0x79] sm:$0x7f]
      %v1188 = vld [vmem:[%s1017 + $0x81] sm:$0xff]
      %v1189 = vld [vmem:[%s1017 + $0x89] sm:$0x7f]
      %v1190 = vld [vmem:[%s1017 + $0x91] sm:$0xff]
      %v1191 = vld [vmem:[%s1017 + $0x99] sm:$0x7f]
      %v1192 = vld [vmem:[%s1017 + $0xa1] sm:$0xff]
      %v1193 = vld [vmem:[%s1017 + $0xa9] sm:$0x7f]
      %v1194 = vld [vmem:[%s1017 + $0xb1] sm:$0xff]
      %v1195 = vld [vmem:[%s1017 + $0xb9] sm:$0x7f]
      %v1196 = vld [vmem:[%s1017 + $0xc1] sm:$0xff]
      %v1197 = vld [vmem:[%s1017 + $0xc9] sm:$0x7f]
      %v1198 = vld [vmem:[%s1017 + $0xd1] sm:$0xff]
      %v1199 = vld [vmem:[%s1017 + $0xd9] sm:$0x7f]
      %v1200 = vld [vmem:[%s1017 + $0xe1] sm:$0xff]
      %v1201 = vld [vmem:[%s1017 + $0xe9] sm:$0x7f]
      %v1202 = vadd.f32 %v1172, %v1142
      %v1203 = vadd.f32 %v1173, %v1143
      %v1204 = vadd.f32 %v1174, %v1144
      %v1205 = vadd.f32 %v1175, %v1145
      %v1206 = vadd.f32 %v1176, %v1146
      %v1207 = vadd.f32 %v1177, %v1147
      %v1208 = vadd.f32 %v1178, %v1148
      %v1209 = vadd.f32 %v1179, %v1149
      %v1210 = vadd.f32 %v1180, %v1150
      %v1211 = vadd.f32 %v1181, %v1151
      %v1212 = vadd.f32 %v1182, %v1152
      %v1213 = vadd.f32 %v1183, %v1153
      %v1214 = vadd.f32 %v1184, %v1154
      %v1215 = vadd.f32 %v1185, %v1155
      %v1216 = vadd.f32 %v1186, %v1156
      %v1217 = vadd.f32 %v1187, %v1157
      %v1218 = vadd.f32 %v1188, %v1158
      %v1219 = vadd.f32 %v1189, %v1159
      %v1220 = vadd.f32 %v1190, %v1160
      %v1221 = vadd.f32 %v1191, %v1161
      %v1222 = vadd.f32 %v1192, %v1162
      %v1223 = vadd.f32 %v1193, %v1163
      %v1224 = vadd.f32 %v1194, %v1164
      %v1225 = vadd.f32 %v1195, %v1165
      %v1226 = vadd.f32 %v1196, %v1166
      %v1227 = vadd.f32 %v1197, %v1167
      %v1228 = vadd.f32 %v1198, %v1168
      %v1229 = vadd.f32 %v1199, %v1169
      %v1230 = vadd.f32 %v1200, %v1170
      %v1231 = vadd.f32 %v1201, %v1171
      %1232 = vst.msk [vmem:[%s1017 + $0x1] sm:$0xff] %vm192, %v1202
      %1233 = vst.msk [vmem:[%s1017 + $0x9] sm:$0x7f] %vm493, %v1203
      %1234 = vst.msk [vmem:[%s1017 + $0x11] sm:$0xff] %vm192, %v1204
      %1235 = vst.msk [vmem:[%s1017 + $0x19] sm:$0x7f] %vm493, %v1205
      %1236 = vst.msk [vmem:[%s1017 + $0x21] sm:$0xff] %vm192, %v1206
      %1237 = vst.msk [vmem:[%s1017 + $0x29] sm:$0x7f] %vm493, %v1207
      %1238 = vst.msk [vmem:[%s1017 + $0x31] sm:$0xff] %vm192, %v1208
      %1239 = vst.msk [vmem:[%s1017 + $0x39] sm:$0x7f] %vm493, %v1209
      %1240 = vst.msk [vmem:[%s1017 + $0x41] sm:$0xff] %vm192, %v1210
      %1241 = vst.msk [vmem:[%s1017 + $0x49] sm:$0x7f] %vm493, %v1211
      %1242 = vst.msk [vmem:[%s1017 + $0x51] sm:$0xff] %vm192, %v1212
      %1243 = vst.msk [vmem:[%s1017 + $0x59] sm:$0x7f] %vm493, %v1213
      %1244 = vst.msk [vmem:[%s1017 + $0x61] sm:$0xff] %vm192, %v1214
      %1245 = vst.msk [vmem:[%s1017 + $0x69] sm:$0x7f] %vm493, %v1215
      %1246 = vst.msk [vmem:[%s1017 + $0x71] sm:$0xff] %vm192, %v1216
      %1247 = vst.msk [vmem:[%s1017 + $0x79] sm:$0x7f] %vm493, %v1217
      %1248 = vst.msk [vmem:[%s1017 + $0x81] sm:$0xff] %vm192, %v1218
      %1249 = vst.msk [vmem:[%s1017 + $0x89] sm:$0x7f] %vm493, %v1219
      %1250 = vst.msk [vmem:[%s1017 + $0x91] sm:$0xff] %vm192, %v1220
      %1251 = vst.msk [vmem:[%s1017 + $0x99] sm:$0x7f] %vm493, %v1221
      %1252 = vst.msk [vmem:[%s1017 + $0xa1] sm:$0xff] %vm192, %v1222
      %1253 = vst.msk [vmem:[%s1017 + $0xa9] sm:$0x7f] %vm493, %v1223
      %1254 = vst.msk [vmem:[%s1017 + $0xb1] sm:$0xff] %vm192, %v1224
      %1255 = vst.msk [vmem:[%s1017 + $0xb9] sm:$0x7f] %vm493, %v1225
      %1256 = vst.msk [vmem:[%s1017 + $0xc1] sm:$0xff] %vm192, %v1226
      %1257 = vst.msk [vmem:[%s1017 + $0xc9] sm:$0x7f] %vm493, %v1227
      %1258 = vst.msk [vmem:[%s1017 + $0xd1] sm:$0xff] %vm192, %v1228
      %1259 = vst.msk [vmem:[%s1017 + $0xd9] sm:$0x7f] %vm493, %v1229
      %1260 = vst.msk [vmem:[%s1017 + $0xe1] sm:$0xff] %vm192, %v1230
      %1261 = vst.msk [vmem:[%s1017 + $0xe9] sm:$0x7f] %vm493, %v1231
      %v1262 = vld [vmem:[%s179] sm:$0xff]
      %v1263 = vld [vmem:[%s179 + $0x8] sm:$0xff]
      %v1264 = vld [vmem:[%s179 + $0x10] sm:$0xff]
      %v1265 = vld [vmem:[%s179 + $0x18] sm:$0xff]
      %v1266 = vld [vmem:[%s179 + $0x20] sm:$0xff]
      %v1267 = vld [vmem:[%s179 + $0x28] sm:$0xff]
      %v1268 = vld [vmem:[%s179 + $0x30] sm:$0xff]
      %v1269 = vld [vmem:[%s179 + $0x38] sm:$0xff]
      %v1270 = vld [vmem:[%s179 + $0x40] sm:$0xff]
      %v1271 = vld [vmem:[%s179 + $0x48] sm:$0xff]
      %v1272 = vld [vmem:[%s179 + $0x50] sm:$0xff]
      %v1273 = vld [vmem:[%s179 + $0x58] sm:$0xff]
      %v1274 = vld [vmem:[%s179 + $0x60] sm:$0xff]
      %v1275 = vld [vmem:[%s179 + $0x68] sm:$0xff]
      %v1276 = vld [vmem:[%s179 + $0x70] sm:$0xff]
      %v1277 = vld [vmem:[%s179 + $0x78] sm:$0xff]
      %v1278 = vld [vmem:[%s179 + $0x80] sm:$0xff]
      %v1279 = vld [vmem:[%s179 + $0x88] sm:$0xff]
      %v1280 = vld [vmem:[%s179 + $0x90] sm:$0xff]
      %v1281 = vld [vmem:[%s179 + $0x98] sm:$0xff]
      %v1282 = vld [vmem:[%s179 + $0xa0] sm:$0xff]
      %v1283 = vld [vmem:[%s179 + $0xa8] sm:$0xff]
      %v1284 = vld [vmem:[%s179 + $0xb0] sm:$0xff]
      %v1285 = vld [vmem:[%s179 + $0xb8] sm:$0xff]
      %v1286 = vld [vmem:[%s179 + $0xc0] sm:$0xff]
      %v1287 = vld [vmem:[%s179 + $0xc8] sm:$0xff]
      %v1288 = vld [vmem:[%s179 + $0xd0] sm:$0xff]
      %v1289 = vld [vmem:[%s179 + $0xd8] sm:$0xff]
      %v1290 = vld [vmem:[%s179 + $0xe0] sm:$0xff]
      %v1291 = vld [vmem:[%s179 + $0xe8] sm:$0xff]
      %v1292 = vlaneseq
      %v1293 = vshrl.u32 %v1292, 7
      %v1294 = vsub.s32 2, %v1293
      %v1295 = vrot.slane %v226, %v1294
      %v1296 = vmul.f32 %v1262, %v1295
      %v1297 = vmul.f32 %v1263, %v1295
      %v1298 = vmul.f32 %v1264, %v1295
      %v1299 = vmul.f32 %v1265, %v1295
      %v1300 = vmul.f32 %v1266, %v1295
      %v1301 = vmul.f32 %v1267, %v1295
      %v1302 = vmul.f32 %v1268, %v1295
      %v1303 = vmul.f32 %v1269, %v1295
      %v1304 = vmul.f32 %v1270, %v1295
      %v1305 = vmul.f32 %v1271, %v1295
      %v1306 = vmul.f32 %v1272, %v1295
      %v1307 = vmul.f32 %v1273, %v1295
      %v1308 = vmul.f32 %v1274, %v1295
      %v1309 = vmul.f32 %v1275, %v1295
      %v1310 = vmul.f32 %v1276, %v1295
      %v1311 = vmul.f32 %v1277, %v1295
      %v1312 = vmul.f32 %v1278, %v1295
      %v1313 = vmul.f32 %v1279, %v1295
      %v1314 = vmul.f32 %v1280, %v1295
      %v1315 = vmul.f32 %v1281, %v1295
      %v1316 = vmul.f32 %v1282, %v1295
      %v1317 = vmul.f32 %v1283, %v1295
      %v1318 = vmul.f32 %v1284, %v1295
      %v1319 = vmul.f32 %v1285, %v1295
      %v1320 = vmul.f32 %v1286, %v1295
      %v1321 = vmul.f32 %v1287, %v1295
      %v1322 = vmul.f32 %v1288, %v1295
      %v1323 = vmul.f32 %v1289, %v1295
      %v1324 = vmul.f32 %v1290, %v1295
      %v1325 = vmul.f32 %v1291, %v1295
      %v1326 = vld [vmem:[%s1017] sm:$0xff]
      %v1327 = vld [vmem:[%s1017 + $0x8] sm:$0xff]
      %v1328 = vld [vmem:[%s1017 + $0x10] sm:$0xff]
      %v1329 = vld [vmem:[%s1017 + $0x18] sm:$0xff]
      %v1330 = vld [vmem:[%s1017 + $0x20] sm:$0xff]
      %v1331 = vld [vmem:[%s1017 + $0x28] sm:$0xff]
      %v1332 = vld [vmem:[%s1017 + $0x30] sm:$0xff]
      %v1333 = vld [vmem:[%s1017 + $0x38] sm:$0xff]
      %v1334 = vld [vmem:[%s1017 + $0x40] sm:$0xff]
      %v1335 = vld [vmem:[%s1017 + $0x48] sm:$0xff]
      %v1336 = vld [vmem:[%s1017 + $0x50] sm:$0xff]
      %v1337 = vld [vmem:[%s1017 + $0x58] sm:$0xff]
      %v1338 = vld [vmem:[%s1017 + $0x60] sm:$0xff]
      %v1339 = vld [vmem:[%s1017 + $0x68] sm:$0xff]
      %v1340 = vld [vmem:[%s1017 + $0x70] sm:$0xff]
      %v1341 = vld [vmem:[%s1017 + $0x78] sm:$0xff]
      %v1342 = vld [vmem:[%s1017 + $0x80] sm:$0xff]
      %v1343 = vld [vmem:[%s1017 + $0x88] sm:$0xff]
      %v1344 = vld [vmem:[%s1017 + $0x90] sm:$0xff]
      %v1345 = vld [vmem:[%s1017 + $0x98] sm:$0xff]
      %v1346 = vld [vmem:[%s1017 + $0xa0] sm:$0xff]
      %v1347 = vld [vmem:[%s1017 + $0xa8] sm:$0xff]
      %v1348 = vld [vmem:[%s1017 + $0xb0] sm:$0xff]
      %v1349 = vld [vmem:[%s1017 + $0xb8] sm:$0xff]
      %v1350 = vld [vmem:[%s1017 + $0xc0] sm:$0xff]
      %v1351 = vld [vmem:[%s1017 + $0xc8] sm:$0xff]
      %v1352 = vld [vmem:[%s1017 + $0xd0] sm:$0xff]
      %v1353 = vld [vmem:[%s1017 + $0xd8] sm:$0xff]
      %v1354 = vld [vmem:[%s1017 + $0xe0] sm:$0xff]
      %v1355 = vld [vmem:[%s1017 + $0xe8] sm:$0xff]
      %v1356 = vadd.f32 %v1326, %v1296
      %v1357 = vadd.f32 %v1327, %v1297
      %v1358 = vadd.f32 %v1328, %v1298
      %v1359 = vadd.f32 %v1329, %v1299
      %v1360 = vadd.f32 %v1330, %v1300
      %v1361 = vadd.f32 %v1331, %v1301
      %v1362 = vadd.f32 %v1332, %v1302
      %v1363 = vadd.f32 %v1333, %v1303
      %v1364 = vadd.f32 %v1334, %v1304
      %v1365 = vadd.f32 %v1335, %v1305
      %v1366 = vadd.f32 %v1336, %v1306
      %v1367 = vadd.f32 %v1337, %v1307
      %v1368 = vadd.f32 %v1338, %v1308
      %v1369 = vadd.f32 %v1339, %v1309
      %v1370 = vadd.f32 %v1340, %v1310
      %v1371 = vadd.f32 %v1341, %v1311
      %v1372 = vadd.f32 %v1342, %v1312
      %v1373 = vadd.f32 %v1343, %v1313
      %v1374 = vadd.f32 %v1344, %v1314
      %v1375 = vadd.f32 %v1345, %v1315
      %v1376 = vadd.f32 %v1346, %v1316
      %v1377 = vadd.f32 %v1347, %v1317
      %v1378 = vadd.f32 %v1348, %v1318
      %v1379 = vadd.f32 %v1349, %v1319
      %v1380 = vadd.f32 %v1350, %v1320
      %v1381 = vadd.f32 %v1351, %v1321
      %v1382 = vadd.f32 %v1352, %v1322
      %v1383 = vadd.f32 %v1353, %v1323
      %v1384 = vadd.f32 %v1354, %v1324
      %v1385 = vadd.f32 %v1355, %v1325
      %1386 = vst.msk [vmem:[%s1017] sm:$0xff] %vm192, %v1356
      %1387 = vst.msk [vmem:[%s1017 + $0x8] sm:$0xff] %vm192, %v1357
      %1388 = vst.msk [vmem:[%s1017 + $0x10] sm:$0xff] %vm192, %v1358
      %1389 = vst.msk [vmem:[%s1017 + $0x18] sm:$0xff] %vm192, %v1359
      %1390 = vst.msk [vmem:[%s1017 + $0x20] sm:$0xff] %vm192, %v1360
      %1391 = vst.msk [vmem:[%s1017 + $0x28] sm:$0xff] %vm192, %v1361
      %1392 = vst.msk [vmem:[%s1017 + $0x30] sm:$0xff] %vm192, %v1362
      %1393 = vst.msk [vmem:[%s1017 + $0x38] sm:$0xff] %vm192, %v1363
      %1394 = vst.msk [vmem:[%s1017 + $0x40] sm:$0xff] %vm192, %v1364
      %1395 = vst.msk [vmem:[%s1017 + $0x48] sm:$0xff] %vm192, %v1365
      %1396 = vst.msk [vmem:[%s1017 + $0x50] sm:$0xff] %vm192, %v1366
      %1397 = vst.msk [vmem:[%s1017 + $0x58] sm:$0xff] %vm192, %v1367
      %1398 = vst.msk [vmem:[%s1017 + $0x60] sm:$0xff] %vm192, %v1368
      %1399 = vst.msk [vmem:[%s1017 + $0x68] sm:$0xff] %vm192, %v1369
      %1400 = vst.msk [vmem:[%s1017 + $0x70] sm:$0xff] %vm192, %v1370
      %1401 = vst.msk [vmem:[%s1017 + $0x78] sm:$0xff] %vm192, %v1371
      %1402 = vst.msk [vmem:[%s1017 + $0x80] sm:$0xff] %vm192, %v1372
      %1403 = vst.msk [vmem:[%s1017 + $0x88] sm:$0xff] %vm192, %v1373
      %1404 = vst.msk [vmem:[%s1017 + $0x90] sm:$0xff] %vm192, %v1374
      %1405 = vst.msk [vmem:[%s1017 + $0x98] sm:$0xff] %vm192, %v1375
      %1406 = vst.msk [vmem:[%s1017 + $0xa0] sm:$0xff] %vm192, %v1376
      %1407 = vst.msk [vmem:[%s1017 + $0xa8] sm:$0xff] %vm192, %v1377
      %1408 = vst.msk [vmem:[%s1017 + $0xb0] sm:$0xff] %vm192, %v1378
      %1409 = vst.msk [vmem:[%s1017 + $0xb8] sm:$0xff] %vm192, %v1379
      %1410 = vst.msk [vmem:[%s1017 + $0xc0] sm:$0xff] %vm192, %v1380
      %1411 = vst.msk [vmem:[%s1017 + $0xc8] sm:$0xff] %vm192, %v1381
      %1412 = vst.msk [vmem:[%s1017 + $0xd0] sm:$0xff] %vm192, %v1382
      %1413 = vst.msk [vmem:[%s1017 + $0xd8] sm:$0xff] %vm192, %v1383
      %1414 = vst.msk [vmem:[%s1017 + $0xe0] sm:$0xff] %vm192, %v1384
      %1415 = vst.msk [vmem:[%s1017 + $0xe8] sm:$0xff] %vm192, %v1385
      %v1416 = vld [vmem:[%s179 + $0x1] sm:$0xff]
      %v1417 = vld [vmem:[%s179 + $0x9] sm:$0x7f]
      %v1418 = vld [vmem:[%s179 + $0x11] sm:$0xff]
      %v1419 = vld [vmem:[%s179 + $0x19] sm:$0x7f]
      %v1420 = vld [vmem:[%s179 + $0x21] sm:$0xff]
      %v1421 = vld [vmem:[%s179 + $0x29] sm:$0x7f]
      %v1422 = vld [vmem:[%s179 + $0x31] sm:$0xff]
      %v1423 = vld [vmem:[%s179 + $0x39] sm:$0x7f]
      %v1424 = vld [vmem:[%s179 + $0x41] sm:$0xff]
      %v1425 = vld [vmem:[%s179 + $0x49] sm:$0x7f]
      %v1426 = vld [vmem:[%s179 + $0x51] sm:$0xff]
      %v1427 = vld [vmem:[%s179 + $0x59] sm:$0x7f]
      %v1428 = vld [vmem:[%s179 + $0x61] sm:$0xff]
      %v1429 = vld [vmem:[%s179 + $0x69] sm:$0x7f]
      %v1430 = vld [vmem:[%s179 + $0x71] sm:$0xff]
      %v1431 = vld [vmem:[%s179 + $0x79] sm:$0x7f]
      %v1432 = vld [vmem:[%s179 + $0x81] sm:$0xff]
      %v1433 = vld [vmem:[%s179 + $0x89] sm:$0x7f]
      %v1434 = vld [vmem:[%s179 + $0x91] sm:$0xff]
      %v1435 = vld [vmem:[%s179 + $0x99] sm:$0x7f]
      %v1436 = vld [vmem:[%s179 + $0xa1] sm:$0xff]
      %v1437 = vld [vmem:[%s179 + $0xa9] sm:$0x7f]
      %v1438 = vld [vmem:[%s179 + $0xb1] sm:$0xff]
      %v1439 = vld [vmem:[%s179 + $0xb9] sm:$0x7f]
      %v1440 = vld [vmem:[%s179 + $0xc1] sm:$0xff]
      %v1441 = vld [vmem:[%s179 + $0xc9] sm:$0x7f]
      %v1442 = vld [vmem:[%s179 + $0xd1] sm:$0xff]
      %v1443 = vld [vmem:[%s179 + $0xd9] sm:$0x7f]
      %v1444 = vld [vmem:[%s179 + $0xe1] sm:$0xff]
      %v1445 = vld [vmem:[%s179 + $0xe9] sm:$0x7f]
      %v1446 = vlaneseq
      %v1447 = vshrl.u32 %v1446, 7
      %v1448 = vsub.s32 3, %v1447
      %v1449 = vrot.slane %v226, %v1448
      %v1450 = vmul.f32 %v1416, %v1449
      %v1451 = vmul.f32 %v1417, %v1449
      %v1452 = vmul.f32 %v1418, %v1449
      %v1453 = vmul.f32 %v1419, %v1449
      %v1454 = vmul.f32 %v1420, %v1449
      %v1455 = vmul.f32 %v1421, %v1449
      %v1456 = vmul.f32 %v1422, %v1449
      %v1457 = vmul.f32 %v1423, %v1449
      %v1458 = vmul.f32 %v1424, %v1449
      %v1459 = vmul.f32 %v1425, %v1449
      %v1460 = vmul.f32 %v1426, %v1449
      %v1461 = vmul.f32 %v1427, %v1449
      %v1462 = vmul.f32 %v1428, %v1449
      %v1463 = vmul.f32 %v1429, %v1449
      %v1464 = vmul.f32 %v1430, %v1449
      %v1465 = vmul.f32 %v1431, %v1449
      %v1466 = vmul.f32 %v1432, %v1449
      %v1467 = vmul.f32 %v1433, %v1449
      %v1468 = vmul.f32 %v1434, %v1449
      %v1469 = vmul.f32 %v1435, %v1449
      %v1470 = vmul.f32 %v1436, %v1449
      %v1471 = vmul.f32 %v1437, %v1449
      %v1472 = vmul.f32 %v1438, %v1449
      %v1473 = vmul.f32 %v1439, %v1449
      %v1474 = vmul.f32 %v1440, %v1449
      %v1475 = vmul.f32 %v1441, %v1449
      %v1476 = vmul.f32 %v1442, %v1449
      %v1477 = vmul.f32 %v1443, %v1449
      %v1478 = vmul.f32 %v1444, %v1449
      %v1479 = vmul.f32 %v1445, %v1449
      %v1480 = vld [vmem:[%s1017] sm:$0xff]
      %v1481 = vld [vmem:[%s1017 + $0x8] sm:$0x7f]
      %v1482 = vld [vmem:[%s1017 + $0x10] sm:$0xff]
      %v1483 = vld [vmem:[%s1017 + $0x18] sm:$0x7f]
      %v1484 = vld [vmem:[%s1017 + $0x20] sm:$0xff]
      %v1485 = vld [vmem:[%s1017 + $0x28] sm:$0x7f]
      %v1486 = vld [vmem:[%s1017 + $0x30] sm:$0xff]
      %v1487 = vld [vmem:[%s1017 + $0x38] sm:$0x7f]
      %v1488 = vld [vmem:[%s1017 + $0x40] sm:$0xff]
      %v1489 = vld [vmem:[%s1017 + $0x48] sm:$0x7f]
      %v1490 = vld [vmem:[%s1017 + $0x50] sm:$0xff]
      %v1491 = vld [vmem:[%s1017 + $0x58] sm:$0x7f]
      %v1492 = vld [vmem:[%s1017 + $0x60] sm:$0xff]
      %v1493 = vld [vmem:[%s1017 + $0x68] sm:$0x7f]
      %v1494 = vld [vmem:[%s1017 + $0x70] sm:$0xff]
      %v1495 = vld [vmem:[%s1017 + $0x78] sm:$0x7f]
      %v1496 = vld [vmem:[%s1017 + $0x80] sm:$0xff]
      %v1497 = vld [vmem:[%s1017 + $0x88] sm:$0x7f]
      %v1498 = vld [vmem:[%s1017 + $0x90] sm:$0xff]
      %v1499 = vld [vmem:[%s1017 + $0x98] sm:$0x7f]
      %v1500 = vld [vmem:[%s1017 + $0xa0] sm:$0xff]
      %v1501 = vld [vmem:[%s1017 + $0xa8] sm:$0x7f]
      %v1502 = vld [vmem:[%s1017 + $0xb0] sm:$0xff]
      %v1503 = vld [vmem:[%s1017 + $0xb8] sm:$0x7f]
      %v1504 = vld [vmem:[%s1017 + $0xc0] sm:$0xff]
      %v1505 = vld [vmem:[%s1017 + $0xc8] sm:$0x7f]
      %v1506 = vld [vmem:[%s1017 + $0xd0] sm:$0xff]
      %v1507 = vld [vmem:[%s1017 + $0xd8] sm:$0x7f]
      %v1508 = vld [vmem:[%s1017 + $0xe0] sm:$0xff]
      %v1509 = vld [vmem:[%s1017 + $0xe8] sm:$0x7f]
      %v1510 = vadd.f32 %v1480, %v1450
      %v1511 = vadd.f32 %v1481, %v1451
      %v1512 = vadd.f32 %v1482, %v1452
      %v1513 = vadd.f32 %v1483, %v1453
      %v1514 = vadd.f32 %v1484, %v1454
      %v1515 = vadd.f32 %v1485, %v1455
      %v1516 = vadd.f32 %v1486, %v1456
      %v1517 = vadd.f32 %v1487, %v1457
      %v1518 = vadd.f32 %v1488, %v1458
      %v1519 = vadd.f32 %v1489, %v1459
      %v1520 = vadd.f32 %v1490, %v1460
      %v1521 = vadd.f32 %v1491, %v1461
      %v1522 = vadd.f32 %v1492, %v1462
      %v1523 = vadd.f32 %v1493, %v1463
      %v1524 = vadd.f32 %v1494, %v1464
      %v1525 = vadd.f32 %v1495, %v1465
      %v1526 = vadd.f32 %v1496, %v1466
      %v1527 = vadd.f32 %v1497, %v1467
      %v1528 = vadd.f32 %v1498, %v1468
      %v1529 = vadd.f32 %v1499, %v1469
      %v1530 = vadd.f32 %v1500, %v1470
      %v1531 = vadd.f32 %v1501, %v1471
      %v1532 = vadd.f32 %v1502, %v1472
      %v1533 = vadd.f32 %v1503, %v1473
      %v1534 = vadd.f32 %v1504, %v1474
      %v1535 = vadd.f32 %v1505, %v1475
      %v1536 = vadd.f32 %v1506, %v1476
      %v1537 = vadd.f32 %v1507, %v1477
      %v1538 = vadd.f32 %v1508, %v1478
      %v1539 = vadd.f32 %v1509, %v1479
      %1540 = vst.msk [vmem:[%s1017] sm:$0xff] %vm192, %v1510
      %1541 = vst.msk [vmem:[%s1017 + $0x8] sm:$0x7f] %vm493, %v1511
      %1542 = vst.msk [vmem:[%s1017 + $0x10] sm:$0xff] %vm192, %v1512
      %1543 = vst.msk [vmem:[%s1017 + $0x18] sm:$0x7f] %vm493, %v1513
      %1544 = vst.msk [vmem:[%s1017 + $0x20] sm:$0xff] %vm192, %v1514
      %1545 = vst.msk [vmem:[%s1017 + $0x28] sm:$0x7f] %vm493, %v1515
      %1546 = vst.msk [vmem:[%s1017 + $0x30] sm:$0xff] %vm192, %v1516
      %1547 = vst.msk [vmem:[%s1017 + $0x38] sm:$0x7f] %vm493, %v1517
      %1548 = vst.msk [vmem:[%s1017 + $0x40] sm:$0xff] %vm192, %v1518
      %1549 = vst.msk [vmem:[%s1017 + $0x48] sm:$0x7f] %vm493, %v1519
      %1550 = vst.msk [vmem:[%s1017 + $0x50] sm:$0xff] %vm192, %v1520
      %1551 = vst.msk [vmem:[%s1017 + $0x58] sm:$0x7f] %vm493, %v1521
      %1552 = vst.msk [vmem:[%s1017 + $0x60] sm:$0xff] %vm192, %v1522
      %1553 = vst.msk [vmem:[%s1017 + $0x68] sm:$0x7f] %vm493, %v1523
      %1554 = vst.msk [vmem:[%s1017 + $0x70] sm:$0xff] %vm192, %v1524
      %1555 = vst.msk [vmem:[%s1017 + $0x78] sm:$0x7f] %vm493, %v1525
      %1556 = vst.msk [vmem:[%s1017 + $0x80] sm:$0xff] %vm192, %v1526
      %1557 = vst.msk [vmem:[%s1017 + $0x88] sm:$0x7f] %vm493, %v1527
      %1558 = vst.msk [vmem:[%s1017 + $0x90] sm:$0xff] %vm192, %v1528
      %1559 = vst.msk [vmem:[%s1017 + $0x98] sm:$0x7f] %vm493, %v1529
      %1560 = vst.msk [vmem:[%s1017 + $0xa0] sm:$0xff] %vm192, %v1530
      %1561 = vst.msk [vmem:[%s1017 + $0xa8] sm:$0x7f] %vm493, %v1531
      %1562 = vst.msk [vmem:[%s1017 + $0xb0] sm:$0xff] %vm192, %v1532
      %1563 = vst.msk [vmem:[%s1017 + $0xb8] sm:$0x7f] %vm493, %v1533
      %1564 = vst.msk [vmem:[%s1017 + $0xc0] sm:$0xff] %vm192, %v1534
      %1565 = vst.msk [vmem:[%s1017 + $0xc8] sm:$0x7f] %vm493, %v1535
      %1566 = vst.msk [vmem:[%s1017 + $0xd0] sm:$0xff] %vm192, %v1536
      %1567 = vst.msk [vmem:[%s1017 + $0xd8] sm:$0x7f] %vm493, %v1537
      %1568 = vst.msk [vmem:[%s1017 + $0xe0] sm:$0xff] %vm192, %v1538
      %1569 = vst.msk [vmem:[%s1017 + $0xe8] sm:$0x7f] %vm493, %v1539
      %v1570 = vld [vmem:[%s179 + $0x2] sm:$0xff]
      %v1571 = vld [vmem:[%s179 + $0xa] sm:$0x3f]
      %v1572 = vld [vmem:[%s179 + $0x12] sm:$0xff]
      %v1573 = vld [vmem:[%s179 + $0x1a] sm:$0x3f]
      %v1574 = vld [vmem:[%s179 + $0x22] sm:$0xff]
      %v1575 = vld [vmem:[%s179 + $0x2a] sm:$0x3f]
      %v1576 = vld [vmem:[%s179 + $0x32] sm:$0xff]
      %v1577 = vld [vmem:[%s179 + $0x3a] sm:$0x3f]
      %v1578 = vld [vmem:[%s179 + $0x42] sm:$0xff]
      %v1579 = vld [vmem:[%s179 + $0x4a] sm:$0x3f]
      %v1580 = vld [vmem:[%s179 + $0x52] sm:$0xff]
      %v1581 = vld [vmem:[%s179 + $0x5a] sm:$0x3f]
      %v1582 = vld [vmem:[%s179 + $0x62] sm:$0xff]
      %v1583 = vld [vmem:[%s179 + $0x6a] sm:$0x3f]
      %v1584 = vld [vmem:[%s179 + $0x72] sm:$0xff]
      %v1585 = vld [vmem:[%s179 + $0x7a] sm:$0x3f]
      %v1586 = vld [vmem:[%s179 + $0x82] sm:$0xff]
      %v1587 = vld [vmem:[%s179 + $0x8a] sm:$0x3f]
      %v1588 = vld [vmem:[%s179 + $0x92] sm:$0xff]
      %v1589 = vld [vmem:[%s179 + $0x9a] sm:$0x3f]
      %v1590 = vld [vmem:[%s179 + $0xa2] sm:$0xff]
      %v1591 = vld [vmem:[%s179 + $0xaa] sm:$0x3f]
      %v1592 = vld [vmem:[%s179 + $0xb2] sm:$0xff]
      %v1593 = vld [vmem:[%s179 + $0xba] sm:$0x3f]
      %v1594 = vld [vmem:[%s179 + $0xc2] sm:$0xff]
      %v1595 = vld [vmem:[%s179 + $0xca] sm:$0x3f]
      %v1596 = vld [vmem:[%s179 + $0xd2] sm:$0xff]
      %v1597 = vld [vmem:[%s179 + $0xda] sm:$0x3f]
      %v1598 = vld [vmem:[%s179 + $0xe2] sm:$0xff]
      %v1599 = vld [vmem:[%s179 + $0xea] sm:$0x3f]
      %v1600 = vlaneseq
      %v1601 = vshrl.u32 %v1600, 7
      %v1602 = vsub.s32 4, %v1601
      %v1603 = vrot.slane %v226, %v1602
      %v1604 = vmul.f32 %v1570, %v1603
      %v1605 = vmul.f32 %v1571, %v1603
      %v1606 = vmul.f32 %v1572, %v1603
      %v1607 = vmul.f32 %v1573, %v1603
      %v1608 = vmul.f32 %v1574, %v1603
      %v1609 = vmul.f32 %v1575, %v1603
      %v1610 = vmul.f32 %v1576, %v1603
      %v1611 = vmul.f32 %v1577, %v1603
      %v1612 = vmul.f32 %v1578, %v1603
      %v1613 = vmul.f32 %v1579, %v1603
      %v1614 = vmul.f32 %v1580, %v1603
      %v1615 = vmul.f32 %v1581, %v1603
      %v1616 = vmul.f32 %v1582, %v1603
      %v1617 = vmul.f32 %v1583, %v1603
      %v1618 = vmul.f32 %v1584, %v1603
      %v1619 = vmul.f32 %v1585, %v1603
      %v1620 = vmul.f32 %v1586, %v1603
      %v1621 = vmul.f32 %v1587, %v1603
      %v1622 = vmul.f32 %v1588, %v1603
      %v1623 = vmul.f32 %v1589, %v1603
      %v1624 = vmul.f32 %v1590, %v1603
      %v1625 = vmul.f32 %v1591, %v1603
      %v1626 = vmul.f32 %v1592, %v1603
      %v1627 = vmul.f32 %v1593, %v1603
      %v1628 = vmul.f32 %v1594, %v1603
      %v1629 = vmul.f32 %v1595, %v1603
      %v1630 = vmul.f32 %v1596, %v1603
      %v1631 = vmul.f32 %v1597, %v1603
      %v1632 = vmul.f32 %v1598, %v1603
      %v1633 = vmul.f32 %v1599, %v1603
      %v1634 = vld [vmem:[%s1017] sm:$0xff]
      %v1635 = vld [vmem:[%s1017 + $0x8] sm:$0x3f]
      %v1636 = vld [vmem:[%s1017 + $0x10] sm:$0xff]
      %v1637 = vld [vmem:[%s1017 + $0x18] sm:$0x3f]
      %v1638 = vld [vmem:[%s1017 + $0x20] sm:$0xff]
      %v1639 = vld [vmem:[%s1017 + $0x28] sm:$0x3f]
      %v1640 = vld [vmem:[%s1017 + $0x30] sm:$0xff]
      %v1641 = vld [vmem:[%s1017 + $0x38] sm:$0x3f]
      %v1642 = vld [vmem:[%s1017 + $0x40] sm:$0xff]
      %v1643 = vld [vmem:[%s1017 + $0x48] sm:$0x3f]
      %v1644 = vld [vmem:[%s1017 + $0x50] sm:$0xff]
      %v1645 = vld [vmem:[%s1017 + $0x58] sm:$0x3f]
      %v1646 = vld [vmem:[%s1017 + $0x60] sm:$0xff]
      %v1647 = vld [vmem:[%s1017 + $0x68] sm:$0x3f]
      %v1648 = vld [vmem:[%s1017 + $0x70] sm:$0xff]
      %v1649 = vld [vmem:[%s1017 + $0x78] sm:$0x3f]
      %v1650 = vld [vmem:[%s1017 + $0x80] sm:$0xff]
      %v1651 = vld [vmem:[%s1017 + $0x88] sm:$0x3f]
      %v1652 = vld [vmem:[%s1017 + $0x90] sm:$0xff]
      %v1653 = vld [vmem:[%s1017 + $0x98] sm:$0x3f]
      %v1654 = vld [vmem:[%s1017 + $0xa0] sm:$0xff]
      %v1655 = vld [vmem:[%s1017 + $0xa8] sm:$0x3f]
      %v1656 = vld [vmem:[%s1017 + $0xb0] sm:$0xff]
      %v1657 = vld [vmem:[%s1017 + $0xb8] sm:$0x3f]
      %v1658 = vld [vmem:[%s1017 + $0xc0] sm:$0xff]
      %v1659 = vld [vmem:[%s1017 + $0xc8] sm:$0x3f]
      %v1660 = vld [vmem:[%s1017 + $0xd0] sm:$0xff]
      %v1661 = vld [vmem:[%s1017 + $0xd8] sm:$0x3f]
      %v1662 = vld [vmem:[%s1017 + $0xe0] sm:$0xff]
      %v1663 = vld [vmem:[%s1017 + $0xe8] sm:$0x3f]
      %v1664 = vadd.f32 %v1634, %v1604
      %v1665 = vadd.f32 %v1635, %v1605
      %v1666 = vadd.f32 %v1636, %v1606
      %v1667 = vadd.f32 %v1637, %v1607
      %v1668 = vadd.f32 %v1638, %v1608
      %v1669 = vadd.f32 %v1639, %v1609
      %v1670 = vadd.f32 %v1640, %v1610
      %v1671 = vadd.f32 %v1641, %v1611
      %v1672 = vadd.f32 %v1642, %v1612
      %v1673 = vadd.f32 %v1643, %v1613
      %v1674 = vadd.f32 %v1644, %v1614
      %v1675 = vadd.f32 %v1645, %v1615
      %v1676 = vadd.f32 %v1646, %v1616
      %v1677 = vadd.f32 %v1647, %v1617
      %v1678 = vadd.f32 %v1648, %v1618
      %v1679 = vadd.f32 %v1649, %v1619
      %v1680 = vadd.f32 %v1650, %v1620
      %v1681 = vadd.f32 %v1651, %v1621
      %v1682 = vadd.f32 %v1652, %v1622
      %v1683 = vadd.f32 %v1653, %v1623
      %v1684 = vadd.f32 %v1654, %v1624
      %v1685 = vadd.f32 %v1655, %v1625
      %v1686 = vadd.f32 %v1656, %v1626
      %v1687 = vadd.f32 %v1657, %v1627
      %v1688 = vadd.f32 %v1658, %v1628
      %v1689 = vadd.f32 %v1659, %v1629
      %v1690 = vadd.f32 %v1660, %v1630
      %v1691 = vadd.f32 %v1661, %v1631
      %v1692 = vadd.f32 %v1662, %v1632
      %v1693 = vadd.f32 %v1663, %v1633
      %1694 = vst.msk [vmem:[%s1017] sm:$0xff] %vm192, %v1664
      %1695 = vst.msk [vmem:[%s1017 + $0x8] sm:$0x3f] %vm348, %v1665
      %1696 = vst.msk [vmem:[%s1017 + $0x10] sm:$0xff] %vm192, %v1666
      %1697 = vst.msk [vmem:[%s1017 + $0x18] sm:$0x3f] %vm348, %v1667
      %1698 = vst.msk [vmem:[%s1017 + $0x20] sm:$0xff] %vm192, %v1668
      %1699 = vst.msk [vmem:[%s1017 + $0x28] sm:$0x3f] %vm348, %v1669
      %1700 = vst.msk [vmem:[%s1017 + $0x30] sm:$0xff] %vm192, %v1670
      %1701 = vst.msk [vmem:[%s1017 + $0x38] sm:$0x3f] %vm348, %v1671
      %1702 = vst.msk [vmem:[%s1017 + $0x40] sm:$0xff] %vm192, %v1672
      %1703 = vst.msk [vmem:[%s1017 + $0x48] sm:$0x3f] %vm348, %v1673
      %1704 = vst.msk [vmem:[%s1017 + $0x50] sm:$0xff] %vm192, %v1674
      %1705 = vst.msk [vmem:[%s1017 + $0x58] sm:$0x3f] %vm348, %v1675
      %1706 = vst.msk [vmem:[%s1017 + $0x60] sm:$0xff] %vm192, %v1676
      %1707 = vst.msk [vmem:[%s1017 + $0x68] sm:$0x3f] %vm348, %v1677
      %1708 = vst.msk [vmem:[%s1017 + $0x70] sm:$0xff] %vm192, %v1678
      %1709 = vst.msk [vmem:[%s1017 + $0x78] sm:$0x3f] %vm348, %v1679
      %1710 = vst.msk [vmem:[%s1017 + $0x80] sm:$0xff] %vm192, %v1680
      %1711 = vst.msk [vmem:[%s1017 + $0x88] sm:$0x3f] %vm348, %v1681
      %1712 = vst.msk [vmem:[%s1017 + $0x90] sm:$0xff] %vm192, %v1682
      %1713 = vst.msk [vmem:[%s1017 + $0x98] sm:$0x3f] %vm348, %v1683
      %1714 = vst.msk [vmem:[%s1017 + $0xa0] sm:$0xff] %vm192, %v1684
      %1715 = vst.msk [vmem:[%s1017 + $0xa8] sm:$0x3f] %vm348, %v1685
      %1716 = vst.msk [vmem:[%s1017 + $0xb0] sm:$0xff] %vm192, %v1686
      %1717 = vst.msk [vmem:[%s1017 + $0xb8] sm:$0x3f] %vm348, %v1687
      %1718 = vst.msk [vmem:[%s1017 + $0xc0] sm:$0xff] %vm192, %v1688
      %1719 = vst.msk [vmem:[%s1017 + $0xc8] sm:$0x3f] %vm348, %v1689
      %1720 = vst.msk [vmem:[%s1017 + $0xd0] sm:$0xff] %vm192, %v1690
      %1721 = vst.msk [vmem:[%s1017 + $0xd8] sm:$0x3f] %vm348, %v1691
      %1722 = vst.msk [vmem:[%s1017 + $0xe0] sm:$0xff] %vm192, %v1692
      %1723 = vst.msk [vmem:[%s1017 + $0xe8] sm:$0x3f] %vm348, %v1693
      %v1724 = vld [vmem:[%s179] sm:$0xff]
      %v1725 = vld [vmem:[%s179 + $0x8] sm:$0x3f]
      %v1726 = vld [vmem:[%s179 + $0x10] sm:$0xff]
      %v1727 = vld [vmem:[%s179 + $0x18] sm:$0x3f]
      %v1728 = vld [vmem:[%s179 + $0x20] sm:$0xff]
      %v1729 = vld [vmem:[%s179 + $0x28] sm:$0x3f]
      %v1730 = vld [vmem:[%s179 + $0x30] sm:$0xff]
      %v1731 = vld [vmem:[%s179 + $0x38] sm:$0x3f]
      %v1732 = vld [vmem:[%s179 + $0x40] sm:$0xff]
      %v1733 = vld [vmem:[%s179 + $0x48] sm:$0x3f]
      %v1734 = vld [vmem:[%s179 + $0x50] sm:$0xff]
      %v1735 = vld [vmem:[%s179 + $0x58] sm:$0x3f]
      %v1736 = vld [vmem:[%s179 + $0x60] sm:$0xff]
      %v1737 = vld [vmem:[%s179 + $0x68] sm:$0x3f]
      %v1738 = vld [vmem:[%s179 + $0x70] sm:$0xff]
      %v1739 = vld [vmem:[%s179 + $0x78] sm:$0x3f]
      %v1740 = vld [vmem:[%s179 + $0x80] sm:$0xff]
      %v1741 = vld [vmem:[%s179 + $0x88] sm:$0x3f]
      %v1742 = vld [vmem:[%s179 + $0x90] sm:$0xff]
      %v1743 = vld [vmem:[%s179 + $0x98] sm:$0x3f]
      %v1744 = vld [vmem:[%s179 + $0xa0] sm:$0xff]
      %v1745 = vld [vmem:[%s179 + $0xa8] sm:$0x3f]
      %v1746 = vld [vmem:[%s179 + $0xb0] sm:$0xff]
      %v1747 = vld [vmem:[%s179 + $0xb8] sm:$0x3f]
      %v1748 = vld [vmem:[%s179 + $0xc0] sm:$0xff]
      %v1749 = vld [vmem:[%s179 + $0xc8] sm:$0x3f]
      %v1750 = vld [vmem:[%s179 + $0xd0] sm:$0xff]
      %v1751 = vld [vmem:[%s179 + $0xd8] sm:$0x3f]
      %v1752 = vld [vmem:[%s179 + $0xe0] sm:$0xff]
      %v1753 = vld [vmem:[%s179 + $0xe8] sm:$0x3f]
      %v1754 = vld [vmem:[%s179 + $0xf0] sm:$0xff]
      %v1755 = vld [vmem:[%s179 + $0xf8] sm:$0x3f]
      %v1756 = vlaneseq
      %v1757 = vshrl.u32 %v1756, 7
      %v1758 = vsub.s32 0, %v1757
      %v1759 = vrot.slane %v227, %v1758
      %v1760 = vmul.f32 %v1724, %v1759
      %v1761 = vmul.f32 %v1725, %v1759
      %v1762 = vmul.f32 %v1726, %v1759
      %v1763 = vmul.f32 %v1727, %v1759
      %v1764 = vmul.f32 %v1728, %v1759
      %v1765 = vmul.f32 %v1729, %v1759
      %v1766 = vmul.f32 %v1730, %v1759
      %v1767 = vmul.f32 %v1731, %v1759
      %v1768 = vmul.f32 %v1732, %v1759
      %v1769 = vmul.f32 %v1733, %v1759
      %v1770 = vmul.f32 %v1734, %v1759
      %v1771 = vmul.f32 %v1735, %v1759
      %v1772 = vmul.f32 %v1736, %v1759
      %v1773 = vmul.f32 %v1737, %v1759
      %v1774 = vmul.f32 %v1738, %v1759
      %v1775 = vmul.f32 %v1739, %v1759
      %v1776 = vmul.f32 %v1740, %v1759
      %v1777 = vmul.f32 %v1741, %v1759
      %v1778 = vmul.f32 %v1742, %v1759
      %v1779 = vmul.f32 %v1743, %v1759
      %v1780 = vmul.f32 %v1744, %v1759
      %v1781 = vmul.f32 %v1745, %v1759
      %v1782 = vmul.f32 %v1746, %v1759
      %v1783 = vmul.f32 %v1747, %v1759
      %v1784 = vmul.f32 %v1748, %v1759
      %v1785 = vmul.f32 %v1749, %v1759
      %v1786 = vmul.f32 %v1750, %v1759
      %v1787 = vmul.f32 %v1751, %v1759
      %v1788 = vmul.f32 %v1752, %v1759
      %v1789 = vmul.f32 %v1753, %v1759
      %v1790 = vmul.f32 %v1754, %v1759
      %v1791 = vmul.f32 %v1755, %v1759
      %v1792 = vld [vmem:[#allocation2 + $0x2] sm:$0xff]
      %v1793 = vld [vmem:[#allocation2 + $0xa] sm:$0x3f]
      %v1794 = vld [vmem:[#allocation2 + $0x12] sm:$0xff]
      %v1795 = vld [vmem:[#allocation2 + $0x1a] sm:$0x3f]
      %v1796 = vld [vmem:[#allocation2 + $0x22] sm:$0xff]
      %v1797 = vld [vmem:[#allocation2 + $0x2a] sm:$0x3f]
      %v1798 = vld [vmem:[#allocation2 + $0x32] sm:$0xff]
      %v1799 = vld [vmem:[#allocation2 + $0x3a] sm:$0x3f]
      %v1800 = vld [vmem:[#allocation2 + $0x42] sm:$0xff]
      %v1801 = vld [vmem:[#allocation2 + $0x4a] sm:$0x3f]
      %v1802 = vld [vmem:[#allocation2 + $0x52] sm:$0xff]
      %v1803 = vld [vmem:[#allocation2 + $0x5a] sm:$0x3f]
      %v1804 = vld [vmem:[#allocation2 + $0x62] sm:$0xff]
      %v1805 = vld [vmem:[#allocation2 + $0x6a] sm:$0x3f]
      %v1806 = vld [vmem:[#allocation2 + $0x72] sm:$0xff]
      %v1807 = vld [vmem:[#allocation2 + $0x7a] sm:$0x3f]
      %v1808 = vld [vmem:[#allocation2 + $0x82] sm:$0xff]
      %v1809 = vld [vmem:[#allocation2 + $0x8a] sm:$0x3f]
      %v1810 = vld [vmem:[#allocation2 + $0x92] sm:$0xff]
      %v1811 = vld [vmem:[#allocation2 + $0x9a] sm:$0x3f]
      %v1812 = vld [vmem:[#allocation2 + $0xa2] sm:$0xff]
      %v1813 = vld [vmem:[#allocation2 + $0xaa] sm:$0x3f]
      %v1814 = vld [vmem:[#allocation2 + $0xb2] sm:$0xff]
      %v1815 = vld [vmem:[#allocation2 + $0xba] sm:$0x3f]
      %v1816 = vld [vmem:[#allocation2 + $0xc2] sm:$0xff]
      %v1817 = vld [vmem:[#allocation2 + $0xca] sm:$0x3f]
      %v1818 = vld [vmem:[#allocation2 + $0xd2] sm:$0xff]
      %v1819 = vld [vmem:[#allocation2 + $0xda] sm:$0x3f]
      %v1820 = vld [vmem:[#allocation2 + $0xe2] sm:$0xff]
      %v1821 = vld [vmem:[#allocation2 + $0xea] sm:$0x3f]
      %v1822 = vld [vmem:[#allocation2 + $0xf2] sm:$0xff]
      %v1823 = vld [vmem:[#allocation2 + $0xfa] sm:$0x3f]
      %v1824 = vadd.f32 %v1792, %v1760
      %v1825 = vadd.f32 %v1793, %v1761
      %v1826 = vadd.f32 %v1794, %v1762
      %v1827 = vadd.f32 %v1795, %v1763
      %v1828 = vadd.f32 %v1796, %v1764
      %v1829 = vadd.f32 %v1797, %v1765
      %v1830 = vadd.f32 %v1798, %v1766
      %v1831 = vadd.f32 %v1799, %v1767
      %v1832 = vadd.f32 %v1800, %v1768
      %v1833 = vadd.f32 %v1801, %v1769
      %v1834 = vadd.f32 %v1802, %v1770
      %v1835 = vadd.f32 %v1803, %v1771
      %v1836 = vadd.f32 %v1804, %v1772
      %v1837 = vadd.f32 %v1805, %v1773
      %v1838 = vadd.f32 %v1806, %v1774
      %v1839 = vadd.f32 %v1807, %v1775
      %v1840 = vadd.f32 %v1808, %v1776
      %v1841 = vadd.f32 %v1809, %v1777
      %v1842 = vadd.f32 %v1810, %v1778
      %v1843 = vadd.f32 %v1811, %v1779
      %v1844 = vadd.f32 %v1812, %v1780
      %v1845 = vadd.f32 %v1813, %v1781
      %v1846 = vadd.f32 %v1814, %v1782
      %v1847 = vadd.f32 %v1815, %v1783
      %v1848 = vadd.f32 %v1816, %v1784
      %v1849 = vadd.f32 %v1817, %v1785
      %v1850 = vadd.f32 %v1818, %v1786
      %v1851 = vadd.f32 %v1819, %v1787
      %v1852 = vadd.f32 %v1820, %v1788
      %v1853 = vadd.f32 %v1821, %v1789
      %v1854 = vadd.f32 %v1822, %v1790
      %v1855 = vadd.f32 %v1823, %v1791
      %1856 = vst.msk [vmem:[#allocation2 + $0x2] sm:$0xff] %vm192, %v1824
      %1857 = vst.msk [vmem:[#allocation2 + $0xa] sm:$0x3f] %vm348, %v1825
      %1858 = vst.msk [vmem:[#allocation2 + $0x12] sm:$0xff] %vm192, %v1826
      %1859 = vst.msk [vmem:[#allocation2 + $0x1a] sm:$0x3f] %vm348, %v1827
      %1860 = vst.msk [vmem:[#allocation2 + $0x22] sm:$0xff] %vm192, %v1828
      %1861 = vst.msk [vmem:[#allocation2 + $0x2a] sm:$0x3f] %vm348, %v1829
      %1862 = vst.msk [vmem:[#allocation2 + $0x32] sm:$0xff] %vm192, %v1830
      %1863 = vst.msk [vmem:[#allocation2 + $0x3a] sm:$0x3f] %vm348, %v1831
      %1864 = vst.msk [vmem:[#allocation2 + $0x42] sm:$0xff] %vm192, %v1832
      %1865 = vst.msk [vmem:[#allocation2 + $0x4a] sm:$0x3f] %vm348, %v1833
      %1866 = vst.msk [vmem:[#allocation2 + $0x52] sm:$0xff] %vm192, %v1834
      %1867 = vst.msk [vmem:[#allocation2 + $0x5a] sm:$0x3f] %vm348, %v1835
      %1868 = vst.msk [vmem:[#allocation2 + $0x62] sm:$0xff] %vm192, %v1836
      %1869 = vst.msk [vmem:[#allocation2 + $0x6a] sm:$0x3f] %vm348, %v1837
      %1870 = vst.msk [vmem:[#allocation2 + $0x72] sm:$0xff] %vm192, %v1838
      %1871 = vst.msk [vmem:[#allocation2 + $0x7a] sm:$0x3f] %vm348, %v1839
      %1872 = vst.msk [vmem:[#allocation2 + $0x82] sm:$0xff] %vm192, %v1840
      %1873 = vst.msk [vmem:[#allocation2 + $0x8a] sm:$0x3f] %vm348, %v1841
      %1874 = vst.msk [vmem:[#allocation2 + $0x92] sm:$0xff] %vm192, %v1842
      %1875 = vst.msk [vmem:[#allocation2 + $0x9a] sm:$0x3f] %vm348, %v1843
      %1876 = vst.msk [vmem:[#allocation2 + $0xa2] sm:$0xff] %vm192, %v1844
      %1877 = vst.msk [vmem:[#allocation2 + $0xaa] sm:$0x3f] %vm348, %v1845
      %1878 = vst.msk [vmem:[#allocation2 + $0xb2] sm:$0xff] %vm192, %v1846
      %1879 = vst.msk [vmem:[#allocation2 + $0xba] sm:$0x3f] %vm348, %v1847
      %1880 = vst.msk [vmem:[#allocation2 + $0xc2] sm:$0xff] %vm192, %v1848
      %1881 = vst.msk [vmem:[#allocation2 + $0xca] sm:$0x3f] %vm348, %v1849
      %1882 = vst.msk [vmem:[#allocation2 + $0xd2] sm:$0xff] %vm192, %v1850
      %1883 = vst.msk [vmem:[#allocation2 + $0xda] sm:$0x3f] %vm348, %v1851
      %1884 = vst.msk [vmem:[#allocation2 + $0xe2] sm:$0xff] %vm192, %v1852
      %1885 = vst.msk [vmem:[#allocation2 + $0xea] sm:$0x3f] %vm348, %v1853
      %1886 = vst.msk [vmem:[#allocation2 + $0xf2] sm:$0xff] %vm192, %v1854
      %1887 = vst.msk [vmem:[#allocation2 + $0xfa] sm:$0x3f] %vm348, %v1855
      %v1888 = vld [vmem:[%s179] sm:$0xff]
      %v1889 = vld [vmem:[%s179 + $0x8] sm:$0x7f]
      %v1890 = vld [vmem:[%s179 + $0x10] sm:$0xff]
      %v1891 = vld [vmem:[%s179 + $0x18] sm:$0x7f]
      %v1892 = vld [vmem:[%s179 + $0x20] sm:$0xff]
      %v1893 = vld [vmem:[%s179 + $0x28] sm:$0x7f]
      %v1894 = vld [vmem:[%s179 + $0x30] sm:$0xff]
      %v1895 = vld [vmem:[%s179 + $0x38] sm:$0x7f]
      %v1896 = vld [vmem:[%s179 + $0x40] sm:$0xff]
      %v1897 = vld [vmem:[%s179 + $0x48] sm:$0x7f]
      %v1898 = vld [vmem:[%s179 + $0x50] sm:$0xff]
      %v1899 = vld [vmem:[%s179 + $0x58] sm:$0x7f]
      %v1900 = vld [vmem:[%s179 + $0x60] sm:$0xff]
      %v1901 = vld [vmem:[%s179 + $0x68] sm:$0x7f]
      %v1902 = vld [vmem:[%s179 + $0x70] sm:$0xff]
      %v1903 = vld [vmem:[%s179 + $0x78] sm:$0x7f]
      %v1904 = vld [vmem:[%s179 + $0x80] sm:$0xff]
      %v1905 = vld [vmem:[%s179 + $0x88] sm:$0x7f]
      %v1906 = vld [vmem:[%s179 + $0x90] sm:$0xff]
      %v1907 = vld [vmem:[%s179 + $0x98] sm:$0x7f]
      %v1908 = vld [vmem:[%s179 + $0xa0] sm:$0xff]
      %v1909 = vld [vmem:[%s179 + $0xa8] sm:$0x7f]
      %v1910 = vld [vmem:[%s179 + $0xb0] sm:$0xff]
      %v1911 = vld [vmem:[%s179 + $0xb8] sm:$0x7f]
      %v1912 = vld [vmem:[%s179 + $0xc0] sm:$0xff]
      %v1913 = vld [vmem:[%s179 + $0xc8] sm:$0x7f]
      %v1914 = vld [vmem:[%s179 + $0xd0] sm:$0xff]
      %v1915 = vld [vmem:[%s179 + $0xd8] sm:$0x7f]
      %v1916 = vld [vmem:[%s179 + $0xe0] sm:$0xff]
      %v1917 = vld [vmem:[%s179 + $0xe8] sm:$0x7f]
      %v1918 = vld [vmem:[%s179 + $0xf0] sm:$0xff]
      %v1919 = vld [vmem:[%s179 + $0xf8] sm:$0x7f]
      %v1920 = vlaneseq
      %v1921 = vshrl.u32 %v1920, 7
      %v1922 = vsub.s32 1, %v1921
      %v1923 = vrot.slane %v227, %v1922
      %v1924 = vmul.f32 %v1888, %v1923
      %v1925 = vmul.f32 %v1889, %v1923
      %v1926 = vmul.f32 %v1890, %v1923
      %v1927 = vmul.f32 %v1891, %v1923
      %v1928 = vmul.f32 %v1892, %v1923
      %v1929 = vmul.f32 %v1893, %v1923
      %v1930 = vmul.f32 %v1894, %v1923
      %v1931 = vmul.f32 %v1895, %v1923
      %v1932 = vmul.f32 %v1896, %v1923
      %v1933 = vmul.f32 %v1897, %v1923
      %v1934 = vmul.f32 %v1898, %v1923
      %v1935 = vmul.f32 %v1899, %v1923
      %v1936 = vmul.f32 %v1900, %v1923
      %v1937 = vmul.f32 %v1901, %v1923
      %v1938 = vmul.f32 %v1902, %v1923
      %v1939 = vmul.f32 %v1903, %v1923
      %v1940 = vmul.f32 %v1904, %v1923
      %v1941 = vmul.f32 %v1905, %v1923
      %v1942 = vmul.f32 %v1906, %v1923
      %v1943 = vmul.f32 %v1907, %v1923
      %v1944 = vmul.f32 %v1908, %v1923
      %v1945 = vmul.f32 %v1909, %v1923
      %v1946 = vmul.f32 %v1910, %v1923
      %v1947 = vmul.f32 %v1911, %v1923
      %v1948 = vmul.f32 %v1912, %v1923
      %v1949 = vmul.f32 %v1913, %v1923
      %v1950 = vmul.f32 %v1914, %v1923
      %v1951 = vmul.f32 %v1915, %v1923
      %v1952 = vmul.f32 %v1916, %v1923
      %v1953 = vmul.f32 %v1917, %v1923
      %v1954 = vmul.f32 %v1918, %v1923
      %v1955 = vmul.f32 %v1919, %v1923
      %v1956 = vld [vmem:[#allocation2 + $0x1] sm:$0xff]
      %v1957 = vld [vmem:[#allocation2 + $0x9] sm:$0x7f]
      %v1958 = vld [vmem:[#allocation2 + $0x11] sm:$0xff]
      %v1959 = vld [vmem:[#allocation2 + $0x19] sm:$0x7f]
      %v1960 = vld [vmem:[#allocation2 + $0x21] sm:$0xff]
      %v1961 = vld [vmem:[#allocation2 + $0x29] sm:$0x7f]
      %v1962 = vld [vmem:[#allocation2 + $0x31] sm:$0xff]
      %v1963 = vld [vmem:[#allocation2 + $0x39] sm:$0x7f]
      %v1964 = vld [vmem:[#allocation2 + $0x41] sm:$0xff]
      %v1965 = vld [vmem:[#allocation2 + $0x49] sm:$0x7f]
      %v1966 = vld [vmem:[#allocation2 + $0x51] sm:$0xff]
      %v1967 = vld [vmem:[#allocation2 + $0x59] sm:$0x7f]
      %v1968 = vld [vmem:[#allocation2 + $0x61] sm:$0xff]
      %v1969 = vld [vmem:[#allocation2 + $0x69] sm:$0x7f]
      %v1970 = vld [vmem:[#allocation2 + $0x71] sm:$0xff]
      %v1971 = vld [vmem:[#allocation2 + $0x79] sm:$0x7f]
      %v1972 = vld [vmem:[#allocation2 + $0x81] sm:$0xff]
      %v1973 = vld [vmem:[#allocation2 + $0x89] sm:$0x7f]
      %v1974 = vld [vmem:[#allocation2 + $0x91] sm:$0xff]
      %v1975 = vld [vmem:[#allocation2 + $0x99] sm:$0x7f]
      %v1976 = vld [vmem:[#allocation2 + $0xa1] sm:$0xff]
      %v1977 = vld [vmem:[#allocation2 + $0xa9] sm:$0x7f]
      %v1978 = vld [vmem:[#allocation2 + $0xb1] sm:$0xff]
      %v1979 = vld [vmem:[#allocation2 + $0xb9] sm:$0x7f]
      %v1980 = vld [vmem:[#allocation2 + $0xc1] sm:$0xff]
      %v1981 = vld [vmem:[#allocation2 + $0xc9] sm:$0x7f]
      %v1982 = vld [vmem:[#allocation2 + $0xd1] sm:$0xff]
      %v1983 = vld [vmem:[#allocation2 + $0xd9] sm:$0x7f]
      %v1984 = vld [vmem:[#allocation2 + $0xe1] sm:$0xff]
      %v1985 = vld [vmem:[#allocation2 + $0xe9] sm:$0x7f]
      %v1986 = vld [vmem:[#allocation2 + $0xf1] sm:$0xff]
      %v1987 = vld [vmem:[#allocation2 + $0xf9] sm:$0x7f]
      %v1988 = vadd.f32 %v1956, %v1924
      %v1989 = vadd.f32 %v1957, %v1925
      %v1990 = vadd.f32 %v1958, %v1926
      %v1991 = vadd.f32 %v1959, %v1927
      %v1992 = vadd.f32 %v1960, %v1928
      %v1993 = vadd.f32 %v1961, %v1929
      %v1994 = vadd.f32 %v1962, %v1930
      %v1995 = vadd.f32 %v1963, %v1931
      %v1996 = vadd.f32 %v1964, %v1932
      %v1997 = vadd.f32 %v1965, %v1933
      %v1998 = vadd.f32 %v1966, %v1934
      %v1999 = vadd.f32 %v1967, %v1935
      %v2000 = vadd.f32 %v1968, %v1936
      %v2001 = vadd.f32 %v1969, %v1937
      %v2002 = vadd.f32 %v1970, %v1938
      %v2003 = vadd.f32 %v1971, %v1939
      %v2004 = vadd.f32 %v1972, %v1940
      %v2005 = vadd.f32 %v1973, %v1941
      %v2006 = vadd.f32 %v1974, %v1942
      %v2007 = vadd.f32 %v1975, %v1943
      %v2008 = vadd.f32 %v1976, %v1944
      %v2009 = vadd.f32 %v1977, %v1945
      %v2010 = vadd.f32 %v1978, %v1946
      %v2011 = vadd.f32 %v1979, %v1947
      %v2012 = vadd.f32 %v1980, %v1948
      %v2013 = vadd.f32 %v1981, %v1949
      %v2014 = vadd.f32 %v1982, %v1950
      %v2015 = vadd.f32 %v1983, %v1951
      %v2016 = vadd.f32 %v1984, %v1952
      %v2017 = vadd.f32 %v1985, %v1953
      %v2018 = vadd.f32 %v1986, %v1954
      %v2019 = vadd.f32 %v1987, %v1955
      %2020 = vst.msk [vmem:[#allocation2 + $0x1] sm:$0xff] %vm192, %v1988
      %2021 = vst.msk [vmem:[#allocation2 + $0x9] sm:$0x7f] %vm493, %v1989
      %2022 = vst.msk [vmem:[#allocation2 + $0x11] sm:$0xff] %vm192, %v1990
      %2023 = vst.msk [vmem:[#allocation2 + $0x19] sm:$0x7f] %vm493, %v1991
      %2024 = vst.msk [vmem:[#allocation2 + $0x21] sm:$0xff] %vm192, %v1992
      %2025 = vst.msk [vmem:[#allocation2 + $0x29] sm:$0x7f] %vm493, %v1993
      %2026 = vst.msk [vmem:[#allocation2 + $0x31] sm:$0xff] %vm192, %v1994
      %2027 = vst.msk [vmem:[#allocation2 + $0x39] sm:$0x7f] %vm493, %v1995
      %2028 = vst.msk [vmem:[#allocation2 + $0x41] sm:$0xff] %vm192, %v1996
      %2029 = vst.msk [vmem:[#allocation2 + $0x49] sm:$0x7f] %vm493, %v1997
      %2030 = vst.msk [vmem:[#allocation2 + $0x51] sm:$0xff] %vm192, %v1998
      %2031 = vst.msk [vmem:[#allocation2 + $0x59] sm:$0x7f] %vm493, %v1999
      %2032 = vst.msk [vmem:[#allocation2 + $0x61] sm:$0xff] %vm192, %v2000
      %2033 = vst.msk [vmem:[#allocation2 + $0x69] sm:$0x7f] %vm493, %v2001
      %2034 = vst.msk [vmem:[#allocation2 + $0x71] sm:$0xff] %vm192, %v2002
      %2035 = vst.msk [vmem:[#allocation2 + $0x79] sm:$0x7f] %vm493, %v2003
      %2036 = vst.msk [vmem:[#allocation2 + $0x81] sm:$0xff] %vm192, %v2004
      %2037 = vst.msk [vmem:[#allocation2 + $0x89] sm:$0x7f] %vm493, %v2005
      %2038 = vst.msk [vmem:[#allocation2 + $0x91] sm:$0xff] %vm192, %v2006
      %2039 = vst.msk [vmem:[#allocation2 + $0x99] sm:$0x7f] %vm493, %v2007
      %2040 = vst.msk [vmem:[#allocation2 + $0xa1] sm:$0xff] %vm192, %v2008
      %2041 = vst.msk [vmem:[#allocation2 + $0xa9] sm:$0x7f] %vm493, %v2009
      %2042 = vst.msk [vmem:[#allocation2 + $0xb1] sm:$0xff] %vm192, %v2010
      %2043 = vst.msk [vmem:[#allocation2 + $0xb9] sm:$0x7f] %vm493, %v2011
      %2044 = vst.msk [vmem:[#allocation2 + $0xc1] sm:$0xff] %vm192, %v2012
      %2045 = vst.msk [vmem:[#allocation2 + $0xc9] sm:$0x7f] %vm493, %v2013
      %2046 = vst.msk [vmem:[#allocation2 + $0xd1] sm:$0xff] %vm192, %v2014
      %2047 = vst.msk [vmem:[#allocation2 + $0xd9] sm:$0x7f] %vm493, %v2015
      %2048 = vst.msk [vmem:[#allocation2 + $0xe1] sm:$0xff] %vm192, %v2016
      %2049 = vst.msk [vmem:[#allocation2 + $0xe9] sm:$0x7f] %vm493, %v2017
      %2050 = vst.msk [vmem:[#allocation2 + $0xf1] sm:$0xff] %vm192, %v2018
      %2051 = vst.msk [vmem:[#allocation2 + $0xf9] sm:$0x7f] %vm493, %v2019
      %v2052 = vld [vmem:[%s179] sm:$0xff]
      %v2053 = vld [vmem:[%s179 + $0x8] sm:$0xff]
      %v2054 = vld [vmem:[%s179 + $0x10] sm:$0xff]
      %v2055 = vld [vmem:[%s179 + $0x18] sm:$0xff]
      %v2056 = vld [vmem:[%s179 + $0x20] sm:$0xff]
      %v2057 = vld [vmem:[%s179 + $0x28] sm:$0xff]
      %v2058 = vld [vmem:[%s179 + $0x30] sm:$0xff]
      %v2059 = vld [vmem:[%s179 + $0x38] sm:$0xff]
      %v2060 = vld [vmem:[%s179 + $0x40] sm:$0xff]
      %v2061 = vld [vmem:[%s179 + $0x48] sm:$0xff]
      %v2062 = vld [vmem:[%s179 + $0x50] sm:$0xff]
      %v2063 = vld [vmem:[%s179 + $0x58] sm:$0xff]
      %v2064 = vld [vmem:[%s179 + $0x60] sm:$0xff]
      %v2065 = vld [vmem:[%s179 + $0x68] sm:$0xff]
      %v2066 = vld [vmem:[%s179 + $0x70] sm:$0xff]
      %v2067 = vld [vmem:[%s179 + $0x78] sm:$0xff]
      %v2068 = vld [vmem:[%s179 + $0x80] sm:$0xff]
      %v2069 = vld [vmem:[%s179 + $0x88] sm:$0xff]
      %v2070 = vld [vmem:[%s179 + $0x90] sm:$0xff]
      %v2071 = vld [vmem:[%s179 + $0x98] sm:$0xff]
      %v2072 = vld [vmem:[%s179 + $0xa0] sm:$0xff]
      %v2073 = vld [vmem:[%s179 + $0xa8] sm:$0xff]
      %v2074 = vld [vmem:[%s179 + $0xb0] sm:$0xff]
      %v2075 = vld [vmem:[%s179 + $0xb8] sm:$0xff]
      %v2076 = vld [vmem:[%s179 + $0xc0] sm:$0xff]
      %v2077 = vld [vmem:[%s179 + $0xc8] sm:$0xff]
      %v2078 = vld [vmem:[%s179 + $0xd0] sm:$0xff]
      %v2079 = vld [vmem:[%s179 + $0xd8] sm:$0xff]
      %v2080 = vld [vmem:[%s179 + $0xe0] sm:$0xff]
      %v2081 = vld [vmem:[%s179 + $0xe8] sm:$0xff]
      %v2082 = vld [vmem:[%s179 + $0xf0] sm:$0xff]
      %v2083 = vld [vmem:[%s179 + $0xf8] sm:$0xff]
      %v2084 = vlaneseq
      %v2085 = vshrl.u32 %v2084, 7
      %v2086 = vsub.s32 2, %v2085
      %v2087 = vrot.slane %v227, %v2086
      %v2088 = vmul.f32 %v2052, %v2087
      %v2089 = vmul.f32 %v2053, %v2087
      %v2090 = vmul.f32 %v2054, %v2087
      %v2091 = vmul.f32 %v2055, %v2087
      %v2092 = vmul.f32 %v2056, %v2087
      %v2093 = vmul.f32 %v2057, %v2087
      %v2094 = vmul.f32 %v2058, %v2087
      %v2095 = vmul.f32 %v2059, %v2087
      %v2096 = vmul.f32 %v2060, %v2087
      %v2097 = vmul.f32 %v2061, %v2087
      %v2098 = vmul.f32 %v2062, %v2087
      %v2099 = vmul.f32 %v2063, %v2087
      %v2100 = vmul.f32 %v2064, %v2087
      %v2101 = vmul.f32 %v2065, %v2087
      %v2102 = vmul.f32 %v2066, %v2087
      %v2103 = vmul.f32 %v2067, %v2087
      %v2104 = vmul.f32 %v2068, %v2087
      %v2105 = vmul.f32 %v2069, %v2087
      %v2106 = vmul.f32 %v2070, %v2087
      %v2107 = vmul.f32 %v2071, %v2087
      %v2108 = vmul.f32 %v2072, %v2087
      %v2109 = vmul.f32 %v2073, %v2087
      %v2110 = vmul.f32 %v2074, %v2087
      %v2111 = vmul.f32 %v2075, %v2087
      %v2112 = vmul.f32 %v2076, %v2087
      %v2113 = vmul.f32 %v2077, %v2087
      %v2114 = vmul.f32 %v2078, %v2087
      %v2115 = vmul.f32 %v2079, %v2087
      %v2116 = vmul.f32 %v2080, %v2087
      %v2117 = vmul.f32 %v2081, %v2087
      %v2118 = vmul.f32 %v2082, %v2087
      %v2119 = vmul.f32 %v2083, %v2087
      %v2120 = vld [vmem:[#allocation2] sm:$0xff]
      %v2121 = vld [vmem:[#allocation2 + $0x8] sm:$0xff]
      %v2122 = vld [vmem:[#allocation2 + $0x10] sm:$0xff]
      %v2123 = vld [vmem:[#allocation2 + $0x18] sm:$0xff]
      %v2124 = vld [vmem:[#allocation2 + $0x20] sm:$0xff]
      %v2125 = vld [vmem:[#allocation2 + $0x28] sm:$0xff]
      %v2126 = vld [vmem:[#allocation2 + $0x30] sm:$0xff]
      %v2127 = vld [vmem:[#allocation2 + $0x38] sm:$0xff]
      %v2128 = vld [vmem:[#allocation2 + $0x40] sm:$0xff]
      %v2129 = vld [vmem:[#allocation2 + $0x48] sm:$0xff]
      %v2130 = vld [vmem:[#allocation2 + $0x50] sm:$0xff]
      %v2131 = vld [vmem:[#allocation2 + $0x58] sm:$0xff]
      %v2132 = vld [vmem:[#allocation2 + $0x60] sm:$0xff]
      %v2133 = vld [vmem:[#allocation2 + $0x68] sm:$0xff]
      %v2134 = vld [vmem:[#allocation2 + $0x70] sm:$0xff]
      %v2135 = vld [vmem:[#allocation2 + $0x78] sm:$0xff]
      %v2136 = vld [vmem:[#allocation2 + $0x80] sm:$0xff]
      %v2137 = vld [vmem:[#allocation2 + $0x88] sm:$0xff]
      %v2138 = vld [vmem:[#allocation2 + $0x90] sm:$0xff]
      %v2139 = vld [vmem:[#allocation2 + $0x98] sm:$0xff]
      %v2140 = vld [vmem:[#allocation2 + $0xa0] sm:$0xff]
      %v2141 = vld [vmem:[#allocation2 + $0xa8] sm:$0xff]
      %v2142 = vld [vmem:[#allocation2 + $0xb0] sm:$0xff]
      %v2143 = vld [vmem:[#allocation2 + $0xb8] sm:$0xff]
      %v2144 = vld [vmem:[#allocation2 + $0xc0] sm:$0xff]
      %v2145 = vld [vmem:[#allocation2 + $0xc8] sm:$0xff]
      %v2146 = vld [vmem:[#allocation2 + $0xd0] sm:$0xff]
      %v2147 = vld [vmem:[#allocation2 + $0xd8] sm:$0xff]
      %v2148 = vld [vmem:[#allocation2 + $0xe0] sm:$0xff]
      %v2149 = vld [vmem:[#allocation2 + $0xe8] sm:$0xff]
      %v2150 = vld [vmem:[#allocation2 + $0xf0] sm:$0xff]
      %v2151 = vld [vmem:[#allocation2 + $0xf8] sm:$0xff]
      %v2152 = vadd.f32 %v2120, %v2088
      %v2153 = vadd.f32 %v2121, %v2089
      %v2154 = vadd.f32 %v2122, %v2090
      %v2155 = vadd.f32 %v2123, %v2091
      %v2156 = vadd.f32 %v2124, %v2092
      %v2157 = vadd.f32 %v2125, %v2093
      %v2158 = vadd.f32 %v2126, %v2094
      %v2159 = vadd.f32 %v2127, %v2095
      %v2160 = vadd.f32 %v2128, %v2096
      %v2161 = vadd.f32 %v2129, %v2097
      %v2162 = vadd.f32 %v2130, %v2098
      %v2163 = vadd.f32 %v2131, %v2099
      %v2164 = vadd.f32 %v2132, %v2100
      %v2165 = vadd.f32 %v2133, %v2101
      %v2166 = vadd.f32 %v2134, %v2102
      %v2167 = vadd.f32 %v2135, %v2103
      %v2168 = vadd.f32 %v2136, %v2104
      %v2169 = vadd.f32 %v2137, %v2105
      %v2170 = vadd.f32 %v2138, %v2106
      %v2171 = vadd.f32 %v2139, %v2107
      %v2172 = vadd.f32 %v2140, %v2108
      %v2173 = vadd.f32 %v2141, %v2109
      %v2174 = vadd.f32 %v2142, %v2110
      %v2175 = vadd.f32 %v2143, %v2111
      %v2176 = vadd.f32 %v2144, %v2112
      %v2177 = vadd.f32 %v2145, %v2113
      %v2178 = vadd.f32 %v2146, %v2114
      %v2179 = vadd.f32 %v2147, %v2115
      %v2180 = vadd.f32 %v2148, %v2116
      %v2181 = vadd.f32 %v2149, %v2117
      %v2182 = vadd.f32 %v2150, %v2118
      %v2183 = vadd.f32 %v2151, %v2119
      %2184 = vst.msk [vmem:[#allocation2] sm:$0xff] %vm192, %v2152
      %2185 = vst.msk [vmem:[#allocation2 + $0x8] sm:$0xff] %vm192, %v2153
      %2186 = vst.msk [vmem:[#allocation2 + $0x10] sm:$0xff] %vm192, %v2154
      %2187 = vst.msk [vmem:[#allocation2 + $0x18] sm:$0xff] %vm192, %v2155
      %2188 = vst.msk [vmem:[#allocation2 + $0x20] sm:$0xff] %vm192, %v2156
      %2189 = vst.msk [vmem:[#allocation2 + $0x28] sm:$0xff] %vm192, %v2157
      %2190 = vst.msk [vmem:[#allocation2 + $0x30] sm:$0xff] %vm192, %v2158
      %2191 = vst.msk [vmem:[#allocation2 + $0x38] sm:$0xff] %vm192, %v2159
      %2192 = vst.msk [vmem:[#allocation2 + $0x40] sm:$0xff] %vm192, %v2160
      %2193 = vst.msk [vmem:[#allocation2 + $0x48] sm:$0xff] %vm192, %v2161
      %2194 = vst.msk [vmem:[#allocation2 + $0x50] sm:$0xff] %vm192, %v2162
      %2195 = vst.msk [vmem:[#allocation2 + $0x58] sm:$0xff] %vm192, %v2163
      %2196 = vst.msk [vmem:[#allocation2 + $0x60] sm:$0xff] %vm192, %v2164
      %2197 = vst.msk [vmem:[#allocation2 + $0x68] sm:$0xff] %vm192, %v2165
      %2198 = vst.msk [vmem:[#allocation2 + $0x70] sm:$0xff] %vm192, %v2166
      %2199 = vst.msk [vmem:[#allocation2 + $0x78] sm:$0xff] %vm192, %v2167
      %2200 = vst.msk [vmem:[#allocation2 + $0x80] sm:$0xff] %vm192, %v2168
      %2201 = vst.msk [vmem:[#allocation2 + $0x88] sm:$0xff] %vm192, %v2169
      %2202 = vst.msk [vmem:[#allocation2 + $0x90] sm:$0xff] %vm192, %v2170
      %2203 = vst.msk [vmem:[#allocation2 + $0x98] sm:$0xff] %vm192, %v2171
      %2204 = vst.msk [vmem:[#allocation2 + $0xa0] sm:$0xff] %vm192, %v2172
      %2205 = vst.msk [vmem:[#allocation2 + $0xa8] sm:$0xff] %vm192, %v2173
      %2206 = vst.msk [vmem:[#allocation2 + $0xb0] sm:$0xff] %vm192, %v2174
      %2207 = vst.msk [vmem:[#allocation2 + $0xb8] sm:$0xff] %vm192, %v2175
      %2208 = vst.msk [vmem:[#allocation2 + $0xc0] sm:$0xff] %vm192, %v2176
      %2209 = vst.msk [vmem:[#allocation2 + $0xc8] sm:$0xff] %vm192, %v2177
      %2210 = vst.msk [vmem:[#allocation2 + $0xd0] sm:$0xff] %vm192, %v2178
      %2211 = vst.msk [vmem:[#allocation2 + $0xd8] sm:$0xff] %vm192, %v2179
      %2212 = vst.msk [vmem:[#allocation2 + $0xe0] sm:$0xff] %vm192, %v2180
      %2213 = vst.msk [vmem:[#allocation2 + $0xe8] sm:$0xff] %vm192, %v2181
      %2214 = vst.msk [vmem:[#allocation2 + $0xf0] sm:$0xff] %vm192, %v2182
      %2215 = vst.msk [vmem:[#allocation2 + $0xf8] sm:$0xff] %vm192, %v2183
      %v2216 = vld [vmem:[%s179 + $0x1] sm:$0xff]
      %v2217 = vld [vmem:[%s179 + $0x9] sm:$0x7f]
      %v2218 = vld [vmem:[%s179 + $0x11] sm:$0xff]
      %v2219 = vld [vmem:[%s179 + $0x19] sm:$0x7f]
      %v2220 = vld [vmem:[%s179 + $0x21] sm:$0xff]
      %v2221 = vld [vmem:[%s179 + $0x29] sm:$0x7f]
      %v2222 = vld [vmem:[%s179 + $0x31] sm:$0xff]
      %v2223 = vld [vmem:[%s179 + $0x39] sm:$0x7f]
      %v2224 = vld [vmem:[%s179 + $0x41] sm:$0xff]
      %v2225 = vld [vmem:[%s179 + $0x49] sm:$0x7f]
      %v2226 = vld [vmem:[%s179 + $0x51] sm:$0xff]
      %v2227 = vld [vmem:[%s179 + $0x59] sm:$0x7f]
      %v2228 = vld [vmem:[%s179 + $0x61] sm:$0xff]
      %v2229 = vld [vmem:[%s179 + $0x69] sm:$0x7f]
      %v2230 = vld [vmem:[%s179 + $0x71] sm:$0xff]
      %v2231 = vld [vmem:[%s179 + $0x79] sm:$0x7f]
      %v2232 = vld [vmem:[%s179 + $0x81] sm:$0xff]
      %v2233 = vld [vmem:[%s179 + $0x89] sm:$0x7f]
      %v2234 = vld [vmem:[%s179 + $0x91] sm:$0xff]
      %v2235 = vld [vmem:[%s179 + $0x99] sm:$0x7f]
      %v2236 = vld [vmem:[%s179 + $0xa1] sm:$0xff]
      %v2237 = vld [vmem:[%s179 + $0xa9] sm:$0x7f]
      %v2238 = vld [vmem:[%s179 + $0xb1] sm:$0xff]
      %v2239 = vld [vmem:[%s179 + $0xb9] sm:$0x7f]
      %v2240 = vld [vmem:[%s179 + $0xc1] sm:$0xff]
      %v2241 = vld [vmem:[%s179 + $0xc9] sm:$0x7f]
      %v2242 = vld [vmem:[%s179 + $0xd1] sm:$0xff]
      %v2243 = vld [vmem:[%s179 + $0xd9] sm:$0x7f]
      %v2244 = vld [vmem:[%s179 + $0xe1] sm:$0xff]
      %v2245 = vld [vmem:[%s179 + $0xe9] sm:$0x7f]
      %v2246 = vld [vmem:[%s179 + $0xf1] sm:$0xff]
      %v2247 = vld [vmem:[%s179 + $0xf9] sm:$0x7f]
      %v2248 = vlaneseq
      %v2249 = vshrl.u32 %v2248, 7
      %v2250 = vsub.s32 3, %v2249
      %v2251 = vrot.slane %v227, %v2250
      %v2252 = vmul.f32 %v2216, %v2251
      %v2253 = vmul.f32 %v2217, %v2251
      %v2254 = vmul.f32 %v2218, %v2251
      %v2255 = vmul.f32 %v2219, %v2251
      %v2256 = vmul.f32 %v2220, %v2251
      %v2257 = vmul.f32 %v2221, %v2251
      %v2258 = vmul.f32 %v2222, %v2251
      %v2259 = vmul.f32 %v2223, %v2251
      %v2260 = vmul.f32 %v2224, %v2251
      %v2261 = vmul.f32 %v2225, %v2251
      %v2262 = vmul.f32 %v2226, %v2251
      %v2263 = vmul.f32 %v2227, %v2251
      %v2264 = vmul.f32 %v2228, %v2251
      %v2265 = vmul.f32 %v2229, %v2251
      %v2266 = vmul.f32 %v2230, %v2251
      %v2267 = vmul.f32 %v2231, %v2251
      %v2268 = vmul.f32 %v2232, %v2251
      %v2269 = vmul.f32 %v2233, %v2251
      %v2270 = vmul.f32 %v2234, %v2251
      %v2271 = vmul.f32 %v2235, %v2251
      %v2272 = vmul.f32 %v2236, %v2251
      %v2273 = vmul.f32 %v2237, %v2251
      %v2274 = vmul.f32 %v2238, %v2251
      %v2275 = vmul.f32 %v2239, %v2251
      %v2276 = vmul.f32 %v2240, %v2251
      %v2277 = vmul.f32 %v2241, %v2251
      %v2278 = vmul.f32 %v2242, %v2251
      %v2279 = vmul.f32 %v2243, %v2251
      %v2280 = vmul.f32 %v2244, %v2251
      %v2281 = vmul.f32 %v2245, %v2251
      %v2282 = vmul.f32 %v2246, %v2251
      %v2283 = vmul.f32 %v2247, %v2251
      %v2284 = vld [vmem:[#allocation2] sm:$0xff]
      %v2285 = vld [vmem:[#allocation2 + $0x8] sm:$0x7f]
      %v2286 = vld [vmem:[#allocation2 + $0x10] sm:$0xff]
      %v2287 = vld [vmem:[#allocation2 + $0x18] sm:$0x7f]
      %v2288 = vld [vmem:[#allocation2 + $0x20] sm:$0xff]
      %v2289 = vld [vmem:[#allocation2 + $0x28] sm:$0x7f]
      %v2290 = vld [vmem:[#allocation2 + $0x30] sm:$0xff]
      %v2291 = vld [vmem:[#allocation2 + $0x38] sm:$0x7f]
      %v2292 = vld [vmem:[#allocation2 + $0x40] sm:$0xff]
      %v2293 = vld [vmem:[#allocation2 + $0x48] sm:$0x7f]
      %v2294 = vld [vmem:[#allocation2 + $0x50] sm:$0xff]
      %v2295 = vld [vmem:[#allocation2 + $0x58] sm:$0x7f]
      %v2296 = vld [vmem:[#allocation2 + $0x60] sm:$0xff]
      %v2297 = vld [vmem:[#allocation2 + $0x68] sm:$0x7f]
      %v2298 = vld [vmem:[#allocation2 + $0x70] sm:$0xff]
      %v2299 = vld [vmem:[#allocation2 + $0x78] sm:$0x7f]
      %v2300 = vld [vmem:[#allocation2 + $0x80] sm:$0xff]
      %v2301 = vld [vmem:[#allocation2 + $0x88] sm:$0x7f]
      %v2302 = vld [vmem:[#allocation2 + $0x90] sm:$0xff]
      %v2303 = vld [vmem:[#allocation2 + $0x98] sm:$0x7f]
      %v2304 = vld [vmem:[#allocation2 + $0xa0] sm:$0xff]
      %v2305 = vld [vmem:[#allocation2 + $0xa8] sm:$0x7f]
      %v2306 = vld [vmem:[#allocation2 + $0xb0] sm:$0xff]
      %v2307 = vld [vmem:[#allocation2 + $0xb8] sm:$0x7f]
      %v2308 = vld [vmem:[#allocation2 + $0xc0] sm:$0xff]
      %v2309 = vld [vmem:[#allocation2 + $0xc8] sm:$0x7f]
      %v2310 = vld [vmem:[#allocation2 + $0xd0] sm:$0xff]
      %v2311 = vld [vmem:[#allocation2 + $0xd8] sm:$0x7f]
      %v2312 = vld [vmem:[#allocation2 + $0xe0] sm:$0xff]
      %v2313 = vld [vmem:[#allocation2 + $0xe8] sm:$0x7f]
      %v2314 = vld [vmem:[#allocation2 + $0xf0] sm:$0xff]
      %v2315 = vld [vmem:[#allocation2 + $0xf8] sm:$0x7f]
      %v2316 = vadd.f32 %v2284, %v2252
      %v2317 = vadd.f32 %v2285, %v2253
      %v2318 = vadd.f32 %v2286, %v2254
      %v2319 = vadd.f32 %v2287, %v2255
      %v2320 = vadd.f32 %v2288, %v2256
      %v2321 = vadd.f32 %v2289, %v2257
      %v2322 = vadd.f32 %v2290, %v2258
      %v2323 = vadd.f32 %v2291, %v2259
      %v2324 = vadd.f32 %v2292, %v2260
      %v2325 = vadd.f32 %v2293, %v2261
      %v2326 = vadd.f32 %v2294, %v2262
      %v2327 = vadd.f32 %v2295, %v2263
      %v2328 = vadd.f32 %v2296, %v2264
      %v2329 = vadd.f32 %v2297, %v2265
      %v2330 = vadd.f32 %v2298, %v2266
      %v2331 = vadd.f32 %v2299, %v2267
      %v2332 = vadd.f32 %v2300, %v2268
      %v2333 = vadd.f32 %v2301, %v2269
      %v2334 = vadd.f32 %v2302, %v2270
      %v2335 = vadd.f32 %v2303, %v2271
      %v2336 = vadd.f32 %v2304, %v2272
      %v2337 = vadd.f32 %v2305, %v2273
      %v2338 = vadd.f32 %v2306, %v2274
      %v2339 = vadd.f32 %v2307, %v2275
      %v2340 = vadd.f32 %v2308, %v2276
      %v2341 = vadd.f32 %v2309, %v2277
      %v2342 = vadd.f32 %v2310, %v2278
      %v2343 = vadd.f32 %v2311, %v2279
      %v2344 = vadd.f32 %v2312, %v2280
      %v2345 = vadd.f32 %v2313, %v2281
      %v2346 = vadd.f32 %v2314, %v2282
      %v2347 = vadd.f32 %v2315, %v2283
      %2348 = vst.msk [vmem:[#allocation2] sm:$0xff] %vm192, %v2316
      %2349 = vst.msk [vmem:[#allocation2 + $0x8] sm:$0x7f] %vm493, %v2317
      %2350 = vst.msk [vmem:[#allocation2 + $0x10] sm:$0xff] %vm192, %v2318
      %2351 = vst.msk [vmem:[#allocation2 + $0x18] sm:$0x7f] %vm493, %v2319
      %2352 = vst.msk [vmem:[#allocation2 + $0x20] sm:$0xff] %vm192, %v2320
      %2353 = vst.msk [vmem:[#allocation2 + $0x28] sm:$0x7f] %vm493, %v2321
      %2354 = vst.msk [vmem:[#allocation2 + $0x30] sm:$0xff] %vm192, %v2322
      %2355 = vst.msk [vmem:[#allocation2 + $0x38] sm:$0x7f] %vm493, %v2323
      %2356 = vst.msk [vmem:[#allocation2 + $0x40] sm:$0xff] %vm192, %v2324
      %2357 = vst.msk [vmem:[#allocation2 + $0x48] sm:$0x7f] %vm493, %v2325
      %2358 = vst.msk [vmem:[#allocation2 + $0x50] sm:$0xff] %vm192, %v2326
      %2359 = vst.msk [vmem:[#allocation2 + $0x58] sm:$0x7f] %vm493, %v2327
      %2360 = vst.msk [vmem:[#allocation2 + $0x60] sm:$0xff] %vm192, %v2328
      %2361 = vst.msk [vmem:[#allocation2 + $0x68] sm:$0x7f] %vm493, %v2329
      %2362 = vst.msk [vmem:[#allocation2 + $0x70] sm:$0xff] %vm192, %v2330
      %2363 = vst.msk [vmem:[#allocation2 + $0x78] sm:$0x7f] %vm493, %v2331
      %2364 = vst.msk [vmem:[#allocation2 + $0x80] sm:$0xff] %vm192, %v2332
      %2365 = vst.msk [vmem:[#allocation2 + $0x88] sm:$0x7f] %vm493, %v2333
      %2366 = vst.msk [vmem:[#allocation2 + $0x90] sm:$0xff] %vm192, %v2334
      %2367 = vst.msk [vmem:[#allocation2 + $0x98] sm:$0x7f] %vm493, %v2335
      %2368 = vst.msk [vmem:[#allocation2 + $0xa0] sm:$0xff] %vm192, %v2336
      %2369 = vst.msk [vmem:[#allocation2 + $0xa8] sm:$0x7f] %vm493, %v2337
      %2370 = vst.msk [vmem:[#allocation2 + $0xb0] sm:$0xff] %vm192, %v2338
      %2371 = vst.msk [vmem:[#allocation2 + $0xb8] sm:$0x7f] %vm493, %v2339
      %2372 = vst.msk [vmem:[#allocation2 + $0xc0] sm:$0xff] %vm192, %v2340
      %2373 = vst.msk [vmem:[#allocation2 + $0xc8] sm:$0x7f] %vm493, %v2341
      %2374 = vst.msk [vmem:[#allocation2 + $0xd0] sm:$0xff] %vm192, %v2342
      %2375 = vst.msk [vmem:[#allocation2 + $0xd8] sm:$0x7f] %vm493, %v2343
      %2376 = vst.msk [vmem:[#allocation2 + $0xe0] sm:$0xff] %vm192, %v2344
      %2377 = vst.msk [vmem:[#allocation2 + $0xe8] sm:$0x7f] %vm493, %v2345
      %2378 = vst.msk [vmem:[#allocation2 + $0xf0] sm:$0xff] %vm192, %v2346
      %2379 = vst.msk [vmem:[#allocation2 + $0xf8] sm:$0x7f] %vm493, %v2347
      %v2380 = vld [vmem:[%s179 + $0x2] sm:$0xff]
      %v2381 = vld [vmem:[%s179 + $0xa] sm:$0x3f]
      %v2382 = vld [vmem:[%s179 + $0x12] sm:$0xff]
      %v2383 = vld [vmem:[%s179 + $0x1a] sm:$0x3f]
      %v2384 = vld [vmem:[%s179 + $0x22] sm:$0xff]
      %v2385 = vld [vmem:[%s179 + $0x2a] sm:$0x3f]
      %v2386 = vld [vmem:[%s179 + $0x32] sm:$0xff]
      %v2387 = vld [vmem:[%s179 + $0x3a] sm:$0x3f]
      %v2388 = vld [vmem:[%s179 + $0x42] sm:$0xff]
      %v2389 = vld [vmem:[%s179 + $0x4a] sm:$0x3f]
      %v2390 = vld [vmem:[%s179 + $0x52] sm:$0xff]
      %v2391 = vld [vmem:[%s179 + $0x5a] sm:$0x3f]
      %v2392 = vld [vmem:[%s179 + $0x62] sm:$0xff]
      %v2393 = vld [vmem:[%s179 + $0x6a] sm:$0x3f]
      %v2394 = vld [vmem:[%s179 + $0x72] sm:$0xff]
      %v2395 = vld [vmem:[%s179 + $0x7a] sm:$0x3f]
      %v2396 = vld [vmem:[%s179 + $0x82] sm:$0xff]
      %v2397 = vld [vmem:[%s179 + $0x8a] sm:$0x3f]
      %v2398 = vld [vmem:[%s179 + $0x92] sm:$0xff]
      %v2399 = vld [vmem:[%s179 + $0x9a] sm:$0x3f]
      %v2400 = vld [vmem:[%s179 + $0xa2] sm:$0xff]
      %v2401 = vld [vmem:[%s179 + $0xaa] sm:$0x3f]
      %v2402 = vld [vmem:[%s179 + $0xb2] sm:$0xff]
      %v2403 = vld [vmem:[%s179 + $0xba] sm:$0x3f]
      %v2404 = vld [vmem:[%s179 + $0xc2] sm:$0xff]
      %v2405 = vld [vmem:[%s179 + $0xca] sm:$0x3f]
      %v2406 = vld [vmem:[%s179 + $0xd2] sm:$0xff]
      %v2407 = vld [vmem:[%s179 + $0xda] sm:$0x3f]
      %v2408 = vld [vmem:[%s179 + $0xe2] sm:$0xff]
      %v2409 = vld [vmem:[%s179 + $0xea] sm:$0x3f]
      %v2410 = vld [vmem:[%s179 + $0xf2] sm:$0xff]
      %v2411 = vld [vmem:[%s179 + $0xfa] sm:$0x3f]
      %v2412 = vlaneseq
      %v2413 = vshrl.u32 %v2412, 7
      %v2414 = vsub.s32 4, %v2413
      %v2415 = vrot.slane %v227, %v2414
      %v2416 = vmul.f32 %v2380, %v2415
      %v2417 = vmul.f32 %v2381, %v2415
      %v2418 = vmul.f32 %v2382, %v2415
      %v2419 = vmul.f32 %v2383, %v2415
      %v2420 = vmul.f32 %v2384, %v2415
      %v2421 = vmul.f32 %v2385, %v2415
      %v2422 = vmul.f32 %v2386, %v2415
      %v2423 = vmul.f32 %v2387, %v2415
      %v2424 = vmul.f32 %v2388, %v2415
      %v2425 = vmul.f32 %v2389, %v2415
      %v2426 = vmul.f32 %v2390, %v2415
      %v2427 = vmul.f32 %v2391, %v2415
      %v2428 = vmul.f32 %v2392, %v2415
      %v2429 = vmul.f32 %v2393, %v2415
      %v2430 = vmul.f32 %v2394, %v2415
      %v2431 = vmul.f32 %v2395, %v2415
      %v2432 = vmul.f32 %v2396, %v2415
      %v2433 = vmul.f32 %v2397, %v2415
      %v2434 = vmul.f32 %v2398, %v2415
      %v2435 = vmul.f32 %v2399, %v2415
      %v2436 = vmul.f32 %v2400, %v2415
      %v2437 = vmul.f32 %v2401, %v2415
      %v2438 = vmul.f32 %v2402, %v2415
      %v2439 = vmul.f32 %v2403, %v2415
      %v2440 = vmul.f32 %v2404, %v2415
      %v2441 = vmul.f32 %v2405, %v2415
      %v2442 = vmul.f32 %v2406, %v2415
      %v2443 = vmul.f32 %v2407, %v2415
      %v2444 = vmul.f32 %v2408, %v2415
      %v2445 = vmul.f32 %v2409, %v2415
      %v2446 = vmul.f32 %v2410, %v2415
      %v2447 = vmul.f32 %v2411, %v2415
      %v2448 = vld [vmem:[#allocation2] sm:$0xff]
      %v2449 = vld [vmem:[#allocation2 + $0x8] sm:$0x3f]
      %v2450 = vld [vmem:[#allocation2 + $0x10] sm:$0xff]
      %v2451 = vld [vmem:[#allocation2 + $0x18] sm:$0x3f]
      %v2452 = vld [vmem:[#allocation2 + $0x20] sm:$0xff]
      %v2453 = vld [vmem:[#allocation2 + $0x28] sm:$0x3f]
      %v2454 = vld [vmem:[#allocation2 + $0x30] sm:$0xff]
      %v2455 = vld [vmem:[#allocation2 + $0x38] sm:$0x3f]
      %v2456 = vld [vmem:[#allocation2 + $0x40] sm:$0xff]
      %v2457 = vld [vmem:[#allocation2 + $0x48] sm:$0x3f]
      %v2458 = vld [vmem:[#allocation2 + $0x50] sm:$0xff]
      %v2459 = vld [vmem:[#allocation2 + $0x58] sm:$0x3f]
      %v2460 = vld [vmem:[#allocation2 + $0x60] sm:$0xff]
      %v2461 = vld [vmem:[#allocation2 + $0x68] sm:$0x3f]
      %v2462 = vld [vmem:[#allocation2 + $0x70] sm:$0xff]
      %v2463 = vld [vmem:[#allocation2 + $0x78] sm:$0x3f]
      %v2464 = vld [vmem:[#allocation2 + $0x80] sm:$0xff]
      %v2465 = vld [vmem:[#allocation2 + $0x88] sm:$0x3f]
      %v2466 = vld [vmem:[#allocation2 + $0x90] sm:$0xff]
      %v2467 = vld [vmem:[#allocation2 + $0x98] sm:$0x3f]
      %v2468 = vld [vmem:[#allocation2 + $0xa0] sm:$0xff]
      %v2469 = vld [vmem:[#allocation2 + $0xa8] sm:$0x3f]
      %v2470 = vld [vmem:[#allocation2 + $0xb0] sm:$0xff]
      %v2471 = vld [vmem:[#allocation2 + $0xb8] sm:$0x3f]
      %v2472 = vld [vmem:[#allocation2 + $0xc0] sm:$0xff]
      %v2473 = vld [vmem:[#allocation2 + $0xc8] sm:$0x3f]
      %v2474 = vld [vmem:[#allocation2 + $0xd0] sm:$0xff]
      %v2475 = vld [vmem:[#allocation2 + $0xd8] sm:$0x3f]
      %v2476 = vld [vmem:[#allocation2 + $0xe0] sm:$0xff]
      %v2477 = vld [vmem:[#allocation2 + $0xe8] sm:$0x3f]
      %v2478 = vld [vmem:[#allocation2 + $0xf0] sm:$0xff]
      %v2479 = vld [vmem:[#allocation2 + $0xf8] sm:$0x3f]
      %v2480 = vadd.f32 %v2448, %v2416
      %v2481 = vadd.f32 %v2449, %v2417
      %v2482 = vadd.f32 %v2450, %v2418
      %v2483 = vadd.f32 %v2451, %v2419
      %v2484 = vadd.f32 %v2452, %v2420
      %v2485 = vadd.f32 %v2453, %v2421
      %v2486 = vadd.f32 %v2454, %v2422
      %v2487 = vadd.f32 %v2455, %v2423
      %v2488 = vadd.f32 %v2456, %v2424
      %v2489 = vadd.f32 %v2457, %v2425
      %v2490 = vadd.f32 %v2458, %v2426
      %v2491 = vadd.f32 %v2459, %v2427
      %v2492 = vadd.f32 %v2460, %v2428
      %v2493 = vadd.f32 %v2461, %v2429
      %v2494 = vadd.f32 %v2462, %v2430
      %v2495 = vadd.f32 %v2463, %v2431
      %v2496 = vadd.f32 %v2464, %v2432
      %v2497 = vadd.f32 %v2465, %v2433
      %v2498 = vadd.f32 %v2466, %v2434
      %v2499 = vadd.f32 %v2467, %v2435
      %v2500 = vadd.f32 %v2468, %v2436
      %v2501 = vadd.f32 %v2469, %v2437
      %v2502 = vadd.f32 %v2470, %v2438
      %v2503 = vadd.f32 %v2471, %v2439
      %v2504 = vadd.f32 %v2472, %v2440
      %v2505 = vadd.f32 %v2473, %v2441
      %v2506 = vadd.f32 %v2474, %v2442
      %v2507 = vadd.f32 %v2475, %v2443
      %v2508 = vadd.f32 %v2476, %v2444
      %v2509 = vadd.f32 %v2477, %v2445
      %v2510 = vadd.f32 %v2478, %v2446
      %v2511 = vadd.f32 %v2479, %v2447
      %2512 = vst.msk [vmem:[#allocation2] sm:$0xff] %vm192, %v2480
      %2513 = vst.msk [vmem:[#allocation2 + $0x8] sm:$0x3f] %vm348, %v2481
      %2514 = vst.msk [vmem:[#allocation2 + $0x10] sm:$0xff] %vm192, %v2482
      %2515 = vst.msk [vmem:[#allocation2 + $0x18] sm:$0x3f] %vm348, %v2483
      %2516 = vst.msk [vmem:[#allocation2 + $0x20] sm:$0xff] %vm192, %v2484
      %2517 = vst.msk [vmem:[#allocation2 + $0x28] sm:$0x3f] %vm348, %v2485
      %2518 = vst.msk [vmem:[#allocation2 + $0x30] sm:$0xff] %vm192, %v2486
      %2519 = vst.msk [vmem:[#allocation2 + $0x38] sm:$0x3f] %vm348, %v2487
      %2520 = vst.msk [vmem:[#allocation2 + $0x40] sm:$0xff] %vm192, %v2488
      %2521 = vst.msk [vmem:[#allocation2 + $0x48] sm:$0x3f] %vm348, %v2489
      %2522 = vst.msk [vmem:[#allocation2 + $0x50] sm:$0xff] %vm192, %v2490
      %2523 = vst.msk [vmem:[#allocation2 + $0x58] sm:$0x3f] %vm348, %v2491
      %2524 = vst.msk [vmem:[#allocation2 + $0x60] sm:$0xff] %vm192, %v2492
      %2525 = vst.msk [vmem:[#allocation2 + $0x68] sm:$0x3f] %vm348, %v2493
      %2526 = vst.msk [vmem:[#allocation2 + $0x70] sm:$0xff] %vm192, %v2494
      %2527 = vst.msk [vmem:[#allocation2 + $0x78] sm:$0x3f] %vm348, %v2495
      %2528 = vst.msk [vmem:[#allocation2 + $0x80] sm:$0xff] %vm192, %v2496
      %2529 = vst.msk [vmem:[#allocation2 + $0x88] sm:$0x3f] %vm348, %v2497
      %2530 = vst.msk [vmem:[#allocation2 + $0x90] sm:$0xff] %vm192, %v2498
      %2531 = vst.msk [vmem:[#allocation2 + $0x98] sm:$0x3f] %vm348, %v2499
      %2532 = vst.msk [vmem:[#allocation2 + $0xa0] sm:$0xff] %vm192, %v2500
      %2533 = vst.msk [vmem:[#allocation2 + $0xa8] sm:$0x3f] %vm348, %v2501
      %2534 = vst.msk [vmem:[#allocation2 + $0xb0] sm:$0xff] %vm192, %v2502
      %2535 = vst.msk [vmem:[#allocation2 + $0xb8] sm:$0x3f] %vm348, %v2503
      %2536 = vst.msk [vmem:[#allocation2 + $0xc0] sm:$0xff] %vm192, %v2504
      %2537 = vst.msk [vmem:[#allocation2 + $0xc8] sm:$0x3f] %vm348, %v2505
      %2538 = vst.msk [vmem:[#allocation2 + $0xd0] sm:$0xff] %vm192, %v2506
      %2539 = vst.msk [vmem:[#allocation2 + $0xd8] sm:$0x3f] %vm348, %v2507
      %2540 = vst.msk [vmem:[#allocation2 + $0xe0] sm:$0xff] %vm192, %v2508
      %2541 = vst.msk [vmem:[#allocation2 + $0xe8] sm:$0x3f] %vm348, %v2509
      %2542 = vst.msk [vmem:[#allocation2 + $0xf0] sm:$0xff] %vm192, %v2510
      %2543 = vst.msk [vmem:[#allocation2 + $0xf8] sm:$0x3f] %vm348, %v2511
      %s2544 = scalar_lea.vmem %s179, 16
      %v2545 = vld [vmem:[%s2544] sm:$0xff]
      %v2546 = vld [vmem:[%s2544 + $0x8] sm:$0x3f]
      %v2547 = vld [vmem:[%s2544 + $0x10] sm:$0xff]
      %v2548 = vld [vmem:[%s2544 + $0x18] sm:$0x3f]
      %v2549 = vld [vmem:[%s2544 + $0x20] sm:$0xff]
      %v2550 = vld [vmem:[%s2544 + $0x28] sm:$0x3f]
      %v2551 = vld [vmem:[%s2544 + $0x30] sm:$0xff]
      %v2552 = vld [vmem:[%s2544 + $0x38] sm:$0x3f]
      %v2553 = vld [vmem:[%s2544 + $0x40] sm:$0xff]
      %v2554 = vld [vmem:[%s2544 + $0x48] sm:$0x3f]
      %v2555 = vld [vmem:[%s2544 + $0x50] sm:$0xff]
      %v2556 = vld [vmem:[%s2544 + $0x58] sm:$0x3f]
      %v2557 = vld [vmem:[%s2544 + $0x60] sm:$0xff]
      %v2558 = vld [vmem:[%s2544 + $0x68] sm:$0x3f]
      %v2559 = vld [vmem:[%s2544 + $0x70] sm:$0xff]
      %v2560 = vld [vmem:[%s2544 + $0x78] sm:$0x3f]
      %v2561 = vld [vmem:[%s2544 + $0x80] sm:$0xff]
      %v2562 = vld [vmem:[%s2544 + $0x88] sm:$0x3f]
      %v2563 = vld [vmem:[%s2544 + $0x90] sm:$0xff]
      %v2564 = vld [vmem:[%s2544 + $0x98] sm:$0x3f]
      %v2565 = vld [vmem:[%s2544 + $0xa0] sm:$0xff]
      %v2566 = vld [vmem:[%s2544 + $0xa8] sm:$0x3f]
      %v2567 = vld [vmem:[%s2544 + $0xb0] sm:$0xff]
      %v2568 = vld [vmem:[%s2544 + $0xb8] sm:$0x3f]
      %v2569 = vld [vmem:[%s2544 + $0xc0] sm:$0xff]
      %v2570 = vld [vmem:[%s2544 + $0xc8] sm:$0x3f]
      %v2571 = vld [vmem:[%s2544 + $0xd0] sm:$0xff]
      %v2572 = vld [vmem:[%s2544 + $0xd8] sm:$0x3f]
      %v2573 = vld [vmem:[%s2544 + $0xe0] sm:$0xff]
      %v2574 = vld [vmem:[%s2544 + $0xe8] sm:$0x3f]
      %v2575 = vlaneseq
      %v2576 = vshrl.u32 %v2575, 7
      %v2577 = vsub.s32 0, %v2576
      %v2578 = vrot.slane %v228, %v2577
      %v2579 = vmul.f32 %v2545, %v2578
      %v2580 = vmul.f32 %v2546, %v2578
      %v2581 = vmul.f32 %v2547, %v2578
      %v2582 = vmul.f32 %v2548, %v2578
      %v2583 = vmul.f32 %v2549, %v2578
      %v2584 = vmul.f32 %v2550, %v2578
      %v2585 = vmul.f32 %v2551, %v2578
      %v2586 = vmul.f32 %v2552, %v2578
      %v2587 = vmul.f32 %v2553, %v2578
      %v2588 = vmul.f32 %v2554, %v2578
      %v2589 = vmul.f32 %v2555, %v2578
      %v2590 = vmul.f32 %v2556, %v2578
      %v2591 = vmul.f32 %v2557, %v2578
      %v2592 = vmul.f32 %v2558, %v2578
      %v2593 = vmul.f32 %v2559, %v2578
      %v2594 = vmul.f32 %v2560, %v2578
      %v2595 = vmul.f32 %v2561, %v2578
      %v2596 = vmul.f32 %v2562, %v2578
      %v2597 = vmul.f32 %v2563, %v2578
      %v2598 = vmul.f32 %v2564, %v2578
      %v2599 = vmul.f32 %v2565, %v2578
      %v2600 = vmul.f32 %v2566, %v2578
      %v2601 = vmul.f32 %v2567, %v2578
      %v2602 = vmul.f32 %v2568, %v2578
      %v2603 = vmul.f32 %v2569, %v2578
      %v2604 = vmul.f32 %v2570, %v2578
      %v2605 = vmul.f32 %v2571, %v2578
      %v2606 = vmul.f32 %v2572, %v2578
      %v2607 = vmul.f32 %v2573, %v2578
      %v2608 = vmul.f32 %v2574, %v2578
      %v2609 = vld [vmem:[#allocation2 + $0x2] sm:$0xff]
      %v2610 = vld [vmem:[#allocation2 + $0xa] sm:$0x3f]
      %v2611 = vld [vmem:[#allocation2 + $0x12] sm:$0xff]
      %v2612 = vld [vmem:[#allocation2 + $0x1a] sm:$0x3f]
      %v2613 = vld [vmem:[#allocation2 + $0x22] sm:$0xff]
      %v2614 = vld [vmem:[#allocation2 + $0x2a] sm:$0x3f]
      %v2615 = vld [vmem:[#allocation2 + $0x32] sm:$0xff]
      %v2616 = vld [vmem:[#allocation2 + $0x3a] sm:$0x3f]
      %v2617 = vld [vmem:[#allocation2 + $0x42] sm:$0xff]
      %v2618 = vld [vmem:[#allocation2 + $0x4a] sm:$0x3f]
      %v2619 = vld [vmem:[#allocation2 + $0x52] sm:$0xff]
      %v2620 = vld [vmem:[#allocation2 + $0x5a] sm:$0x3f]
      %v2621 = vld [vmem:[#allocation2 + $0x62] sm:$0xff]
      %v2622 = vld [vmem:[#allocation2 + $0x6a] sm:$0x3f]
      %v2623 = vld [vmem:[#allocation2 + $0x72] sm:$0xff]
      %v2624 = vld [vmem:[#allocation2 + $0x7a] sm:$0x3f]
      %v2625 = vld [vmem:[#allocation2 + $0x82] sm:$0xff]
      %v2626 = vld [vmem:[#allocation2 + $0x8a] sm:$0x3f]
      %v2627 = vld [vmem:[#allocation2 + $0x92] sm:$0xff]
      %v2628 = vld [vmem:[#allocation2 + $0x9a] sm:$0x3f]
      %v2629 = vld [vmem:[#allocation2 + $0xa2] sm:$0xff]
      %v2630 = vld [vmem:[#allocation2 + $0xaa] sm:$0x3f]
      %v2631 = vld [vmem:[#allocation2 + $0xb2] sm:$0xff]
      %v2632 = vld [vmem:[#allocation2 + $0xba] sm:$0x3f]
      %v2633 = vld [vmem:[#allocation2 + $0xc2] sm:$0xff]
      %v2634 = vld [vmem:[#allocation2 + $0xca] sm:$0x3f]
      %v2635 = vld [vmem:[#allocation2 + $0xd2] sm:$0xff]
      %v2636 = vld [vmem:[#allocation2 + $0xda] sm:$0x3f]
      %v2637 = vld [vmem:[#allocation2 + $0xe2] sm:$0xff]
      %v2638 = vld [vmem:[#allocation2 + $0xea] sm:$0x3f]
      %v2639 = vadd.f32 %v2609, %v2579
      %v2640 = vadd.f32 %v2610, %v2580
      %v2641 = vadd.f32 %v2611, %v2581
      %v2642 = vadd.f32 %v2612, %v2582
      %v2643 = vadd.f32 %v2613, %v2583
      %v2644 = vadd.f32 %v2614, %v2584
      %v2645 = vadd.f32 %v2615, %v2585
      %v2646 = vadd.f32 %v2616, %v2586
      %v2647 = vadd.f32 %v2617, %v2587
      %v2648 = vadd.f32 %v2618, %v2588
      %v2649 = vadd.f32 %v2619, %v2589
      %v2650 = vadd.f32 %v2620, %v2590
      %v2651 = vadd.f32 %v2621, %v2591
      %v2652 = vadd.f32 %v2622, %v2592
      %v2653 = vadd.f32 %v2623, %v2593
      %v2654 = vadd.f32 %v2624, %v2594
      %v2655 = vadd.f32 %v2625, %v2595
      %v2656 = vadd.f32 %v2626, %v2596
      %v2657 = vadd.f32 %v2627, %v2597
      %v2658 = vadd.f32 %v2628, %v2598
      %v2659 = vadd.f32 %v2629, %v2599
      %v2660 = vadd.f32 %v2630, %v2600
      %v2661 = vadd.f32 %v2631, %v2601
      %v2662 = vadd.f32 %v2632, %v2602
      %v2663 = vadd.f32 %v2633, %v2603
      %v2664 = vadd.f32 %v2634, %v2604
      %v2665 = vadd.f32 %v2635, %v2605
      %v2666 = vadd.f32 %v2636, %v2606
      %v2667 = vadd.f32 %v2637, %v2607
      %v2668 = vadd.f32 %v2638, %v2608
      %2669 = vst.msk [vmem:[#allocation2 + $0x2] sm:$0xff] %vm192, %v2639
      %2670 = vst.msk [vmem:[#allocation2 + $0xa] sm:$0x3f] %vm348, %v2640
      %2671 = vst.msk [vmem:[#allocation2 + $0x12] sm:$0xff] %vm192, %v2641
      %2672 = vst.msk [vmem:[#allocation2 + $0x1a] sm:$0x3f] %vm348, %v2642
      %2673 = vst.msk [vmem:[#allocation2 + $0x22] sm:$0xff] %vm192, %v2643
      %2674 = vst.msk [vmem:[#allocation2 + $0x2a] sm:$0x3f] %vm348, %v2644
      %2675 = vst.msk [vmem:[#allocation2 + $0x32] sm:$0xff] %vm192, %v2645
      %2676 = vst.msk [vmem:[#allocation2 + $0x3a] sm:$0x3f] %vm348, %v2646
      %2677 = vst.msk [vmem:[#allocation2 + $0x42] sm:$0xff] %vm192, %v2647
      %2678 = vst.msk [vmem:[#allocation2 + $0x4a] sm:$0x3f] %vm348, %v2648
      %2679 = vst.msk [vmem:[#allocation2 + $0x52] sm:$0xff] %vm192, %v2649
      %2680 = vst.msk [vmem:[#allocation2 + $0x5a] sm:$0x3f] %vm348, %v2650
      %2681 = vst.msk [vmem:[#allocation2 + $0x62] sm:$0xff] %vm192, %v2651
      %2682 = vst.msk [vmem:[#allocation2 + $0x6a] sm:$0x3f] %vm348, %v2652
      %2683 = vst.msk [vmem:[#allocation2 + $0x72] sm:$0xff] %vm192, %v2653
      %2684 = vst.msk [vmem:[#allocation2 + $0x7a] sm:$0x3f] %vm348, %v2654
      %2685 = vst.msk [vmem:[#allocation2 + $0x82] sm:$0xff] %vm192, %v2655
      %2686 = vst.msk [vmem:[#allocation2 + $0x8a] sm:$0x3f] %vm348, %v2656
      %2687 = vst.msk [vmem:[#allocation2 + $0x92] sm:$0xff] %vm192, %v2657
      %2688 = vst.msk [vmem:[#allocation2 + $0x9a] sm:$0x3f] %vm348, %v2658
      %2689 = vst.msk [vmem:[#allocation2 + $0xa2] sm:$0xff] %vm192, %v2659
      %2690 = vst.msk [vmem:[#allocation2 + $0xaa] sm:$0x3f] %vm348, %v2660
      %2691 = vst.msk [vmem:[#allocation2 + $0xb2] sm:$0xff] %vm192, %v2661
      %2692 = vst.msk [vmem:[#allocation2 + $0xba] sm:$0x3f] %vm348, %v2662
      %2693 = vst.msk [vmem:[#allocation2 + $0xc2] sm:$0xff] %vm192, %v2663
      %2694 = vst.msk [vmem:[#allocation2 + $0xca] sm:$0x3f] %vm348, %v2664
      %2695 = vst.msk [vmem:[#allocation2 + $0xd2] sm:$0xff] %vm192, %v2665
      %2696 = vst.msk [vmem:[#allocation2 + $0xda] sm:$0x3f] %vm348, %v2666
      %2697 = vst.msk [vmem:[#allocation2 + $0xe2] sm:$0xff] %vm192, %v2667
      %2698 = vst.msk [vmem:[#allocation2 + $0xea] sm:$0x3f] %vm348, %v2668
      %v2699 = vld [vmem:[%s2544] sm:$0xff]
      %v2700 = vld [vmem:[%s2544 + $0x8] sm:$0x7f]
      %v2701 = vld [vmem:[%s2544 + $0x10] sm:$0xff]
      %v2702 = vld [vmem:[%s2544 + $0x18] sm:$0x7f]
      %v2703 = vld [vmem:[%s2544 + $0x20] sm:$0xff]
      %v2704 = vld [vmem:[%s2544 + $0x28] sm:$0x7f]
      %v2705 = vld [vmem:[%s2544 + $0x30] sm:$0xff]
      %v2706 = vld [vmem:[%s2544 + $0x38] sm:$0x7f]
      %v2707 = vld [vmem:[%s2544 + $0x40] sm:$0xff]
      %v2708 = vld [vmem:[%s2544 + $0x48] sm:$0x7f]
      %v2709 = vld [vmem:[%s2544 + $0x50] sm:$0xff]
      %v2710 = vld [vmem:[%s2544 + $0x58] sm:$0x7f]
      %v2711 = vld [vmem:[%s2544 + $0x60] sm:$0xff]
      %v2712 = vld [vmem:[%s2544 + $0x68] sm:$0x7f]
      %v2713 = vld [vmem:[%s2544 + $0x70] sm:$0xff]
      %v2714 = vld [vmem:[%s2544 + $0x78] sm:$0x7f]
      %v2715 = vld [vmem:[%s2544 + $0x80] sm:$0xff]
      %v2716 = vld [vmem:[%s2544 + $0x88] sm:$0x7f]
      %v2717 = vld [vmem:[%s2544 + $0x90] sm:$0xff]
      %v2718 = vld [vmem:[%s2544 + $0x98] sm:$0x7f]
      %v2719 = vld [vmem:[%s2544 + $0xa0] sm:$0xff]
      %v2720 = vld [vmem:[%s2544 + $0xa8] sm:$0x7f]
      %v2721 = vld [vmem:[%s2544 + $0xb0] sm:$0xff]
      %v2722 = vld [vmem:[%s2544 + $0xb8] sm:$0x7f]
      %v2723 = vld [vmem:[%s2544 + $0xc0] sm:$0xff]
      %v2724 = vld [vmem:[%s2544 + $0xc8] sm:$0x7f]
      %v2725 = vld [vmem:[%s2544 + $0xd0] sm:$0xff]
      %v2726 = vld [vmem:[%s2544 + $0xd8] sm:$0x7f]
      %v2727 = vld [vmem:[%s2544 + $0xe0] sm:$0xff]
      %v2728 = vld [vmem:[%s2544 + $0xe8] sm:$0x7f]
      %v2729 = vlaneseq
      %v2730 = vshrl.u32 %v2729, 7
      %v2731 = vsub.s32 1, %v2730
      %v2732 = vrot.slane %v228, %v2731
      %v2733 = vmul.f32 %v2699, %v2732
      %v2734 = vmul.f32 %v2700, %v2732
      %v2735 = vmul.f32 %v2701, %v2732
      %v2736 = vmul.f32 %v2702, %v2732
      %v2737 = vmul.f32 %v2703, %v2732
      %v2738 = vmul.f32 %v2704, %v2732
      %v2739 = vmul.f32 %v2705, %v2732
      %v2740 = vmul.f32 %v2706, %v2732
      %v2741 = vmul.f32 %v2707, %v2732
      %v2742 = vmul.f32 %v2708, %v2732
      %v2743 = vmul.f32 %v2709, %v2732
      %v2744 = vmul.f32 %v2710, %v2732
      %v2745 = vmul.f32 %v2711, %v2732
      %v2746 = vmul.f32 %v2712, %v2732
      %v2747 = vmul.f32 %v2713, %v2732
      %v2748 = vmul.f32 %v2714, %v2732
      %v2749 = vmul.f32 %v2715, %v2732
      %v2750 = vmul.f32 %v2716, %v2732
      %v2751 = vmul.f32 %v2717, %v2732
      %v2752 = vmul.f32 %v2718, %v2732
      %v2753 = vmul.f32 %v2719, %v2732
      %v2754 = vmul.f32 %v2720, %v2732
      %v2755 = vmul.f32 %v2721, %v2732
      %v2756 = vmul.f32 %v2722, %v2732
      %v2757 = vmul.f32 %v2723, %v2732
      %v2758 = vmul.f32 %v2724, %v2732
      %v2759 = vmul.f32 %v2725, %v2732
      %v2760 = vmul.f32 %v2726, %v2732
      %v2761 = vmul.f32 %v2727, %v2732
      %v2762 = vmul.f32 %v2728, %v2732
      %v2763 = vld [vmem:[#allocation2 + $0x1] sm:$0xff]
      %v2764 = vld [vmem:[#allocation2 + $0x9] sm:$0x7f]
      %v2765 = vld [vmem:[#allocation2 + $0x11] sm:$0xff]
      %v2766 = vld [vmem:[#allocation2 + $0x19] sm:$0x7f]
      %v2767 = vld [vmem:[#allocation2 + $0x21] sm:$0xff]
      %v2768 = vld [vmem:[#allocation2 + $0x29] sm:$0x7f]
      %v2769 = vld [vmem:[#allocation2 + $0x31] sm:$0xff]
      %v2770 = vld [vmem:[#allocation2 + $0x39] sm:$0x7f]
      %v2771 = vld [vmem:[#allocation2 + $0x41] sm:$0xff]
      %v2772 = vld [vmem:[#allocation2 + $0x49] sm:$0x7f]
      %v2773 = vld [vmem:[#allocation2 + $0x51] sm:$0xff]
      %v2774 = vld [vmem:[#allocation2 + $0x59] sm:$0x7f]
      %v2775 = vld [vmem:[#allocation2 + $0x61] sm:$0xff]
      %v2776 = vld [vmem:[#allocation2 + $0x69] sm:$0x7f]
      %v2777 = vld [vmem:[#allocation2 + $0x71] sm:$0xff]
      %v2778 = vld [vmem:[#allocation2 + $0x79] sm:$0x7f]
      %v2779 = vld [vmem:[#allocation2 + $0x81] sm:$0xff]
      %v2780 = vld [vmem:[#allocation2 + $0x89] sm:$0x7f]
      %v2781 = vld [vmem:[#allocation2 + $0x91] sm:$0xff]
      %v2782 = vld [vmem:[#allocation2 + $0x99] sm:$0x7f]
      %v2783 = vld [vmem:[#allocation2 + $0xa1] sm:$0xff]
      %v2784 = vld [vmem:[#allocation2 + $0xa9] sm:$0x7f]
      %v2785 = vld [vmem:[#allocation2 + $0xb1] sm:$0xff]
      %v2786 = vld [vmem:[#allocation2 + $0xb9] sm:$0x7f]
      %v2787 = vld [vmem:[#allocation2 + $0xc1] sm:$0xff]
      %v2788 = vld [vmem:[#allocation2 + $0xc9] sm:$0x7f]
      %v2789 = vld [vmem:[#allocation2 + $0xd1] sm:$0xff]
      %v2790 = vld [vmem:[#allocation2 + $0xd9] sm:$0x7f]
      %v2791 = vld [vmem:[#allocation2 + $0xe1] sm:$0xff]
      %v2792 = vld [vmem:[#allocation2 + $0xe9] sm:$0x7f]
      %v2793 = vadd.f32 %v2763, %v2733
      %v2794 = vadd.f32 %v2764, %v2734
      %v2795 = vadd.f32 %v2765, %v2735
      %v2796 = vadd.f32 %v2766, %v2736
      %v2797 = vadd.f32 %v2767, %v2737
      %v2798 = vadd.f32 %v2768, %v2738
      %v2799 = vadd.f32 %v2769, %v2739
      %v2800 = vadd.f32 %v2770, %v2740
      %v2801 = vadd.f32 %v2771, %v2741
      %v2802 = vadd.f32 %v2772, %v2742
      %v2803 = vadd.f32 %v2773, %v2743
      %v2804 = vadd.f32 %v2774, %v2744
      %v2805 = vadd.f32 %v2775, %v2745
      %v2806 = vadd.f32 %v2776, %v2746
      %v2807 = vadd.f32 %v2777, %v2747
      %v2808 = vadd.f32 %v2778, %v2748
      %v2809 = vadd.f32 %v2779, %v2749
      %v2810 = vadd.f32 %v2780, %v2750
      %v2811 = vadd.f32 %v2781, %v2751
      %v2812 = vadd.f32 %v2782, %v2752
      %v2813 = vadd.f32 %v2783, %v2753
      %v2814 = vadd.f32 %v2784, %v2754
      %v2815 = vadd.f32 %v2785, %v2755
      %v2816 = vadd.f32 %v2786, %v2756
      %v2817 = vadd.f32 %v2787, %v2757
      %v2818 = vadd.f32 %v2788, %v2758
      %v2819 = vadd.f32 %v2789, %v2759
      %v2820 = vadd.f32 %v2790, %v2760
      %v2821 = vadd.f32 %v2791, %v2761
      %v2822 = vadd.f32 %v2792, %v2762
      %2823 = vst.msk [vmem:[#allocation2 + $0x1] sm:$0xff] %vm192, %v2793
      %2824 = vst.msk [vmem:[#allocation2 + $0x9] sm:$0x7f] %vm493, %v2794
      %2825 = vst.msk [vmem:[#allocation2 + $0x11] sm:$0xff] %vm192, %v2795
      %2826 = vst.msk [vmem:[#allocation2 + $0x19] sm:$0x7f] %vm493, %v2796
      %2827 = vst.msk [vmem:[#allocation2 + $0x21] sm:$0xff] %vm192, %v2797
      %2828 = vst.msk [vmem:[#allocation2 + $0x29] sm:$0x7f] %vm493, %v2798
      %2829 = vst.msk [vmem:[#allocation2 + $0x31] sm:$0xff] %vm192, %v2799
      %2830 = vst.msk [vmem:[#allocation2 + $0x39] sm:$0x7f] %vm493, %v2800
      %2831 = vst.msk [vmem:[#allocation2 + $0x41] sm:$0xff] %vm192, %v2801
      %2832 = vst.msk [vmem:[#allocation2 + $0x49] sm:$0x7f] %vm493, %v2802
      %2833 = vst.msk [vmem:[#allocation2 + $0x51] sm:$0xff] %vm192, %v2803
      %2834 = vst.msk [vmem:[#allocation2 + $0x59] sm:$0x7f] %vm493, %v2804
      %2835 = vst.msk [vmem:[#allocation2 + $0x61] sm:$0xff] %vm192, %v2805
      %2836 = vst.msk [vmem:[#allocation2 + $0x69] sm:$0x7f] %vm493, %v2806
      %2837 = vst.msk [vmem:[#allocation2 + $0x71] sm:$0xff] %vm192, %v2807
      %2838 = vst.msk [vmem:[#allocation2 + $0x79] sm:$0x7f] %vm493, %v2808
      %2839 = vst.msk [vmem:[#allocation2 + $0x81] sm:$0xff] %vm192, %v2809
      %2840 = vst.msk [vmem:[#allocation2 + $0x89] sm:$0x7f] %vm493, %v2810
      %2841 = vst.msk [vmem:[#allocation2 + $0x91] sm:$0xff] %vm192, %v2811
      %2842 = vst.msk [vmem:[#allocation2 + $0x99] sm:$0x7f] %vm493, %v2812
      %2843 = vst.msk [vmem:[#allocation2 + $0xa1] sm:$0xff] %vm192, %v2813
      %2844 = vst.msk [vmem:[#allocation2 + $0xa9] sm:$0x7f] %vm493, %v2814
      %2845 = vst.msk [vmem:[#allocation2 + $0xb1] sm:$0xff] %vm192, %v2815
      %2846 = vst.msk [vmem:[#allocation2 + $0xb9] sm:$0x7f] %vm493, %v2816
      %2847 = vst.msk [vmem:[#allocation2 + $0xc1] sm:$0xff] %vm192, %v2817
      %2848 = vst.msk [vmem:[#allocation2 + $0xc9] sm:$0x7f] %vm493, %v2818
      %2849 = vst.msk [vmem:[#allocation2 + $0xd1] sm:$0xff] %vm192, %v2819
      %2850 = vst.msk [vmem:[#allocation2 + $0xd9] sm:$0x7f] %vm493, %v2820
      %2851 = vst.msk [vmem:[#allocation2 + $0xe1] sm:$0xff] %vm192, %v2821
      %2852 = vst.msk [vmem:[#allocation2 + $0xe9] sm:$0x7f] %vm493, %v2822
      %v2853 = vld [vmem:[%s2544] sm:$0xff]
      %v2854 = vld [vmem:[%s2544 + $0x8] sm:$0xff]
      %v2855 = vld [vmem:[%s2544 + $0x10] sm:$0xff]
      %v2856 = vld [vmem:[%s2544 + $0x18] sm:$0xff]
      %v2857 = vld [vmem:[%s2544 + $0x20] sm:$0xff]
      %v2858 = vld [vmem:[%s2544 + $0x28] sm:$0xff]
      %v2859 = vld [vmem:[%s2544 + $0x30] sm:$0xff]
      %v2860 = vld [vmem:[%s2544 + $0x38] sm:$0xff]
      %v2861 = vld [vmem:[%s2544 + $0x40] sm:$0xff]
      %v2862 = vld [vmem:[%s2544 + $0x48] sm:$0xff]
      %v2863 = vld [vmem:[%s2544 + $0x50] sm:$0xff]
      %v2864 = vld [vmem:[%s2544 + $0x58] sm:$0xff]
      %v2865 = vld [vmem:[%s2544 + $0x60] sm:$0xff]
      %v2866 = vld [vmem:[%s2544 + $0x68] sm:$0xff]
      %v2867 = vld [vmem:[%s2544 + $0x70] sm:$0xff]
      %v2868 = vld [vmem:[%s2544 + $0x78] sm:$0xff]
      %v2869 = vld [vmem:[%s2544 + $0x80] sm:$0xff]
      %v2870 = vld [vmem:[%s2544 + $0x88] sm:$0xff]
      %v2871 = vld [vmem:[%s2544 + $0x90] sm:$0xff]
      %v2872 = vld [vmem:[%s2544 + $0x98] sm:$0xff]
      %v2873 = vld [vmem:[%s2544 + $0xa0] sm:$0xff]
      %v2874 = vld [vmem:[%s2544 + $0xa8] sm:$0xff]
      %v2875 = vld [vmem:[%s2544 + $0xb0] sm:$0xff]
      %v2876 = vld [vmem:[%s2544 + $0xb8] sm:$0xff]
      %v2877 = vld [vmem:[%s2544 + $0xc0] sm:$0xff]
      %v2878 = vld [vmem:[%s2544 + $0xc8] sm:$0xff]
      %v2879 = vld [vmem:[%s2544 + $0xd0] sm:$0xff]
      %v2880 = vld [vmem:[%s2544 + $0xd8] sm:$0xff]
      %v2881 = vld [vmem:[%s2544 + $0xe0] sm:$0xff]
      %v2882 = vld [vmem:[%s2544 + $0xe8] sm:$0xff]
      %v2883 = vlaneseq
      %v2884 = vshrl.u32 %v2883, 7
      %v2885 = vsub.s32 2, %v2884
      %v2886 = vrot.slane %v228, %v2885
      %v2887 = vmul.f32 %v2853, %v2886
      %v2888 = vmul.f32 %v2854, %v2886
      %v2889 = vmul.f32 %v2855, %v2886
      %v2890 = vmul.f32 %v2856, %v2886
      %v2891 = vmul.f32 %v2857, %v2886
      %v2892 = vmul.f32 %v2858, %v2886
      %v2893 = vmul.f32 %v2859, %v2886
      %v2894 = vmul.f32 %v2860, %v2886
      %v2895 = vmul.f32 %v2861, %v2886
      %v2896 = vmul.f32 %v2862, %v2886
      %v2897 = vmul.f32 %v2863, %v2886
      %v2898 = vmul.f32 %v2864, %v2886
      %v2899 = vmul.f32 %v2865, %v2886
      %v2900 = vmul.f32 %v2866, %v2886
      %v2901 = vmul.f32 %v2867, %v2886
      %v2902 = vmul.f32 %v2868, %v2886
      %v2903 = vmul.f32 %v2869, %v2886
      %v2904 = vmul.f32 %v2870, %v2886
      %v2905 = vmul.f32 %v2871, %v2886
      %v2906 = vmul.f32 %v2872, %v2886
      %v2907 = vmul.f32 %v2873, %v2886
      %v2908 = vmul.f32 %v2874, %v2886
      %v2909 = vmul.f32 %v2875, %v2886
      %v2910 = vmul.f32 %v2876, %v2886
      %v2911 = vmul.f32 %v2877, %v2886
      %v2912 = vmul.f32 %v2878, %v2886
      %v2913 = vmul.f32 %v2879, %v2886
      %v2914 = vmul.f32 %v2880, %v2886
      %v2915 = vmul.f32 %v2881, %v2886
      %v2916 = vmul.f32 %v2882, %v2886
      %v2917 = vld [vmem:[#allocation2] sm:$0xff]
      %v2918 = vld [vmem:[#allocation2 + $0x8] sm:$0xff]
      %v2919 = vld [vmem:[#allocation2 + $0x10] sm:$0xff]
      %v2920 = vld [vmem:[#allocation2 + $0x18] sm:$0xff]
      %v2921 = vld [vmem:[#allocation2 + $0x20] sm:$0xff]
      %v2922 = vld [vmem:[#allocation2 + $0x28] sm:$0xff]
      %v2923 = vld [vmem:[#allocation2 + $0x30] sm:$0xff]
      %v2924 = vld [vmem:[#allocation2 + $0x38] sm:$0xff]
      %v2925 = vld [vmem:[#allocation2 + $0x40] sm:$0xff]
      %v2926 = vld [vmem:[#allocation2 + $0x48] sm:$0xff]
      %v2927 = vld [vmem:[#allocation2 + $0x50] sm:$0xff]
      %v2928 = vld [vmem:[#allocation2 + $0x58] sm:$0xff]
      %v2929 = vld [vmem:[#allocation2 + $0x60] sm:$0xff]
      %v2930 = vld [vmem:[#allocation2 + $0x68] sm:$0xff]
      %v2931 = vld [vmem:[#allocation2 + $0x70] sm:$0xff]
      %v2932 = vld [vmem:[#allocation2 + $0x78] sm:$0xff]
      %v2933 = vld [vmem:[#allocation2 + $0x80] sm:$0xff]
      %v2934 = vld [vmem:[#allocation2 + $0x88] sm:$0xff]
      %v2935 = vld [vmem:[#allocation2 + $0x90] sm:$0xff]
      %v2936 = vld [vmem:[#allocation2 + $0x98] sm:$0xff]
      %v2937 = vld [vmem:[#allocation2 + $0xa0] sm:$0xff]
      %v2938 = vld [vmem:[#allocation2 + $0xa8] sm:$0xff]
      %v2939 = vld [vmem:[#allocation2 + $0xb0] sm:$0xff]
      %v2940 = vld [vmem:[#allocation2 + $0xb8] sm:$0xff]
      %v2941 = vld [vmem:[#allocation2 + $0xc0] sm:$0xff]
      %v2942 = vld [vmem:[#allocation2 + $0xc8] sm:$0xff]
      %v2943 = vld [vmem:[#allocation2 + $0xd0] sm:$0xff]
      %v2944 = vld [vmem:[#allocation2 + $0xd8] sm:$0xff]
      %v2945 = vld [vmem:[#allocation2 + $0xe0] sm:$0xff]
      %v2946 = vld [vmem:[#allocation2 + $0xe8] sm:$0xff]
      %v2947 = vadd.f32 %v2917, %v2887
      %v2948 = vadd.f32 %v2918, %v2888
      %v2949 = vadd.f32 %v2919, %v2889
      %v2950 = vadd.f32 %v2920, %v2890
      %v2951 = vadd.f32 %v2921, %v2891
      %v2952 = vadd.f32 %v2922, %v2892
      %v2953 = vadd.f32 %v2923, %v2893
      %v2954 = vadd.f32 %v2924, %v2894
      %v2955 = vadd.f32 %v2925, %v2895
      %v2956 = vadd.f32 %v2926, %v2896
      %v2957 = vadd.f32 %v2927, %v2897
      %v2958 = vadd.f32 %v2928, %v2898
      %v2959 = vadd.f32 %v2929, %v2899
      %v2960 = vadd.f32 %v2930, %v2900
      %v2961 = vadd.f32 %v2931, %v2901
      %v2962 = vadd.f32 %v2932, %v2902
      %v2963 = vadd.f32 %v2933, %v2903
      %v2964 = vadd.f32 %v2934, %v2904
      %v2965 = vadd.f32 %v2935, %v2905
      %v2966 = vadd.f32 %v2936, %v2906
      %v2967 = vadd.f32 %v2937, %v2907
      %v2968 = vadd.f32 %v2938, %v2908
      %v2969 = vadd.f32 %v2939, %v2909
      %v2970 = vadd.f32 %v2940, %v2910
      %v2971 = vadd.f32 %v2941, %v2911
      %v2972 = vadd.f32 %v2942, %v2912
      %v2973 = vadd.f32 %v2943, %v2913
      %v2974 = vadd.f32 %v2944, %v2914
      %v2975 = vadd.f32 %v2945, %v2915
      %v2976 = vadd.f32 %v2946, %v2916
      %2977 = vst.msk [vmem:[#allocation2] sm:$0xff] %vm192, %v2947
      %2978 = vst.msk [vmem:[#allocation2 + $0x8] sm:$0xff] %vm192, %v2948
      %2979 = vst.msk [vmem:[#allocation2 + $0x10] sm:$0xff] %vm192, %v2949
      %2980 = vst.msk [vmem:[#allocation2 + $0x18] sm:$0xff] %vm192, %v2950
      %2981 = vst.msk [vmem:[#allocation2 + $0x20] sm:$0xff] %vm192, %v2951
      %2982 = vst.msk [vmem:[#allocation2 + $0x28] sm:$0xff] %vm192, %v2952
      %2983 = vst.msk [vmem:[#allocation2 + $0x30] sm:$0xff] %vm192, %v2953
      %2984 = vst.msk [vmem:[#allocation2 + $0x38] sm:$0xff] %vm192, %v2954
      %2985 = vst.msk [vmem:[#allocation2 + $0x40] sm:$0xff] %vm192, %v2955
      %2986 = vst.msk [vmem:[#allocation2 + $0x48] sm:$0xff] %vm192, %v2956
      %2987 = vst.msk [vmem:[#allocation2 + $0x50] sm:$0xff] %vm192, %v2957
      %2988 = vst.msk [vmem:[#allocation2 + $0x58] sm:$0xff] %vm192, %v2958
      %2989 = vst.msk [vmem:[#allocation2 + $0x60] sm:$0xff] %vm192, %v2959
      %2990 = vst.msk [vmem:[#allocation2 + $0x68] sm:$0xff] %vm192, %v2960
      %2991 = vst.msk [vmem:[#allocation2 + $0x70] sm:$0xff] %vm192, %v2961
      %2992 = vst.msk [vmem:[#allocation2 + $0x78] sm:$0xff] %vm192, %v2962
      %2993 = vst.msk [vmem:[#allocation2 + $0x80] sm:$0xff] %vm192, %v2963
      %2994 = vst.msk [vmem:[#allocation2 + $0x88] sm:$0xff] %vm192, %v2964
      %2995 = vst.msk [vmem:[#allocation2 + $0x90] sm:$0xff] %vm192, %v2965
      %2996 = vst.msk [vmem:[#allocation2 + $0x98] sm:$0xff] %vm192, %v2966
      %2997 = vst.msk [vmem:[#allocation2 + $0xa0] sm:$0xff] %vm192, %v2967
      %2998 = vst.msk [vmem:[#allocation2 + $0xa8] sm:$0xff] %vm192, %v2968
      %2999 = vst.msk [vmem:[#allocation2 + $0xb0] sm:$0xff] %vm192, %v2969
      %3000 = vst.msk [vmem:[#allocation2 + $0xb8] sm:$0xff] %vm192, %v2970
      %3001 = vst.msk [vmem:[#allocation2 + $0xc0] sm:$0xff] %vm192, %v2971
      %3002 = vst.msk [vmem:[#allocation2 + $0xc8] sm:$0xff] %vm192, %v2972
      %3003 = vst.msk [vmem:[#allocation2 + $0xd0] sm:$0xff] %vm192, %v2973
      %3004 = vst.msk [vmem:[#allocation2 + $0xd8] sm:$0xff] %vm192, %v2974
      %3005 = vst.msk [vmem:[#allocation2 + $0xe0] sm:$0xff] %vm192, %v2975
      %3006 = vst.msk [vmem:[#allocation2 + $0xe8] sm:$0xff] %vm192, %v2976
      %v3007 = vld [vmem:[%s2544 + $0x1] sm:$0xff]
      %v3008 = vld [vmem:[%s2544 + $0x9] sm:$0x7f]
      %v3009 = vld [vmem:[%s2544 + $0x11] sm:$0xff]
      %v3010 = vld [vmem:[%s2544 + $0x19] sm:$0x7f]
      %v3011 = vld [vmem:[%s2544 + $0x21] sm:$0xff]
      %v3012 = vld [vmem:[%s2544 + $0x29] sm:$0x7f]
      %v3013 = vld [vmem:[%s2544 + $0x31] sm:$0xff]
      %v3014 = vld [vmem:[%s2544 + $0x39] sm:$0x7f]
      %v3015 = vld [vmem:[%s2544 + $0x41] sm:$0xff]
      %v3016 = vld [vmem:[%s2544 + $0x49] sm:$0x7f]
      %v3017 = vld [vmem:[%s2544 + $0x51] sm:$0xff]
      %v3018 = vld [vmem:[%s2544 + $0x59] sm:$0x7f]
      %v3019 = vld [vmem:[%s2544 + $0x61] sm:$0xff]
      %v3020 = vld [vmem:[%s2544 + $0x69] sm:$0x7f]
      %v3021 = vld [vmem:[%s2544 + $0x71] sm:$0xff]
      %v3022 = vld [vmem:[%s2544 + $0x79] sm:$0x7f]
      %v3023 = vld [vmem:[%s2544 + $0x81] sm:$0xff]
      %v3024 = vld [vmem:[%s2544 + $0x89] sm:$0x7f]
      %v3025 = vld [vmem:[%s2544 + $0x91] sm:$0xff]
      %v3026 = vld [vmem:[%s2544 + $0x99] sm:$0x7f]
      %v3027 = vld [vmem:[%s2544 + $0xa1] sm:$0xff]
      %v3028 = vld [vmem:[%s2544 + $0xa9] sm:$0x7f]
      %v3029 = vld [vmem:[%s2544 + $0xb1] sm:$0xff]
      %v3030 = vld [vmem:[%s2544 + $0xb9] sm:$0x7f]
      %v3031 = vld [vmem:[%s2544 + $0xc1] sm:$0xff]
      %v3032 = vld [vmem:[%s2544 + $0xc9] sm:$0x7f]
      %v3033 = vld [vmem:[%s2544 + $0xd1] sm:$0xff]
      %v3034 = vld [vmem:[%s2544 + $0xd9] sm:$0x7f]
      %v3035 = vld [vmem:[%s2544 + $0xe1] sm:$0xff]
      %v3036 = vld [vmem:[%s2544 + $0xe9] sm:$0x7f]
      %v3037 = vlaneseq
      %v3038 = vshrl.u32 %v3037, 7
      %v3039 = vsub.s32 3, %v3038
      %v3040 = vrot.slane %v228, %v3039
      %v3041 = vmul.f32 %v3007, %v3040
      %v3042 = vmul.f32 %v3008, %v3040
      %v3043 = vmul.f32 %v3009, %v3040
      %v3044 = vmul.f32 %v3010, %v3040
      %v3045 = vmul.f32 %v3011, %v3040
      %v3046 = vmul.f32 %v3012, %v3040
      %v3047 = vmul.f32 %v3013, %v3040
      %v3048 = vmul.f32 %v3014, %v3040
      %v3049 = vmul.f32 %v3015, %v3040
      %v3050 = vmul.f32 %v3016, %v3040
      %v3051 = vmul.f32 %v3017, %v3040
      %v3052 = vmul.f32 %v3018, %v3040
      %v3053 = vmul.f32 %v3019, %v3040
      %v3054 = vmul.f32 %v3020, %v3040
      %v3055 = vmul.f32 %v3021, %v3040
      %v3056 = vmul.f32 %v3022, %v3040
      %v3057 = vmul.f32 %v3023, %v3040
      %v3058 = vmul.f32 %v3024, %v3040
      %v3059 = vmul.f32 %v3025, %v3040
      %v3060 = vmul.f32 %v3026, %v3040
      %v3061 = vmul.f32 %v3027, %v3040
      %v3062 = vmul.f32 %v3028, %v3040
      %v3063 = vmul.f32 %v3029, %v3040
      %v3064 = vmul.f32 %v3030, %v3040
      %v3065 = vmul.f32 %v3031, %v3040
      %v3066 = vmul.f32 %v3032, %v3040
      %v3067 = vmul.f32 %v3033, %v3040
      %v3068 = vmul.f32 %v3034, %v3040
      %v3069 = vmul.f32 %v3035, %v3040
      %v3070 = vmul.f32 %v3036, %v3040
      %v3071 = vld [vmem:[#allocation2] sm:$0xff]
      %v3072 = vld [vmem:[#allocation2 + $0x8] sm:$0x7f]
      %v3073 = vld [vmem:[#allocation2 + $0x10] sm:$0xff]
      %v3074 = vld [vmem:[#allocation2 + $0x18] sm:$0x7f]
      %v3075 = vld [vmem:[#allocation2 + $0x20] sm:$0xff]
      %v3076 = vld [vmem:[#allocation2 + $0x28] sm:$0x7f]
      %v3077 = vld [vmem:[#allocation2 + $0x30] sm:$0xff]
      %v3078 = vld [vmem:[#allocation2 + $0x38] sm:$0x7f]
      %v3079 = vld [vmem:[#allocation2 + $0x40] sm:$0xff]
      %v3080 = vld [vmem:[#allocation2 + $0x48] sm:$0x7f]
      %v3081 = vld [vmem:[#allocation2 + $0x50] sm:$0xff]
      %v3082 = vld [vmem:[#allocation2 + $0x58] sm:$0x7f]
      %v3083 = vld [vmem:[#allocation2 + $0x60] sm:$0xff]
      %v3084 = vld [vmem:[#allocation2 + $0x68] sm:$0x7f]
      %v3085 = vld [vmem:[#allocation2 + $0x70] sm:$0xff]
      %v3086 = vld [vmem:[#allocation2 + $0x78] sm:$0x7f]
      %v3087 = vld [vmem:[#allocation2 + $0x80] sm:$0xff]
      %v3088 = vld [vmem:[#allocation2 + $0x88] sm:$0x7f]
      %v3089 = vld [vmem:[#allocation2 + $0x90] sm:$0xff]
      %v3090 = vld [vmem:[#allocation2 + $0x98] sm:$0x7f]
      %v3091 = vld [vmem:[#allocation2 + $0xa0] sm:$0xff]
      %v3092 = vld [vmem:[#allocation2 + $0xa8] sm:$0x7f]
      %v3093 = vld [vmem:[#allocation2 + $0xb0] sm:$0xff]
      %v3094 = vld [vmem:[#allocation2 + $0xb8] sm:$0x7f]
      %v3095 = vld [vmem:[#allocation2 + $0xc0] sm:$0xff]
      %v3096 = vld [vmem:[#allocation2 + $0xc8] sm:$0x7f]
      %v3097 = vld [vmem:[#allocation2 + $0xd0] sm:$0xff]
      %v3098 = vld [vmem:[#allocation2 + $0xd8] sm:$0x7f]
      %v3099 = vld [vmem:[#allocation2 + $0xe0] sm:$0xff]
      %v3100 = vld [vmem:[#allocation2 + $0xe8] sm:$0x7f]
      %v3101 = vadd.f32 %v3071, %v3041
      %v3102 = vadd.f32 %v3072, %v3042
      %v3103 = vadd.f32 %v3073, %v3043
      %v3104 = vadd.f32 %v3074, %v3044
      %v3105 = vadd.f32 %v3075, %v3045
      %v3106 = vadd.f32 %v3076, %v3046
      %v3107 = vadd.f32 %v3077, %v3047
      %v3108 = vadd.f32 %v3078, %v3048
      %v3109 = vadd.f32 %v3079, %v3049
      %v3110 = vadd.f32 %v3080, %v3050
      %v3111 = vadd.f32 %v3081, %v3051
      %v3112 = vadd.f32 %v3082, %v3052
      %v3113 = vadd.f32 %v3083, %v3053
      %v3114 = vadd.f32 %v3084, %v3054
      %v3115 = vadd.f32 %v3085, %v3055
      %v3116 = vadd.f32 %v3086, %v3056
      %v3117 = vadd.f32 %v3087, %v3057
      %v3118 = vadd.f32 %v3088, %v3058
      %v3119 = vadd.f32 %v3089, %v3059
      %v3120 = vadd.f32 %v3090, %v3060
      %v3121 = vadd.f32 %v3091, %v3061
      %v3122 = vadd.f32 %v3092, %v3062
      %v3123 = vadd.f32 %v3093, %v3063
      %v3124 = vadd.f32 %v3094, %v3064
      %v3125 = vadd.f32 %v3095, %v3065
      %v3126 = vadd.f32 %v3096, %v3066
      %v3127 = vadd.f32 %v3097, %v3067
      %v3128 = vadd.f32 %v3098, %v3068
      %v3129 = vadd.f32 %v3099, %v3069
      %v3130 = vadd.f32 %v3100, %v3070
      %3131 = vst.msk [vmem:[#allocation2] sm:$0xff] %vm192, %v3101
      %3132 = vst.msk [vmem:[#allocation2 + $0x8] sm:$0x7f] %vm493, %v3102
      %3133 = vst.msk [vmem:[#allocation2 + $0x10] sm:$0xff] %vm192, %v3103
      %3134 = vst.msk [vmem:[#allocation2 + $0x18] sm:$0x7f] %vm493, %v3104
      %3135 = vst.msk [vmem:[#allocation2 + $0x20] sm:$0xff] %vm192, %v3105
      %3136 = vst.msk [vmem:[#allocation2 + $0x28] sm:$0x7f] %vm493, %v3106
      %3137 = vst.msk [vmem:[#allocation2 + $0x30] sm:$0xff] %vm192, %v3107
      %3138 = vst.msk [vmem:[#allocation2 + $0x38] sm:$0x7f] %vm493, %v3108
      %3139 = vst.msk [vmem:[#allocation2 + $0x40] sm:$0xff] %vm192, %v3109
      %3140 = vst.msk [vmem:[#allocation2 + $0x48] sm:$0x7f] %vm493, %v3110
      %3141 = vst.msk [vmem:[#allocation2 + $0x50] sm:$0xff] %vm192, %v3111
      %3142 = vst.msk [vmem:[#allocation2 + $0x58] sm:$0x7f] %vm493, %v3112
      %3143 = vst.msk [vmem:[#allocation2 + $0x60] sm:$0xff] %vm192, %v3113
      %3144 = vst.msk [vmem:[#allocation2 + $0x68] sm:$0x7f] %vm493, %v3114
      %3145 = vst.msk [vmem:[#allocation2 + $0x70] sm:$0xff] %vm192, %v3115
      %3146 = vst.msk [vmem:[#allocation2 + $0x78] sm:$0x7f] %vm493, %v3116
      %3147 = vst.msk [vmem:[#allocation2 + $0x80] sm:$0xff] %vm192, %v3117
      %3148 = vst.msk [vmem:[#allocation2 + $0x88] sm:$0x7f] %vm493, %v3118
      %3149 = vst.msk [vmem:[#allocation2 + $0x90] sm:$0xff] %vm192, %v3119
      %3150 = vst.msk [vmem:[#allocation2 + $0x98] sm:$0x7f] %vm493, %v3120
      %3151 = vst.msk [vmem:[#allocation2 + $0xa0] sm:$0xff] %vm192, %v3121
      %3152 = vst.msk [vmem:[#allocation2 + $0xa8] sm:$0x7f] %vm493, %v3122
      %3153 = vst.msk [vmem:[#allocation2 + $0xb0] sm:$0xff] %vm192, %v3123
      %3154 = vst.msk [vmem:[#allocation2 + $0xb8] sm:$0x7f] %vm493, %v3124
      %3155 = vst.msk [vmem:[#allocation2 + $0xc0] sm:$0xff] %vm192, %v3125
      %3156 = vst.msk [vmem:[#allocation2 + $0xc8] sm:$0x7f] %vm493, %v3126
      %3157 = vst.msk [vmem:[#allocation2 + $0xd0] sm:$0xff] %vm192, %v3127
      %3158 = vst.msk [vmem:[#allocation2 + $0xd8] sm:$0x7f] %vm493, %v3128
      %3159 = vst.msk [vmem:[#allocation2 + $0xe0] sm:$0xff] %vm192, %v3129
      %3160 = vst.msk [vmem:[#allocation2 + $0xe8] sm:$0x7f] %vm493, %v3130
      %v3161 = vld [vmem:[%s2544 + $0x2] sm:$0xff]
      %v3162 = vld [vmem:[%s2544 + $0xa] sm:$0x3f]
      %v3163 = vld [vmem:[%s2544 + $0x12] sm:$0xff]
      %v3164 = vld [vmem:[%s2544 + $0x1a] sm:$0x3f]
      %v3165 = vld [vmem:[%s2544 + $0x22] sm:$0xff]
      %v3166 = vld [vmem:[%s2544 + $0x2a] sm:$0x3f]
      %v3167 = vld [vmem:[%s2544 + $0x32] sm:$0xff]
      %v3168 = vld [vmem:[%s2544 + $0x3a] sm:$0x3f]
      %v3169 = vld [vmem:[%s2544 + $0x42] sm:$0xff]
      %v3170 = vld [vmem:[%s2544 + $0x4a] sm:$0x3f]
      %v3171 = vld [vmem:[%s2544 + $0x52] sm:$0xff]
      %v3172 = vld [vmem:[%s2544 + $0x5a] sm:$0x3f]
      %v3173 = vld [vmem:[%s2544 + $0x62] sm:$0xff]
      %v3174 = vld [vmem:[%s2544 + $0x6a] sm:$0x3f]
      %v3175 = vld [vmem:[%s2544 + $0x72] sm:$0xff]
      %v3176 = vld [vmem:[%s2544 + $0x7a] sm:$0x3f]
      %v3177 = vld [vmem:[%s2544 + $0x82] sm:$0xff]
      %v3178 = vld [vmem:[%s2544 + $0x8a] sm:$0x3f]
      %v3179 = vld [vmem:[%s2544 + $0x92] sm:$0xff]
      %v3180 = vld [vmem:[%s2544 + $0x9a] sm:$0x3f]
      %v3181 = vld [vmem:[%s2544 + $0xa2] sm:$0xff]
      %v3182 = vld [vmem:[%s2544 + $0xaa] sm:$0x3f]
      %v3183 = vld [vmem:[%s2544 + $0xb2] sm:$0xff]
      %v3184 = vld [vmem:[%s2544 + $0xba] sm:$0x3f]
      %v3185 = vld [vmem:[%s2544 + $0xc2] sm:$0xff]
      %v3186 = vld [vmem:[%s2544 + $0xca] sm:$0x3f]
      %v3187 = vld [vmem:[%s2544 + $0xd2] sm:$0xff]
      %v3188 = vld [vmem:[%s2544 + $0xda] sm:$0x3f]
      %v3189 = vld [vmem:[%s2544 + $0xe2] sm:$0xff]
      %v3190 = vld [vmem:[%s2544 + $0xea] sm:$0x3f]
      %v3191 = vlaneseq
      %v3192 = vshrl.u32 %v3191, 7
      %v3193 = vsub.s32 4, %v3192
      %v3194 = vrot.slane %v228, %v3193
      %v3195 = vmul.f32 %v3161, %v3194
      %v3196 = vmul.f32 %v3162, %v3194
      %v3197 = vmul.f32 %v3163, %v3194
      %v3198 = vmul.f32 %v3164, %v3194
      %v3199 = vmul.f32 %v3165, %v3194
      %v3200 = vmul.f32 %v3166, %v3194
      %v3201 = vmul.f32 %v3167, %v3194
      %v3202 = vmul.f32 %v3168, %v3194
      %v3203 = vmul.f32 %v3169, %v3194
      %v3204 = vmul.f32 %v3170, %v3194
      %v3205 = vmul.f32 %v3171, %v3194
      %v3206 = vmul.f32 %v3172, %v3194
      %v3207 = vmul.f32 %v3173, %v3194
      %v3208 = vmul.f32 %v3174, %v3194
      %v3209 = vmul.f32 %v3175, %v3194
      %v3210 = vmul.f32 %v3176, %v3194
      %v3211 = vmul.f32 %v3177, %v3194
      %v3212 = vmul.f32 %v3178, %v3194
      %v3213 = vmul.f32 %v3179, %v3194
      %v3214 = vmul.f32 %v3180, %v3194
      %v3215 = vmul.f32 %v3181, %v3194
      %v3216 = vmul.f32 %v3182, %v3194
      %v3217 = vmul.f32 %v3183, %v3194
      %v3218 = vmul.f32 %v3184, %v3194
      %v3219 = vmul.f32 %v3185, %v3194
      %v3220 = vmul.f32 %v3186, %v3194
      %v3221 = vmul.f32 %v3187, %v3194
      %v3222 = vmul.f32 %v3188, %v3194
      %v3223 = vmul.f32 %v3189, %v3194
      %v3224 = vmul.f32 %v3190, %v3194
      %v3225 = vld [vmem:[#allocation2] sm:$0xff]
      %v3226 = vld [vmem:[#allocation2 + $0x8] sm:$0x3f]
      %v3227 = vld [vmem:[#allocation2 + $0x10] sm:$0xff]
      %v3228 = vld [vmem:[#allocation2 + $0x18] sm:$0x3f]
      %v3229 = vld [vmem:[#allocation2 + $0x20] sm:$0xff]
      %v3230 = vld [vmem:[#allocation2 + $0x28] sm:$0x3f]
      %v3231 = vld [vmem:[#allocation2 + $0x30] sm:$0xff]
      %v3232 = vld [vmem:[#allocation2 + $0x38] sm:$0x3f]
      %v3233 = vld [vmem:[#allocation2 + $0x40] sm:$0xff]
      %v3234 = vld [vmem:[#allocation2 + $0x48] sm:$0x3f]
      %v3235 = vld [vmem:[#allocation2 + $0x50] sm:$0xff]
      %v3236 = vld [vmem:[#allocation2 + $0x58] sm:$0x3f]
      %v3237 = vld [vmem:[#allocation2 + $0x60] sm:$0xff]
      %v3238 = vld [vmem:[#allocation2 + $0x68] sm:$0x3f]
      %v3239 = vld [vmem:[#allocation2 + $0x70] sm:$0xff]
      %v3240 = vld [vmem:[#allocation2 + $0x78] sm:$0x3f]
      %v3241 = vld [vmem:[#allocation2 + $0x80] sm:$0xff]
      %v3242 = vld [vmem:[#allocation2 + $0x88] sm:$0x3f]
      %v3243 = vld [vmem:[#allocation2 + $0x90] sm:$0xff]
      %v3244 = vld [vmem:[#allocation2 + $0x98] sm:$0x3f]
      %v3245 = vld [vmem:[#allocation2 + $0xa0] sm:$0xff]
      %v3246 = vld [vmem:[#allocation2 + $0xa8] sm:$0x3f]
      %v3247 = vld [vmem:[#allocation2 + $0xb0] sm:$0xff]
      %v3248 = vld [vmem:[#allocation2 + $0xb8] sm:$0x3f]
      %v3249 = vld [vmem:[#allocation2 + $0xc0] sm:$0xff]
      %v3250 = vld [vmem:[#allocation2 + $0xc8] sm:$0x3f]
      %v3251 = vld [vmem:[#allocation2 + $0xd0] sm:$0xff]
      %v3252 = vld [vmem:[#allocation2 + $0xd8] sm:$0x3f]
      %v3253 = vld [vmem:[#allocation2 + $0xe0] sm:$0xff]
      %v3254 = vld [vmem:[#allocation2 + $0xe8] sm:$0x3f]
      %v3255 = vadd.f32 %v3225, %v3195
      %v3256 = vadd.f32 %v3226, %v3196
      %v3257 = vadd.f32 %v3227, %v3197
      %v3258 = vadd.f32 %v3228, %v3198
      %v3259 = vadd.f32 %v3229, %v3199
      %v3260 = vadd.f32 %v3230, %v3200
      %v3261 = vadd.f32 %v3231, %v3201
      %v3262 = vadd.f32 %v3232, %v3202
      %v3263 = vadd.f32 %v3233, %v3203
      %v3264 = vadd.f32 %v3234, %v3204
      %v3265 = vadd.f32 %v3235, %v3205
      %v3266 = vadd.f32 %v3236, %v3206
      %v3267 = vadd.f32 %v3237, %v3207
      %v3268 = vadd.f32 %v3238, %v3208
      %v3269 = vadd.f32 %v3239, %v3209
      %v3270 = vadd.f32 %v3240, %v3210
      %v3271 = vadd.f32 %v3241, %v3211
      %v3272 = vadd.f32 %v3242, %v3212
      %v3273 = vadd.f32 %v3243, %v3213
      %v3274 = vadd.f32 %v3244, %v3214
      %v3275 = vadd.f32 %v3245, %v3215
      %v3276 = vadd.f32 %v3246, %v3216
      %v3277 = vadd.f32 %v3247, %v3217
      %v3278 = vadd.f32 %v3248, %v3218
      %v3279 = vadd.f32 %v3249, %v3219
      %v3280 = vadd.f32 %v3250, %v3220
      %v3281 = vadd.f32 %v3251, %v3221
      %v3282 = vadd.f32 %v3252, %v3222
      %v3283 = vadd.f32 %v3253, %v3223
      %v3284 = vadd.f32 %v3254, %v3224
      %3285 = vst.msk [vmem:[#allocation2] sm:$0xff] %vm192, %v3255
      %3286 = vst.msk [vmem:[#allocation2 + $0x8] sm:$0x3f] %vm348, %v3256
      %3287 = vst.msk [vmem:[#allocation2 + $0x10] sm:$0xff] %vm192, %v3257
      %3288 = vst.msk [vmem:[#allocation2 + $0x18] sm:$0x3f] %vm348, %v3258
      %3289 = vst.msk [vmem:[#allocation2 + $0x20] sm:$0xff] %vm192, %v3259
      %3290 = vst.msk [vmem:[#allocation2 + $0x28] sm:$0x3f] %vm348, %v3260
      %3291 = vst.msk [vmem:[#allocation2 + $0x30] sm:$0xff] %vm192, %v3261
      %3292 = vst.msk [vmem:[#allocation2 + $0x38] sm:$0x3f] %vm348, %v3262
      %3293 = vst.msk [vmem:[#allocation2 + $0x40] sm:$0xff] %vm192, %v3263
      %3294 = vst.msk [vmem:[#allocation2 + $0x48] sm:$0x3f] %vm348, %v3264
      %3295 = vst.msk [vmem:[#allocation2 + $0x50] sm:$0xff] %vm192, %v3265
      %3296 = vst.msk [vmem:[#allocation2 + $0x58] sm:$0x3f] %vm348, %v3266
      %3297 = vst.msk [vmem:[#allocation2 + $0x60] sm:$0xff] %vm192, %v3267
      %3298 = vst.msk [vmem:[#allocation2 + $0x68] sm:$0x3f] %vm348, %v3268
      %3299 = vst.msk [vmem:[#allocation2 + $0x70] sm:$0xff] %vm192, %v3269
      %3300 = vst.msk [vmem:[#allocation2 + $0x78] sm:$0x3f] %vm348, %v3270
      %3301 = vst.msk [vmem:[#allocation2 + $0x80] sm:$0xff] %vm192, %v3271
      %3302 = vst.msk [vmem:[#allocation2 + $0x88] sm:$0x3f] %vm348, %v3272
      %3303 = vst.msk [vmem:[#allocation2 + $0x90] sm:$0xff] %vm192, %v3273
      %3304 = vst.msk [vmem:[#allocation2 + $0x98] sm:$0x3f] %vm348, %v3274
      %3305 = vst.msk [vmem:[#allocation2 + $0xa0] sm:$0xff] %vm192, %v3275
      %3306 = vst.msk [vmem:[#allocation2 + $0xa8] sm:$0x3f] %vm348, %v3276
      %3307 = vst.msk [vmem:[#allocation2 + $0xb0] sm:$0xff] %vm192, %v3277
      %3308 = vst.msk [vmem:[#allocation2 + $0xb8] sm:$0x3f] %vm348, %v3278
      %3309 = vst.msk [vmem:[#allocation2 + $0xc0] sm:$0xff] %vm192, %v3279
      %3310 = vst.msk [vmem:[#allocation2 + $0xc8] sm:$0x3f] %vm348, %v3280
      %3311 = vst.msk [vmem:[#allocation2 + $0xd0] sm:$0xff] %vm192, %v3281
      %3312 = vst.msk [vmem:[#allocation2 + $0xd8] sm:$0x3f] %vm348, %v3282
      %3313 = vst.msk [vmem:[#allocation2 + $0xe0] sm:$0xff] %vm192, %v3283
      %3314 = vst.msk [vmem:[#allocation2 + $0xe8] sm:$0x3f] %vm348, %v3284
      %s3315 = scalar_lea.vmem %s179, 32
      %v3316 = vld [vmem:[%s3315] sm:$0xff]
      %v3317 = vld [vmem:[%s3315 + $0x8] sm:$0x3f]
      %v3318 = vld [vmem:[%s3315 + $0x10] sm:$0xff]
      %v3319 = vld [vmem:[%s3315 + $0x18] sm:$0x3f]
      %v3320 = vld [vmem:[%s3315 + $0x20] sm:$0xff]
      %v3321 = vld [vmem:[%s3315 + $0x28] sm:$0x3f]
      %v3322 = vld [vmem:[%s3315 + $0x30] sm:$0xff]
      %v3323 = vld [vmem:[%s3315 + $0x38] sm:$0x3f]
      %v3324 = vld [vmem:[%s3315 + $0x40] sm:$0xff]
      %v3325 = vld [vmem:[%s3315 + $0x48] sm:$0x3f]
      %v3326 = vld [vmem:[%s3315 + $0x50] sm:$0xff]
      %v3327 = vld [vmem:[%s3315 + $0x58] sm:$0x3f]
      %v3328 = vld [vmem:[%s3315 + $0x60] sm:$0xff]
      %v3329 = vld [vmem:[%s3315 + $0x68] sm:$0x3f]
      %v3330 = vld [vmem:[%s3315 + $0x70] sm:$0xff]
      %v3331 = vld [vmem:[%s3315 + $0x78] sm:$0x3f]
      %v3332 = vld [vmem:[%s3315 + $0x80] sm:$0xff]
      %v3333 = vld [vmem:[%s3315 + $0x88] sm:$0x3f]
      %v3334 = vld [vmem:[%s3315 + $0x90] sm:$0xff]
      %v3335 = vld [vmem:[%s3315 + $0x98] sm:$0x3f]
      %v3336 = vld [vmem:[%s3315 + $0xa0] sm:$0xff]
      %v3337 = vld [vmem:[%s3315 + $0xa8] sm:$0x3f]
      %v3338 = vld [vmem:[%s3315 + $0xb0] sm:$0xff]
      %v3339 = vld [vmem:[%s3315 + $0xb8] sm:$0x3f]
      %v3340 = vld [vmem:[%s3315 + $0xc0] sm:$0xff]
      %v3341 = vld [vmem:[%s3315 + $0xc8] sm:$0x3f]
      %v3342 = vld [vmem:[%s3315 + $0xd0] sm:$0xff]
      %v3343 = vld [vmem:[%s3315 + $0xd8] sm:$0x3f]
      %v3344 = vlaneseq
      %v3345 = vshrl.u32 %v3344, 7
      %v3346 = vsub.s32 0, %v3345
      %v3347 = vrot.slane %v229, %v3346
      %v3348 = vmul.f32 %v3316, %v3347
      %v3349 = vmul.f32 %v3317, %v3347
      %v3350 = vmul.f32 %v3318, %v3347
      %v3351 = vmul.f32 %v3319, %v3347
      %v3352 = vmul.f32 %v3320, %v3347
      %v3353 = vmul.f32 %v3321, %v3347
      %v3354 = vmul.f32 %v3322, %v3347
      %v3355 = vmul.f32 %v3323, %v3347
      %v3356 = vmul.f32 %v3324, %v3347
      %v3357 = vmul.f32 %v3325, %v3347
      %v3358 = vmul.f32 %v3326, %v3347
      %v3359 = vmul.f32 %v3327, %v3347
      %v3360 = vmul.f32 %v3328, %v3347
      %v3361 = vmul.f32 %v3329, %v3347
      %v3362 = vmul.f32 %v3330, %v3347
      %v3363 = vmul.f32 %v3331, %v3347
      %v3364 = vmul.f32 %v3332, %v3347
      %v3365 = vmul.f32 %v3333, %v3347
      %v3366 = vmul.f32 %v3334, %v3347
      %v3367 = vmul.f32 %v3335, %v3347
      %v3368 = vmul.f32 %v3336, %v3347
      %v3369 = vmul.f32 %v3337, %v3347
      %v3370 = vmul.f32 %v3338, %v3347
      %v3371 = vmul.f32 %v3339, %v3347
      %v3372 = vmul.f32 %v3340, %v3347
      %v3373 = vmul.f32 %v3341, %v3347
      %v3374 = vmul.f32 %v3342, %v3347
      %v3375 = vmul.f32 %v3343, %v3347
      %v3376 = vld [vmem:[#allocation2 + $0x2] sm:$0xff]
      %v3377 = vld [vmem:[#allocation2 + $0xa] sm:$0x3f]
      %v3378 = vld [vmem:[#allocation2 + $0x12] sm:$0xff]
      %v3379 = vld [vmem:[#allocation2 + $0x1a] sm:$0x3f]
      %v3380 = vld [vmem:[#allocation2 + $0x22] sm:$0xff]
      %v3381 = vld [vmem:[#allocation2 + $0x2a] sm:$0x3f]
      %v3382 = vld [vmem:[#allocation2 + $0x32] sm:$0xff]
      %v3383 = vld [vmem:[#allocation2 + $0x3a] sm:$0x3f]
      %v3384 = vld [vmem:[#allocation2 + $0x42] sm:$0xff]
      %v3385 = vld [vmem:[#allocation2 + $0x4a] sm:$0x3f]
      %v3386 = vld [vmem:[#allocation2 + $0x52] sm:$0xff]
      %v3387 = vld [vmem:[#allocation2 + $0x5a] sm:$0x3f]
      %v3388 = vld [vmem:[#allocation2 + $0x62] sm:$0xff]
      %v3389 = vld [vmem:[#allocation2 + $0x6a] sm:$0x3f]
      %v3390 = vld [vmem:[#allocation2 + $0x72] sm:$0xff]
      %v3391 = vld [vmem:[#allocation2 + $0x7a] sm:$0x3f]
      %v3392 = vld [vmem:[#allocation2 + $0x82] sm:$0xff]
      %v3393 = vld [vmem:[#allocation2 + $0x8a] sm:$0x3f]
      %v3394 = vld [vmem:[#allocation2 + $0x92] sm:$0xff]
      %v3395 = vld [vmem:[#allocation2 + $0x9a] sm:$0x3f]
      %v3396 = vld [vmem:[#allocation2 + $0xa2] sm:$0xff]
      %v3397 = vld [vmem:[#allocation2 + $0xaa] sm:$0x3f]
      %v3398 = vld [vmem:[#allocation2 + $0xb2] sm:$0xff]
      %v3399 = vld [vmem:[#allocation2 + $0xba] sm:$0x3f]
      %v3400 = vld [vmem:[#allocation2 + $0xc2] sm:$0xff]
      %v3401 = vld [vmem:[#allocation2 + $0xca] sm:$0x3f]
      %v3402 = vld [vmem:[#allocation2 + $0xd2] sm:$0xff]
      %v3403 = vld [vmem:[#allocation2 + $0xda] sm:$0x3f]
      %v3404 = vadd.f32 %v3376, %v3348
      %v3405 = vadd.f32 %v3377, %v3349
      %v3406 = vadd.f32 %v3378, %v3350
      %v3407 = vadd.f32 %v3379, %v3351
      %v3408 = vadd.f32 %v3380, %v3352
      %v3409 = vadd.f32 %v3381, %v3353
      %v3410 = vadd.f32 %v3382, %v3354
      %v3411 = vadd.f32 %v3383, %v3355
      %v3412 = vadd.f32 %v3384, %v3356
      %v3413 = vadd.f32 %v3385, %v3357
      %v3414 = vadd.f32 %v3386, %v3358
      %v3415 = vadd.f32 %v3387, %v3359
      %v3416 = vadd.f32 %v3388, %v3360
      %v3417 = vadd.f32 %v3389, %v3361
      %v3418 = vadd.f32 %v3390, %v3362
      %v3419 = vadd.f32 %v3391, %v3363
      %v3420 = vadd.f32 %v3392, %v3364
      %v3421 = vadd.f32 %v3393, %v3365
      %v3422 = vadd.f32 %v3394, %v3366
      %v3423 = vadd.f32 %v3395, %v3367
      %v3424 = vadd.f32 %v3396, %v3368
      %v3425 = vadd.f32 %v3397, %v3369
      %v3426 = vadd.f32 %v3398, %v3370
      %v3427 = vadd.f32 %v3399, %v3371
      %v3428 = vadd.f32 %v3400, %v3372
      %v3429 = vadd.f32 %v3401, %v3373
      %v3430 = vadd.f32 %v3402, %v3374
      %v3431 = vadd.f32 %v3403, %v3375
      %3432 = vst.msk [vmem:[#allocation2 + $0x2] sm:$0xff] %vm192, %v3404
      %3433 = vst.msk [vmem:[#allocation2 + $0xa] sm:$0x3f] %vm348, %v3405
      %3434 = vst.msk [vmem:[#allocation2 + $0x12] sm:$0xff] %vm192, %v3406
      %3435 = vst.msk [vmem:[#allocation2 + $0x1a] sm:$0x3f] %vm348, %v3407
      %3436 = vst.msk [vmem:[#allocation2 + $0x22] sm:$0xff] %vm192, %v3408
      %3437 = vst.msk [vmem:[#allocation2 + $0x2a] sm:$0x3f] %vm348, %v3409
      %3438 = vst.msk [vmem:[#allocation2 + $0x32] sm:$0xff] %vm192, %v3410
      %3439 = vst.msk [vmem:[#allocation2 + $0x3a] sm:$0x3f] %vm348, %v3411
      %3440 = vst.msk [vmem:[#allocation2 + $0x42] sm:$0xff] %vm192, %v3412
      %3441 = vst.msk [vmem:[#allocation2 + $0x4a] sm:$0x3f] %vm348, %v3413
      %3442 = vst.msk [vmem:[#allocation2 + $0x52] sm:$0xff] %vm192, %v3414
      %3443 = vst.msk [vmem:[#allocation2 + $0x5a] sm:$0x3f] %vm348, %v3415
      %3444 = vst.msk [vmem:[#allocation2 + $0x62] sm:$0xff] %vm192, %v3416
      %3445 = vst.msk [vmem:[#allocation2 + $0x6a] sm:$0x3f] %vm348, %v3417
      %3446 = vst.msk [vmem:[#allocation2 + $0x72] sm:$0xff] %vm192, %v3418
      %3447 = vst.msk [vmem:[#allocation2 + $0x7a] sm:$0x3f] %vm348, %v3419
      %3448 = vst.msk [vmem:[#allocation2 + $0x82] sm:$0xff] %vm192, %v3420
      %3449 = vst.msk [vmem:[#allocation2 + $0x8a] sm:$0x3f] %vm348, %v3421
      %3450 = vst.msk [vmem:[#allocation2 + $0x92] sm:$0xff] %vm192, %v3422
      %3451 = vst.msk [vmem:[#allocation2 + $0x9a] sm:$0x3f] %vm348, %v3423
      %3452 = vst.msk [vmem:[#allocation2 + $0xa2] sm:$0xff] %vm192, %v3424
      %3453 = vst.msk [vmem:[#allocation2 + $0xaa] sm:$0x3f] %vm348, %v3425
      %3454 = vst.msk [vmem:[#allocation2 + $0xb2] sm:$0xff] %vm192, %v3426
      %3455 = vst.msk [vmem:[#allocation2 + $0xba] sm:$0x3f] %vm348, %v3427
      %3456 = vst.msk [vmem:[#allocation2 + $0xc2] sm:$0xff] %vm192, %v3428
      %3457 = vst.msk [vmem:[#allocation2 + $0xca] sm:$0x3f] %vm348, %v3429
      %3458 = vst.msk [vmem:[#allocation2 + $0xd2] sm:$0xff] %vm192, %v3430
      %3459 = vst.msk [vmem:[#allocation2 + $0xda] sm:$0x3f] %vm348, %v3431
      %v3460 = vld [vmem:[%s3315] sm:$0xff]
      %v3461 = vld [vmem:[%s3315 + $0x8] sm:$0x7f]
      %v3462 = vld [vmem:[%s3315 + $0x10] sm:$0xff]
      %v3463 = vld [vmem:[%s3315 + $0x18] sm:$0x7f]
      %v3464 = vld [vmem:[%s3315 + $0x20] sm:$0xff]
      %v3465 = vld [vmem:[%s3315 + $0x28] sm:$0x7f]
      %v3466 = vld [vmem:[%s3315 + $0x30] sm:$0xff]
      %v3467 = vld [vmem:[%s3315 + $0x38] sm:$0x7f]
      %v3468 = vld [vmem:[%s3315 + $0x40] sm:$0xff]
      %v3469 = vld [vmem:[%s3315 + $0x48] sm:$0x7f]
      %v3470 = vld [vmem:[%s3315 + $0x50] sm:$0xff]
      %v3471 = vld [vmem:[%s3315 + $0x58] sm:$0x7f]
      %v3472 = vld [vmem:[%s3315 + $0x60] sm:$0xff]
      %v3473 = vld [vmem:[%s3315 + $0x68] sm:$0x7f]
      %v3474 = vld [vmem:[%s3315 + $0x70] sm:$0xff]
      %v3475 = vld [vmem:[%s3315 + $0x78] sm:$0x7f]
      %v3476 = vld [vmem:[%s3315 + $0x80] sm:$0xff]
      %v3477 = vld [vmem:[%s3315 + $0x88] sm:$0x7f]
      %v3478 = vld [vmem:[%s3315 + $0x90] sm:$0xff]
      %v3479 = vld [vmem:[%s3315 + $0x98] sm:$0x7f]
      %v3480 = vld [vmem:[%s3315 + $0xa0] sm:$0xff]
      %v3481 = vld [vmem:[%s3315 + $0xa8] sm:$0x7f]
      %v3482 = vld [vmem:[%s3315 + $0xb0] sm:$0xff]
      %v3483 = vld [vmem:[%s3315 + $0xb8] sm:$0x7f]
      %v3484 = vld [vmem:[%s3315 + $0xc0] sm:$0xff]
      %v3485 = vld [vmem:[%s3315 + $0xc8] sm:$0x7f]
      %v3486 = vld [vmem:[%s3315 + $0xd0] sm:$0xff]
      %v3487 = vld [vmem:[%s3315 + $0xd8] sm:$0x7f]
      %v3488 = vlaneseq
      %v3489 = vshrl.u32 %v3488, 7
      %v3490 = vsub.s32 1, %v3489
      %v3491 = vrot.slane %v229, %v3490
      %v3492 = vmul.f32 %v3460, %v3491
      %v3493 = vmul.f32 %v3461, %v3491
      %v3494 = vmul.f32 %v3462, %v3491
      %v3495 = vmul.f32 %v3463, %v3491
      %v3496 = vmul.f32 %v3464, %v3491
      %v3497 = vmul.f32 %v3465, %v3491
      %v3498 = vmul.f32 %v3466, %v3491
      %v3499 = vmul.f32 %v3467, %v3491
      %v3500 = vmul.f32 %v3468, %v3491
      %v3501 = vmul.f32 %v3469, %v3491
      %v3502 = vmul.f32 %v3470, %v3491
      %v3503 = vmul.f32 %v3471, %v3491
      %v3504 = vmul.f32 %v3472, %v3491
      %v3505 = vmul.f32 %v3473, %v3491
      %v3506 = vmul.f32 %v3474, %v3491
      %v3507 = vmul.f32 %v3475, %v3491
      %v3508 = vmul.f32 %v3476, %v3491
      %v3509 = vmul.f32 %v3477, %v3491
      %v3510 = vmul.f32 %v3478, %v3491
      %v3511 = vmul.f32 %v3479, %v3491
      %v3512 = vmul.f32 %v3480, %v3491
      %v3513 = vmul.f32 %v3481, %v3491
      %v3514 = vmul.f32 %v3482, %v3491
      %v3515 = vmul.f32 %v3483, %v3491
      %v3516 = vmul.f32 %v3484, %v3491
      %v3517 = vmul.f32 %v3485, %v3491
      %v3518 = vmul.f32 %v3486, %v3491
      %v3519 = vmul.f32 %v3487, %v3491
      %v3520 = vld [vmem:[#allocation2 + $0x1] sm:$0xff]
      %v3521 = vld [vmem:[#allocation2 + $0x9] sm:$0x7f]
      %v3522 = vld [vmem:[#allocation2 + $0x11] sm:$0xff]
      %v3523 = vld [vmem:[#allocation2 + $0x19] sm:$0x7f]
      %v3524 = vld [vmem:[#allocation2 + $0x21] sm:$0xff]
      %v3525 = vld [vmem:[#allocation2 + $0x29] sm:$0x7f]
      %v3526 = vld [vmem:[#allocation2 + $0x31] sm:$0xff]
      %v3527 = vld [vmem:[#allocation2 + $0x39] sm:$0x7f]
      %v3528 = vld [vmem:[#allocation2 + $0x41] sm:$0xff]
      %v3529 = vld [vmem:[#allocation2 + $0x49] sm:$0x7f]
      %v3530 = vld [vmem:[#allocation2 + $0x51] sm:$0xff]
      %v3531 = vld [vmem:[#allocation2 + $0x59] sm:$0x7f]
      %v3532 = vld [vmem:[#allocation2 + $0x61] sm:$0xff]
      %v3533 = vld [vmem:[#allocation2 + $0x69] sm:$0x7f]
      %v3534 = vld [vmem:[#allocation2 + $0x71] sm:$0xff]
      %v3535 = vld [vmem:[#allocation2 + $0x79] sm:$0x7f]
      %v3536 = vld [vmem:[#allocation2 + $0x81] sm:$0xff]
      %v3537 = vld [vmem:[#allocation2 + $0x89] sm:$0x7f]
      %v3538 = vld [vmem:[#allocation2 + $0x91] sm:$0xff]
      %v3539 = vld [vmem:[#allocation2 + $0x99] sm:$0x7f]
      %v3540 = vld [vmem:[#allocation2 + $0xa1] sm:$0xff]
      %v3541 = vld [vmem:[#allocation2 + $0xa9] sm:$0x7f]
      %v3542 = vld [vmem:[#allocation2 + $0xb1] sm:$0xff]
      %v3543 = vld [vmem:[#allocation2 + $0xb9] sm:$0x7f]
      %v3544 = vld [vmem:[#allocation2 + $0xc1] sm:$0xff]
      %v3545 = vld [vmem:[#allocation2 + $0xc9] sm:$0x7f]
      %v3546 = vld [vmem:[#allocation2 + $0xd1] sm:$0xff]
      %v3547 = vld [vmem:[#allocation2 + $0xd9] sm:$0x7f]
      %v3548 = vadd.f32 %v3520, %v3492
      %v3549 = vadd.f32 %v3521, %v3493
      %v3550 = vadd.f32 %v3522, %v3494
      %v3551 = vadd.f32 %v3523, %v3495
      %v3552 = vadd.f32 %v3524, %v3496
      %v3553 = vadd.f32 %v3525, %v3497
      %v3554 = vadd.f32 %v3526, %v3498
      %v3555 = vadd.f32 %v3527, %v3499
      %v3556 = vadd.f32 %v3528, %v3500
      %v3557 = vadd.f32 %v3529, %v3501
      %v3558 = vadd.f32 %v3530, %v3502
      %v3559 = vadd.f32 %v3531, %v3503
      %v3560 = vadd.f32 %v3532, %v3504
      %v3561 = vadd.f32 %v3533, %v3505
      %v3562 = vadd.f32 %v3534, %v3506
      %v3563 = vadd.f32 %v3535, %v3507
      %v3564 = vadd.f32 %v3536, %v3508
      %v3565 = vadd.f32 %v3537, %v3509
      %v3566 = vadd.f32 %v3538, %v3510
      %v3567 = vadd.f32 %v3539, %v3511
      %v3568 = vadd.f32 %v3540, %v3512
      %v3569 = vadd.f32 %v3541, %v3513
      %v3570 = vadd.f32 %v3542, %v3514
      %v3571 = vadd.f32 %v3543, %v3515
      %v3572 = vadd.f32 %v3544, %v3516
      %v3573 = vadd.f32 %v3545, %v3517
      %v3574 = vadd.f32 %v3546, %v3518
      %v3575 = vadd.f32 %v3547, %v3519
      %3576 = vst.msk [vmem:[#allocation2 + $0x1] sm:$0xff] %vm192, %v3548
      %3577 = vst.msk [vmem:[#allocation2 + $0x9] sm:$0x7f] %vm493, %v3549
      %3578 = vst.msk [vmem:[#allocation2 + $0x11] sm:$0xff] %vm192, %v3550
      %3579 = vst.msk [vmem:[#allocation2 + $0x19] sm:$0x7f] %vm493, %v3551
      %3580 = vst.msk [vmem:[#allocation2 + $0x21] sm:$0xff] %vm192, %v3552
      %3581 = vst.msk [vmem:[#allocation2 + $0x29] sm:$0x7f] %vm493, %v3553
      %3582 = vst.msk [vmem:[#allocation2 + $0x31] sm:$0xff] %vm192, %v3554
      %3583 = vst.msk [vmem:[#allocation2 + $0x39] sm:$0x7f] %vm493, %v3555
      %3584 = vst.msk [vmem:[#allocation2 + $0x41] sm:$0xff] %vm192, %v3556
      %3585 = vst.msk [vmem:[#allocation2 + $0x49] sm:$0x7f] %vm493, %v3557
      %3586 = vst.msk [vmem:[#allocation2 + $0x51] sm:$0xff] %vm192, %v3558
      %3587 = vst.msk [vmem:[#allocation2 + $0x59] sm:$0x7f] %vm493, %v3559
      %3588 = vst.msk [vmem:[#allocation2 + $0x61] sm:$0xff] %vm192, %v3560
      %3589 = vst.msk [vmem:[#allocation2 + $0x69] sm:$0x7f] %vm493, %v3561
      %3590 = vst.msk [vmem:[#allocation2 + $0x71] sm:$0xff] %vm192, %v3562
      %3591 = vst.msk [vmem:[#allocation2 + $0x79] sm:$0x7f] %vm493, %v3563
      %3592 = vst.msk [vmem:[#allocation2 + $0x81] sm:$0xff] %vm192, %v3564
      %3593 = vst.msk [vmem:[#allocation2 + $0x89] sm:$0x7f] %vm493, %v3565
      %3594 = vst.msk [vmem:[#allocation2 + $0x91] sm:$0xff] %vm192, %v3566
      %3595 = vst.msk [vmem:[#allocation2 + $0x99] sm:$0x7f] %vm493, %v3567
      %3596 = vst.msk [vmem:[#allocation2 + $0xa1] sm:$0xff] %vm192, %v3568
      %3597 = vst.msk [vmem:[#allocation2 + $0xa9] sm:$0x7f] %vm493, %v3569
      %3598 = vst.msk [vmem:[#allocation2 + $0xb1] sm:$0xff] %vm192, %v3570
      %3599 = vst.msk [vmem:[#allocation2 + $0xb9] sm:$0x7f] %vm493, %v3571
      %3600 = vst.msk [vmem:[#allocation2 + $0xc1] sm:$0xff] %vm192, %v3572
      %3601 = vst.msk [vmem:[#allocation2 + $0xc9] sm:$0x7f] %vm493, %v3573
      %3602 = vst.msk [vmem:[#allocation2 + $0xd1] sm:$0xff] %vm192, %v3574
      %3603 = vst.msk [vmem:[#allocation2 + $0xd9] sm:$0x7f] %vm493, %v3575
      %v3604 = vld [vmem:[%s3315] sm:$0xff]
      %v3605 = vld [vmem:[%s3315 + $0x8] sm:$0xff]
      %v3606 = vld [vmem:[%s3315 + $0x10] sm:$0xff]
      %v3607 = vld [vmem:[%s3315 + $0x18] sm:$0xff]
      %v3608 = vld [vmem:[%s3315 + $0x20] sm:$0xff]
      %v3609 = vld [vmem:[%s3315 + $0x28] sm:$0xff]
      %v3610 = vld [vmem:[%s3315 + $0x30] sm:$0xff]
      %v3611 = vld [vmem:[%s3315 + $0x38] sm:$0xff]
      %v3612 = vld [vmem:[%s3315 + $0x40] sm:$0xff]
      %v3613 = vld [vmem:[%s3315 + $0x48] sm:$0xff]
      %v3614 = vld [vmem:[%s3315 + $0x50] sm:$0xff]
      %v3615 = vld [vmem:[%s3315 + $0x58] sm:$0xff]
      %v3616 = vld [vmem:[%s3315 + $0x60] sm:$0xff]
      %v3617 = vld [vmem:[%s3315 + $0x68] sm:$0xff]
      %v3618 = vld [vmem:[%s3315 + $0x70] sm:$0xff]
      %v3619 = vld [vmem:[%s3315 + $0x78] sm:$0xff]
      %v3620 = vld [vmem:[%s3315 + $0x80] sm:$0xff]
      %v3621 = vld [vmem:[%s3315 + $0x88] sm:$0xff]
      %v3622 = vld [vmem:[%s3315 + $0x90] sm:$0xff]
      %v3623 = vld [vmem:[%s3315 + $0x98] sm:$0xff]
      %v3624 = vld [vmem:[%s3315 + $0xa0] sm:$0xff]
      %v3625 = vld [vmem:[%s3315 + $0xa8] sm:$0xff]
      %v3626 = vld [vmem:[%s3315 + $0xb0] sm:$0xff]
      %v3627 = vld [vmem:[%s3315 + $0xb8] sm:$0xff]
      %v3628 = vld [vmem:[%s3315 + $0xc0] sm:$0xff]
      %v3629 = vld [vmem:[%s3315 + $0xc8] sm:$0xff]
      %v3630 = vld [vmem:[%s3315 + $0xd0] sm:$0xff]
      %v3631 = vld [vmem:[%s3315 + $0xd8] sm:$0xff]
      %v3632 = vlaneseq
      %v3633 = vshrl.u32 %v3632, 7
      %v3634 = vsub.s32 2, %v3633
      %v3635 = vrot.slane %v229, %v3634
      %v3636 = vmul.f32 %v3604, %v3635
      %v3637 = vmul.f32 %v3605, %v3635
      %v3638 = vmul.f32 %v3606, %v3635
      %v3639 = vmul.f32 %v3607, %v3635
      %v3640 = vmul.f32 %v3608, %v3635
      %v3641 = vmul.f32 %v3609, %v3635
      %v3642 = vmul.f32 %v3610, %v3635
      %v3643 = vmul.f32 %v3611, %v3635
      %v3644 = vmul.f32 %v3612, %v3635
      %v3645 = vmul.f32 %v3613, %v3635
      %v3646 = vmul.f32 %v3614, %v3635
      %v3647 = vmul.f32 %v3615, %v3635
      %v3648 = vmul.f32 %v3616, %v3635
      %v3649 = vmul.f32 %v3617, %v3635
      %v3650 = vmul.f32 %v3618, %v3635
      %v3651 = vmul.f32 %v3619, %v3635
      %v3652 = vmul.f32 %v3620, %v3635
      %v3653 = vmul.f32 %v3621, %v3635
      %v3654 = vmul.f32 %v3622, %v3635
      %v3655 = vmul.f32 %v3623, %v3635
      %v3656 = vmul.f32 %v3624, %v3635
      %v3657 = vmul.f32 %v3625, %v3635
      %v3658 = vmul.f32 %v3626, %v3635
      %v3659 = vmul.f32 %v3627, %v3635
      %v3660 = vmul.f32 %v3628, %v3635
      %v3661 = vmul.f32 %v3629, %v3635
      %v3662 = vmul.f32 %v3630, %v3635
      %v3663 = vmul.f32 %v3631, %v3635
      %v3664 = vld [vmem:[#allocation2] sm:$0xff]
      %v3665 = vld [vmem:[#allocation2 + $0x8] sm:$0xff]
      %v3666 = vld [vmem:[#allocation2 + $0x10] sm:$0xff]
      %v3667 = vld [vmem:[#allocation2 + $0x18] sm:$0xff]
      %v3668 = vld [vmem:[#allocation2 + $0x20] sm:$0xff]
      %v3669 = vld [vmem:[#allocation2 + $0x28] sm:$0xff]
      %v3670 = vld [vmem:[#allocation2 + $0x30] sm:$0xff]
      %v3671 = vld [vmem:[#allocation2 + $0x38] sm:$0xff]
      %v3672 = vld [vmem:[#allocation2 + $0x40] sm:$0xff]
      %v3673 = vld [vmem:[#allocation2 + $0x48] sm:$0xff]
      %v3674 = vld [vmem:[#allocation2 + $0x50] sm:$0xff]
      %v3675 = vld [vmem:[#allocation2 + $0x58] sm:$0xff]
      %v3676 = vld [vmem:[#allocation2 + $0x60] sm:$0xff]
      %v3677 = vld [vmem:[#allocation2 + $0x68] sm:$0xff]
      %v3678 = vld [vmem:[#allocation2 + $0x70] sm:$0xff]
      %v3679 = vld [vmem:[#allocation2 + $0x78] sm:$0xff]
      %v3680 = vld [vmem:[#allocation2 + $0x80] sm:$0xff]
      %v3681 = vld [vmem:[#allocation2 + $0x88] sm:$0xff]
      %v3682 = vld [vmem:[#allocation2 + $0x90] sm:$0xff]
      %v3683 = vld [vmem:[#allocation2 + $0x98] sm:$0xff]
      %v3684 = vld [vmem:[#allocation2 + $0xa0] sm:$0xff]
      %v3685 = vld [vmem:[#allocation2 + $0xa8] sm:$0xff]
      %v3686 = vld [vmem:[#allocation2 + $0xb0] sm:$0xff]
      %v3687 = vld [vmem:[#allocation2 + $0xb8] sm:$0xff]
      %v3688 = vld [vmem:[#allocation2 + $0xc0] sm:$0xff]
      %v3689 = vld [vmem:[#allocation2 + $0xc8] sm:$0xff]
      %v3690 = vld [vmem:[#allocation2 + $0xd0] sm:$0xff]
      %v3691 = vld [vmem:[#allocation2 + $0xd8] sm:$0xff]
      %v3692 = vadd.f32 %v3664, %v3636
      %v3693 = vadd.f32 %v3665, %v3637
      %v3694 = vadd.f32 %v3666, %v3638
      %v3695 = vadd.f32 %v3667, %v3639
      %v3696 = vadd.f32 %v3668, %v3640
      %v3697 = vadd.f32 %v3669, %v3641
      %v3698 = vadd.f32 %v3670, %v3642
      %v3699 = vadd.f32 %v3671, %v3643
      %v3700 = vadd.f32 %v3672, %v3644
      %v3701 = vadd.f32 %v3673, %v3645
      %v3702 = vadd.f32 %v3674, %v3646
      %v3703 = vadd.f32 %v3675, %v3647
      %v3704 = vadd.f32 %v3676, %v3648
      %v3705 = vadd.f32 %v3677, %v3649
      %v3706 = vadd.f32 %v3678, %v3650
      %v3707 = vadd.f32 %v3679, %v3651
      %v3708 = vadd.f32 %v3680, %v3652
      %v3709 = vadd.f32 %v3681, %v3653
      %v3710 = vadd.f32 %v3682, %v3654
      %v3711 = vadd.f32 %v3683, %v3655
      %v3712 = vadd.f32 %v3684, %v3656
      %v3713 = vadd.f32 %v3685, %v3657
      %v3714 = vadd.f32 %v3686, %v3658
      %v3715 = vadd.f32 %v3687, %v3659
      %v3716 = vadd.f32 %v3688, %v3660
      %v3717 = vadd.f32 %v3689, %v3661
      %v3718 = vadd.f32 %v3690, %v3662
      %v3719 = vadd.f32 %v3691, %v3663
      %3720 = vst.msk [vmem:[#allocation2] sm:$0xff] %vm192, %v3692
      %3721 = vst.msk [vmem:[#allocation2 + $0x8] sm:$0xff] %vm192, %v3693
      %3722 = vst.msk [vmem:[#allocation2 + $0x10] sm:$0xff] %vm192, %v3694
      %3723 = vst.msk [vmem:[#allocation2 + $0x18] sm:$0xff] %vm192, %v3695
      %3724 = vst.msk [vmem:[#allocation2 + $0x20] sm:$0xff] %vm192, %v3696
      %3725 = vst.msk [vmem:[#allocation2 + $0x28] sm:$0xff] %vm192, %v3697
      %3726 = vst.msk [vmem:[#allocation2 + $0x30] sm:$0xff] %vm192, %v3698
      %3727 = vst.msk [vmem:[#allocation2 + $0x38] sm:$0xff] %vm192, %v3699
      %3728 = vst.msk [vmem:[#allocation2 + $0x40] sm:$0xff] %vm192, %v3700
      %3729 = vst.msk [vmem:[#allocation2 + $0x48] sm:$0xff] %vm192, %v3701
      %3730 = vst.msk [vmem:[#allocation2 + $0x50] sm:$0xff] %vm192, %v3702
      %3731 = vst.msk [vmem:[#allocation2 + $0x58] sm:$0xff] %vm192, %v3703
      %3732 = vst.msk [vmem:[#allocation2 + $0x60] sm:$0xff] %vm192, %v3704
      %3733 = vst.msk [vmem:[#allocation2 + $0x68] sm:$0xff] %vm192, %v3705
      %3734 = vst.msk [vmem:[#allocation2 + $0x70] sm:$0xff] %vm192, %v3706
      %3735 = vst.msk [vmem:[#allocation2 + $0x78] sm:$0xff] %vm192, %v3707
      %3736 = vst.msk [vmem:[#allocation2 + $0x80] sm:$0xff] %vm192, %v3708
      %3737 = vst.msk [vmem:[#allocation2 + $0x88] sm:$0xff] %vm192, %v3709
      %3738 = vst.msk [vmem:[#allocation2 + $0x90] sm:$0xff] %vm192, %v3710
      %3739 = vst.msk [vmem:[#allocation2 + $0x98] sm:$0xff] %vm192, %v3711
      %3740 = vst.msk [vmem:[#allocation2 + $0xa0] sm:$0xff] %vm192, %v3712
      %3741 = vst.msk [vmem:[#allocation2 + $0xa8] sm:$0xff] %vm192, %v3713
      %3742 = vst.msk [vmem:[#allocation2 + $0xb0] sm:$0xff] %vm192, %v3714
      %3743 = vst.msk [vmem:[#allocation2 + $0xb8] sm:$0xff] %vm192, %v3715
      %3744 = vst.msk [vmem:[#allocation2 + $0xc0] sm:$0xff] %vm192, %v3716
      %3745 = vst.msk [vmem:[#allocation2 + $0xc8] sm:$0xff] %vm192, %v3717
      %3746 = vst.msk [vmem:[#allocation2 + $0xd0] sm:$0xff] %vm192, %v3718
      %3747 = vst.msk [vmem:[#allocation2 + $0xd8] sm:$0xff] %vm192, %v3719
      %v3748 = vld [vmem:[%s3315 + $0x1] sm:$0xff]
      %v3749 = vld [vmem:[%s3315 + $0x9] sm:$0x7f]
      %v3750 = vld [vmem:[%s3315 + $0x11] sm:$0xff]
      %v3751 = vld [vmem:[%s3315 + $0x19] sm:$0x7f]
      %v3752 = vld [vmem:[%s3315 + $0x21] sm:$0xff]
      %v3753 = vld [vmem:[%s3315 + $0x29] sm:$0x7f]
      %v3754 = vld [vmem:[%s3315 + $0x31] sm:$0xff]
      %v3755 = vld [vmem:[%s3315 + $0x39] sm:$0x7f]
      %v3756 = vld [vmem:[%s3315 + $0x41] sm:$0xff]
      %v3757 = vld [vmem:[%s3315 + $0x49] sm:$0x7f]
      %v3758 = vld [vmem:[%s3315 + $0x51] sm:$0xff]
      %v3759 = vld [vmem:[%s3315 + $0x59] sm:$0x7f]
      %v3760 = vld [vmem:[%s3315 + $0x61] sm:$0xff]
      %v3761 = vld [vmem:[%s3315 + $0x69] sm:$0x7f]
      %v3762 = vld [vmem:[%s3315 + $0x71] sm:$0xff]
      %v3763 = vld [vmem:[%s3315 + $0x79] sm:$0x7f]
      %v3764 = vld [vmem:[%s3315 + $0x81] sm:$0xff]
      %v3765 = vld [vmem:[%s3315 + $0x89] sm:$0x7f]
      %v3766 = vld [vmem:[%s3315 + $0x91] sm:$0xff]
      %v3767 = vld [vmem:[%s3315 + $0x99] sm:$0x7f]
      %v3768 = vld [vmem:[%s3315 + $0xa1] sm:$0xff]
      %v3769 = vld [vmem:[%s3315 + $0xa9] sm:$0x7f]
      %v3770 = vld [vmem:[%s3315 + $0xb1] sm:$0xff]
      %v3771 = vld [vmem:[%s3315 + $0xb9] sm:$0x7f]
      %v3772 = vld [vmem:[%s3315 + $0xc1] sm:$0xff]
      %v3773 = vld [vmem:[%s3315 + $0xc9] sm:$0x7f]
      %v3774 = vld [vmem:[%s3315 + $0xd1] sm:$0xff]
      %v3775 = vld [vmem:[%s3315 + $0xd9] sm:$0x7f]
      %v3776 = vlaneseq
      %v3777 = vshrl.u32 %v3776, 7
      %v3778 = vsub.s32 3, %v3777
      %v3779 = vrot.slane %v229, %v3778
      %v3780 = vmul.f32 %v3748, %v3779
      %v3781 = vmul.f32 %v3749, %v3779
      %v3782 = vmul.f32 %v3750, %v3779
      %v3783 = vmul.f32 %v3751, %v3779
      %v3784 = vmul.f32 %v3752, %v3779
      %v3785 = vmul.f32 %v3753, %v3779
      %v3786 = vmul.f32 %v3754, %v3779
      %v3787 = vmul.f32 %v3755, %v3779
      %v3788 = vmul.f32 %v3756, %v3779
      %v3789 = vmul.f32 %v3757, %v3779
      %v3790 = vmul.f32 %v3758, %v3779
      %v3791 = vmul.f32 %v3759, %v3779
      %v3792 = vmul.f32 %v3760, %v3779
      %v3793 = vmul.f32 %v3761, %v3779
      %v3794 = vmul.f32 %v3762, %v3779
      %v3795 = vmul.f32 %v3763, %v3779
      %v3796 = vmul.f32 %v3764, %v3779
      %v3797 = vmul.f32 %v3765, %v3779
      %v3798 = vmul.f32 %v3766, %v3779
      %v3799 = vmul.f32 %v3767, %v3779
      %v3800 = vmul.f32 %v3768, %v3779
      %v3801 = vmul.f32 %v3769, %v3779
      %v3802 = vmul.f32 %v3770, %v3779
      %v3803 = vmul.f32 %v3771, %v3779
      %v3804 = vmul.f32 %v3772, %v3779
      %v3805 = vmul.f32 %v3773, %v3779
      %v3806 = vmul.f32 %v3774, %v3779
      %v3807 = vmul.f32 %v3775, %v3779
      %v3808 = vld [vmem:[#allocation2] sm:$0xff]
      %v3809 = vld [vmem:[#allocation2 + $0x8] sm:$0x7f]
      %v3810 = vld [vmem:[#allocation2 + $0x10] sm:$0xff]
      %v3811 = vld [vmem:[#allocation2 + $0x18] sm:$0x7f]
      %v3812 = vld [vmem:[#allocation2 + $0x20] sm:$0xff]
      %v3813 = vld [vmem:[#allocation2 + $0x28] sm:$0x7f]
      %v3814 = vld [vmem:[#allocation2 + $0x30] sm:$0xff]
      %v3815 = vld [vmem:[#allocation2 + $0x38] sm:$0x7f]
      %v3816 = vld [vmem:[#allocation2 + $0x40] sm:$0xff]
      %v3817 = vld [vmem:[#allocation2 + $0x48] sm:$0x7f]
      %v3818 = vld [vmem:[#allocation2 + $0x50] sm:$0xff]
      %v3819 = vld [vmem:[#allocation2 + $0x58] sm:$0x7f]
      %v3820 = vld [vmem:[#allocation2 + $0x60] sm:$0xff]
      %v3821 = vld [vmem:[#allocation2 + $0x68] sm:$0x7f]
      %v3822 = vld [vmem:[#allocation2 + $0x70] sm:$0xff]
      %v3823 = vld [vmem:[#allocation2 + $0x78] sm:$0x7f]
      %v3824 = vld [vmem:[#allocation2 + $0x80] sm:$0xff]
      %v3825 = vld [vmem:[#allocation2 + $0x88] sm:$0x7f]
      %v3826 = vld [vmem:[#allocation2 + $0x90] sm:$0xff]
      %v3827 = vld [vmem:[#allocation2 + $0x98] sm:$0x7f]
      %v3828 = vld [vmem:[#allocation2 + $0xa0] sm:$0xff]
      %v3829 = vld [vmem:[#allocation2 + $0xa8] sm:$0x7f]
      %v3830 = vld [vmem:[#allocation2 + $0xb0] sm:$0xff]
      %v3831 = vld [vmem:[#allocation2 + $0xb8] sm:$0x7f]
      %v3832 = vld [vmem:[#allocation2 + $0xc0] sm:$0xff]
      %v3833 = vld [vmem:[#allocation2 + $0xc8] sm:$0x7f]
      %v3834 = vld [vmem:[#allocation2 + $0xd0] sm:$0xff]
      %v3835 = vld [vmem:[#allocation2 + $0xd8] sm:$0x7f]
      %v3836 = vadd.f32 %v3808, %v3780
      %v3837 = vadd.f32 %v3809, %v3781
      %v3838 = vadd.f32 %v3810, %v3782
      %v3839 = vadd.f32 %v3811, %v3783
      %v3840 = vadd.f32 %v3812, %v3784
      %v3841 = vadd.f32 %v3813, %v3785
      %v3842 = vadd.f32 %v3814, %v3786
      %v3843 = vadd.f32 %v3815, %v3787
      %v3844 = vadd.f32 %v3816, %v3788
      %v3845 = vadd.f32 %v3817, %v3789
      %v3846 = vadd.f32 %v3818, %v3790
      %v3847 = vadd.f32 %v3819, %v3791
      %v3848 = vadd.f32 %v3820, %v3792
      %v3849 = vadd.f32 %v3821, %v3793
      %v3850 = vadd.f32 %v3822, %v3794
      %v3851 = vadd.f32 %v3823, %v3795
      %v3852 = vadd.f32 %v3824, %v3796
      %v3853 = vadd.f32 %v3825, %v3797
      %v3854 = vadd.f32 %v3826, %v3798
      %v3855 = vadd.f32 %v3827, %v3799
      %v3856 = vadd.f32 %v3828, %v3800
      %v3857 = vadd.f32 %v3829, %v3801
      %v3858 = vadd.f32 %v3830, %v3802
      %v3859 = vadd.f32 %v3831, %v3803
      %v3860 = vadd.f32 %v3832, %v3804
      %v3861 = vadd.f32 %v3833, %v3805
      %v3862 = vadd.f32 %v3834, %v3806
      %v3863 = vadd.f32 %v3835, %v3807
      %3864 = vst.msk [vmem:[#allocation2] sm:$0xff] %vm192, %v3836
      %3865 = vst.msk [vmem:[#allocation2 + $0x8] sm:$0x7f] %vm493, %v3837
      %3866 = vst.msk [vmem:[#allocation2 + $0x10] sm:$0xff] %vm192, %v3838
      %3867 = vst.msk [vmem:[#allocation2 + $0x18] sm:$0x7f] %vm493, %v3839
      %3868 = vst.msk [vmem:[#allocation2 + $0x20] sm:$0xff] %vm192, %v3840
      %3869 = vst.msk [vmem:[#allocation2 + $0x28] sm:$0x7f] %vm493, %v3841
      %3870 = vst.msk [vmem:[#allocation2 + $0x30] sm:$0xff] %vm192, %v3842
      %3871 = vst.msk [vmem:[#allocation2 + $0x38] sm:$0x7f] %vm493, %v3843
      %3872 = vst.msk [vmem:[#allocation2 + $0x40] sm:$0xff] %vm192, %v3844
      %3873 = vst.msk [vmem:[#allocation2 + $0x48] sm:$0x7f] %vm493, %v3845
      %3874 = vst.msk [vmem:[#allocation2 + $0x50] sm:$0xff] %vm192, %v3846
      %3875 = vst.msk [vmem:[#allocation2 + $0x58] sm:$0x7f] %vm493, %v3847
      %3876 = vst.msk [vmem:[#allocation2 + $0x60] sm:$0xff] %vm192, %v3848
      %3877 = vst.msk [vmem:[#allocation2 + $0x68] sm:$0x7f] %vm493, %v3849
      %3878 = vst.msk [vmem:[#allocation2 + $0x70] sm:$0xff] %vm192, %v3850
      %3879 = vst.msk [vmem:[#allocation2 + $0x78] sm:$0x7f] %vm493, %v3851
      %3880 = vst.msk [vmem:[#allocation2 + $0x80] sm:$0xff] %vm192, %v3852
      %3881 = vst.msk [vmem:[#allocation2 + $0x88] sm:$0x7f] %vm493, %v3853
      %3882 = vst.msk [vmem:[#allocation2 + $0x90] sm:$0xff] %vm192, %v3854
      %3883 = vst.msk [vmem:[#allocation2 + $0x98] sm:$0x7f] %vm493, %v3855
      %3884 = vst.msk [vmem:[#allocation2 + $0xa0] sm:$0xff] %vm192, %v3856
      %3885 = vst.msk [vmem:[#allocation2 + $0xa8] sm:$0x7f] %vm493, %v3857
      %3886 = vst.msk [vmem:[#allocation2 + $0xb0] sm:$0xff] %vm192, %v3858
      %3887 = vst.msk [vmem:[#allocation2 + $0xb8] sm:$0x7f] %vm493, %v3859
      %3888 = vst.msk [vmem:[#allocation2 + $0xc0] sm:$0xff] %vm192, %v3860
      %3889 = vst.msk [vmem:[#allocation2 + $0xc8] sm:$0x7f] %vm493, %v3861
      %3890 = vst.msk [vmem:[#allocation2 + $0xd0] sm:$0xff] %vm192, %v3862
      %3891 = vst.msk [vmem:[#allocation2 + $0xd8] sm:$0x7f] %vm493, %v3863
      %v3892 = vld [vmem:[%s3315 + $0x2] sm:$0xff]
      %v3893 = vld [vmem:[%s3315 + $0xa] sm:$0x3f]
      %v3894 = vld [vmem:[%s3315 + $0x12] sm:$0xff]
      %v3895 = vld [vmem:[%s3315 + $0x1a] sm:$0x3f]
      %v3896 = vld [vmem:[%s3315 + $0x22] sm:$0xff]
      %v3897 = vld [vmem:[%s3315 + $0x2a] sm:$0x3f]
      %v3898 = vld [vmem:[%s3315 + $0x32] sm:$0xff]
      %v3899 = vld [vmem:[%s3315 + $0x3a] sm:$0x3f]
      %v3900 = vld [vmem:[%s3315 + $0x42] sm:$0xff]
      %v3901 = vld [vmem:[%s3315 + $0x4a] sm:$0x3f]
      %v3902 = vld [vmem:[%s3315 + $0x52] sm:$0xff]
      %v3903 = vld [vmem:[%s3315 + $0x5a] sm:$0x3f]
      %v3904 = vld [vmem:[%s3315 + $0x62] sm:$0xff]
      %v3905 = vld [vmem:[%s3315 + $0x6a] sm:$0x3f]
      %v3906 = vld [vmem:[%s3315 + $0x72] sm:$0xff]
      %v3907 = vld [vmem:[%s3315 + $0x7a] sm:$0x3f]
      %v3908 = vld [vmem:[%s3315 + $0x82] sm:$0xff]
      %v3909 = vld [vmem:[%s3315 + $0x8a] sm:$0x3f]
      %v3910 = vld [vmem:[%s3315 + $0x92] sm:$0xff]
      %v3911 = vld [vmem:[%s3315 + $0x9a] sm:$0x3f]
      %v3912 = vld [vmem:[%s3315 + $0xa2] sm:$0xff]
      %v3913 = vld [vmem:[%s3315 + $0xaa] sm:$0x3f]
      %v3914 = vld [vmem:[%s3315 + $0xb2] sm:$0xff]
      %v3915 = vld [vmem:[%s3315 + $0xba] sm:$0x3f]
      %v3916 = vld [vmem:[%s3315 + $0xc2] sm:$0xff]
      %v3917 = vld [vmem:[%s3315 + $0xca] sm:$0x3f]
      %v3918 = vld [vmem:[%s3315 + $0xd2] sm:$0xff]
      %v3919 = vld [vmem:[%s3315 + $0xda] sm:$0x3f]
      %v3920 = vlaneseq
      %v3921 = vshrl.u32 %v3920, 7
      %v3922 = vsub.s32 4, %v3921
      %v3923 = vrot.slane %v229, %v3922
      %v3924 = vmul.f32 %v3892, %v3923
      %v3925 = vmul.f32 %v3893, %v3923
      %v3926 = vmul.f32 %v3894, %v3923
      %v3927 = vmul.f32 %v3895, %v3923
      %v3928 = vmul.f32 %v3896, %v3923
      %v3929 = vmul.f32 %v3897, %v3923
      %v3930 = vmul.f32 %v3898, %v3923
      %v3931 = vmul.f32 %v3899, %v3923
      %v3932 = vmul.f32 %v3900, %v3923
      %v3933 = vmul.f32 %v3901, %v3923
      %v3934 = vmul.f32 %v3902, %v3923
      %v3935 = vmul.f32 %v3903, %v3923
      %v3936 = vmul.f32 %v3904, %v3923
      %v3937 = vmul.f32 %v3905, %v3923
      %v3938 = vmul.f32 %v3906, %v3923
      %v3939 = vmul.f32 %v3907, %v3923
      %v3940 = vmul.f32 %v3908, %v3923
      %v3941 = vmul.f32 %v3909, %v3923
      %v3942 = vmul.f32 %v3910, %v3923
      %v3943 = vmul.f32 %v3911, %v3923
      %v3944 = vmul.f32 %v3912, %v3923
      %v3945 = vmul.f32 %v3913, %v3923
      %v3946 = vmul.f32 %v3914, %v3923
      %v3947 = vmul.f32 %v3915, %v3923
      %v3948 = vmul.f32 %v3916, %v3923
      %v3949 = vmul.f32 %v3917, %v3923
      %v3950 = vmul.f32 %v3918, %v3923
      %v3951 = vmul.f32 %v3919, %v3923
      %v3952 = vld [vmem:[#allocation2] sm:$0xff]
      %v3953 = vld [vmem:[#allocation2 + $0x8] sm:$0x3f]
      %v3954 = vld [vmem:[#allocation2 + $0x10] sm:$0xff]
      %v3955 = vld [vmem:[#allocation2 + $0x18] sm:$0x3f]
      %v3956 = vld [vmem:[#allocation2 + $0x20] sm:$0xff]
      %v3957 = vld [vmem:[#allocation2 + $0x28] sm:$0x3f]
      %v3958 = vld [vmem:[#allocation2 + $0x30] sm:$0xff]
      %v3959 = vld [vmem:[#allocation2 + $0x38] sm:$0x3f]
      %v3960 = vld [vmem:[#allocation2 + $0x40] sm:$0xff]
      %v3961 = vld [vmem:[#allocation2 + $0x48] sm:$0x3f]
      %v3962 = vld [vmem:[#allocation2 + $0x50] sm:$0xff]
      %v3963 = vld [vmem:[#allocation2 + $0x58] sm:$0x3f]
      %v3964 = vld [vmem:[#allocation2 + $0x60] sm:$0xff]
      %v3965 = vld [vmem:[#allocation2 + $0x68] sm:$0x3f]
      %v3966 = vld [vmem:[#allocation2 + $0x70] sm:$0xff]
      %v3967 = vld [vmem:[#allocation2 + $0x78] sm:$0x3f]
      %v3968 = vld [vmem:[#allocation2 + $0x80] sm:$0xff]
      %v3969 = vld [vmem:[#allocation2 + $0x88] sm:$0x3f]
      %v3970 = vld [vmem:[#allocation2 + $0x90] sm:$0xff]
      %v3971 = vld [vmem:[#allocation2 + $0x98] sm:$0x3f]
      %v3972 = vld [vmem:[#allocation2 + $0xa0] sm:$0xff]
      %v3973 = vld [vmem:[#allocation2 + $0xa8] sm:$0x3f]
      %v3974 = vld [vmem:[#allocation2 + $0xb0] sm:$0xff]
      %v3975 = vld [vmem:[#allocation2 + $0xb8] sm:$0x3f]
      %v3976 = vld [vmem:[#allocation2 + $0xc0] sm:$0xff]
      %v3977 = vld [vmem:[#allocation2 + $0xc8] sm:$0x3f]
      %v3978 = vld [vmem:[#allocation2 + $0xd0] sm:$0xff]
      %v3979 = vld [vmem:[#allocation2 + $0xd8] sm:$0x3f]
      %v3980 = vadd.f32 %v3952, %v3924
      %v3981 = vadd.f32 %v3953, %v3925
      %v3982 = vadd.f32 %v3954, %v3926
      %v3983 = vadd.f32 %v3955, %v3927
      %v3984 = vadd.f32 %v3956, %v3928
      %v3985 = vadd.f32 %v3957, %v3929
      %v3986 = vadd.f32 %v3958, %v3930
      %v3987 = vadd.f32 %v3959, %v3931
      %v3988 = vadd.f32 %v3960, %v3932
      %v3989 = vadd.f32 %v3961, %v3933
      %v3990 = vadd.f32 %v3962, %v3934
      %v3991 = vadd.f32 %v3963, %v3935
      %v3992 = vadd.f32 %v3964, %v3936
      %v3993 = vadd.f32 %v3965, %v3937
      %v3994 = vadd.f32 %v3966, %v3938
      %v3995 = vadd.f32 %v3967, %v3939
      %v3996 = vadd.f32 %v3968, %v3940
      %v3997 = vadd.f32 %v3969, %v3941
      %v3998 = vadd.f32 %v3970, %v3942
      %v3999 = vadd.f32 %v3971, %v3943
      %v4000 = vadd.f32 %v3972, %v3944
      %v4001 = vadd.f32 %v3973, %v3945
      %v4002 = vadd.f32 %v3974, %v3946
      %v4003 = vadd.f32 %v3975, %v3947
      %v4004 = vadd.f32 %v3976, %v3948
      %v4005 = vadd.f32 %v3977, %v3949
      %v4006 = vadd.f32 %v3978, %v3950
      %v4007 = vadd.f32 %v3979, %v3951
      %4008 = vst.msk [vmem:[#allocation2] sm:$0xff] %vm192, %v3980
      %4009 = vst.msk [vmem:[#allocation2 + $0x8] sm:$0x3f] %vm348, %v3981
      %4010 = vst.msk [vmem:[#allocation2 + $0x10] sm:$0xff] %vm192, %v3982
      %4011 = vst.msk [vmem:[#allocation2 + $0x18] sm:$0x3f] %vm348, %v3983
      %4012 = vst.msk [vmem:[#allocation2 + $0x20] sm:$0xff] %vm192, %v3984
      %4013 = vst.msk [vmem:[#allocation2 + $0x28] sm:$0x3f] %vm348, %v3985
      %4014 = vst.msk [vmem:[#allocation2 + $0x30] sm:$0xff] %vm192, %v3986
      %4015 = vst.msk [vmem:[#allocation2 + $0x38] sm:$0x3f] %vm348, %v3987
      %4016 = vst.msk [vmem:[#allocation2 + $0x40] sm:$0xff] %vm192, %v3988
      %4017 = vst.msk [vmem:[#allocation2 + $0x48] sm:$0x3f] %vm348, %v3989
      %4018 = vst.msk [vmem:[#allocation2 + $0x50] sm:$0xff] %vm192, %v3990
      %4019 = vst.msk [vmem:[#allocation2 + $0x58] sm:$0x3f] %vm348, %v3991
      %4020 = vst.msk [vmem:[#allocation2 + $0x60] sm:$0xff] %vm192, %v3992
      %4021 = vst.msk [vmem:[#allocation2 + $0x68] sm:$0x3f] %vm348, %v3993
      %4022 = vst.msk [vmem:[#allocation2 + $0x70] sm:$0xff] %vm192, %v3994
      %4023 = vst.msk [vmem:[#allocation2 + $0x78] sm:$0x3f] %vm348, %v3995
      %4024 = vst.msk [vmem:[#allocation2 + $0x80] sm:$0xff] %vm192, %v3996
      %4025 = vst.msk [vmem:[#allocation2 + $0x88] sm:$0x3f] %vm348, %v3997
      %4026 = vst.msk [vmem:[#allocation2 + $0x90] sm:$0xff] %vm192, %v3998
      %4027 = vst.msk [vmem:[#allocation2 + $0x98] sm:$0x3f] %vm348, %v3999
      %4028 = vst.msk [vmem:[#allocation2 + $0xa0] sm:$0xff] %vm192, %v4000
      %4029 = vst.msk [vmem:[#allocation2 + $0xa8] sm:$0x3f] %vm348, %v4001
      %4030 = vst.msk [vmem:[#allocation2 + $0xb0] sm:$0xff] %vm192, %v4002
      %4031 = vst.msk [vmem:[#allocation2 + $0xb8] sm:$0x3f] %vm348, %v4003
      %4032 = vst.msk [vmem:[#allocation2 + $0xc0] sm:$0xff] %vm192, %v4004
      %4033 = vst.msk [vmem:[#allocation2 + $0xc8] sm:$0x3f] %vm348, %v4005
      %4034 = vst.msk [vmem:[#allocation2 + $0xd0] sm:$0xff] %vm192, %v4006
      %4035 = vst.msk [vmem:[#allocation2 + $0xd8] sm:$0x3f] %vm348, %v4007
      %v4036 = vld [vmem:[#allocation2] sm:$0xff]
      %v4037 = vld [vmem:[#allocation2 + $0x8] sm:$0xff]
      %v4038 = vld [vmem:[#allocation2 + $0x10] sm:$0xff]
      %v4039 = vld [vmem:[#allocation2 + $0x18] sm:$0xff]
      %v4040 = vld [vmem:[#allocation2 + $0x20] sm:$0xff]
      %v4041 = vld [vmem:[#allocation2 + $0x28] sm:$0xff]
      %v4042 = vld [vmem:[#allocation2 + $0x30] sm:$0xff]
      %v4043 = vld [vmem:[#allocation2 + $0x38] sm:$0xff]
      %v4044 = vld [vmem:[#allocation2 + $0x40] sm:$0xff]
      %v4045 = vld [vmem:[#allocation2 + $0x48] sm:$0xff]
      %v4046 = vld [vmem:[#allocation2 + $0x50] sm:$0xff]
      %v4047 = vld [vmem:[#allocation2 + $0x58] sm:$0xff]
      %v4048 = vld [vmem:[#allocation2 + $0x60] sm:$0xff]
      %v4049 = vld [vmem:[#allocation2 + $0x68] sm:$0xff]
      %v4050 = vld [vmem:[#allocation2 + $0x70] sm:$0xff]
      %v4051 = vld [vmem:[#allocation2 + $0x78] sm:$0xff]
      %v4052 = vld [vmem:[#allocation2 + $0x80] sm:$0xff]
      %v4053 = vld [vmem:[#allocation2 + $0x88] sm:$0xff]
      %v4054 = vld [vmem:[#allocation2 + $0x90] sm:$0xff]
      %v4055 = vld [vmem:[#allocation2 + $0x98] sm:$0xff]
      %v4056 = vld [vmem:[#allocation2 + $0xa0] sm:$0xff]
      %v4057 = vld [vmem:[#allocation2 + $0xa8] sm:$0xff]
      %v4058 = vld [vmem:[#allocation2 + $0xb0] sm:$0xff]
      %v4059 = vld [vmem:[#allocation2 + $0xb8] sm:$0xff]
      %v4060 = vld [vmem:[#allocation2 + $0xc0] sm:$0xff]
      %v4061 = vld [vmem:[#allocation2 + $0xc8] sm:$0xff]
      %v4062 = vld [vmem:[#allocation2 + $0xd0] sm:$0xff]
      %v4063 = vld [vmem:[#allocation2 + $0xd8] sm:$0xff]
      %v4064 = vld [vmem:[#allocation2 + $0xe0] sm:$0xff]
      %v4065 = vld [vmem:[#allocation2 + $0xe8] sm:$0xff]
      %v4066 = vld [vmem:[#allocation2 + $0xf0] sm:$0xff]
      %v4067 = vld [vmem:[#allocation2 + $0xf8] sm:$0xff]
      %4068 = vst.msk [vmem:[%s191] sm:$0xff] %vm192, %v4036
      %4069 = vst.msk [vmem:[%s191 + $0x8] sm:$0xff] %vm192, %v4037
      %4070 = vst.msk [vmem:[%s191 + $0x10] sm:$0xff] %vm192, %v4038
      %4071 = vst.msk [vmem:[%s191 + $0x18] sm:$0xff] %vm192, %v4039
      %4072 = vst.msk [vmem:[%s191 + $0x20] sm:$0xff] %vm192, %v4040
      %4073 = vst.msk [vmem:[%s191 + $0x28] sm:$0xff] %vm192, %v4041
      %4074 = vst.msk [vmem:[%s191 + $0x30] sm:$0xff] %vm192, %v4042
      %4075 = vst.msk [vmem:[%s191 + $0x38] sm:$0xff] %vm192, %v4043
      %4076 = vst.msk [vmem:[%s191 + $0x40] sm:$0xff] %vm192, %v4044
      %4077 = vst.msk [vmem:[%s191 + $0x48] sm:$0xff] %vm192, %v4045
      %4078 = vst.msk [vmem:[%s191 + $0x50] sm:$0xff] %vm192, %v4046
      %4079 = vst.msk [vmem:[%s191 + $0x58] sm:$0xff] %vm192, %v4047
      %4080 = vst.msk [vmem:[%s191 + $0x60] sm:$0xff] %vm192, %v4048
      %4081 = vst.msk [vmem:[%s191 + $0x68] sm:$0xff] %vm192, %v4049
      %4082 = vst.msk [vmem:[%s191 + $0x70] sm:$0xff] %vm192, %v4050
      %4083 = vst.msk [vmem:[%s191 + $0x78] sm:$0xff] %vm192, %v4051
      %4084 = vst.msk [vmem:[%s191 + $0x80] sm:$0xff] %vm192, %v4052
      %4085 = vst.msk [vmem:[%s191 + $0x88] sm:$0xff] %vm192, %v4053
      %4086 = vst.msk [vmem:[%s191 + $0x90] sm:$0xff] %vm192, %v4054
      %4087 = vst.msk [vmem:[%s191 + $0x98] sm:$0xff] %vm192, %v4055
      %4088 = vst.msk [vmem:[%s191 + $0xa0] sm:$0xff] %vm192, %v4056
      %4089 = vst.msk [vmem:[%s191 + $0xa8] sm:$0xff] %vm192, %v4057
      %4090 = vst.msk [vmem:[%s191 + $0xb0] sm:$0xff] %vm192, %v4058
      %4091 = vst.msk [vmem:[%s191 + $0xb8] sm:$0xff] %vm192, %v4059
      %4092 = vst.msk [vmem:[%s191 + $0xc0] sm:$0xff] %vm192, %v4060
      %4093 = vst.msk [vmem:[%s191 + $0xc8] sm:$0xff] %vm192, %v4061
      %4094 = vst.msk [vmem:[%s191 + $0xd0] sm:$0xff] %vm192, %v4062
      %4095 = vst.msk [vmem:[%s191 + $0xd8] sm:$0xff] %vm192, %v4063
      %4096 = vst.msk [vmem:[%s191 + $0xe0] sm:$0xff] %vm192, %v4064
      %4097 = vst.msk [vmem:[%s191 + $0xe8] sm:$0xff] %vm192, %v4065
      %4098 = vst.msk [vmem:[%s191 + $0xf0] sm:$0xff] %vm192, %v4066
      %4099 = vst.msk [vmem:[%s191 + $0xf8] sm:$0xff] %vm192, %v4067
      %p4100 = scmp.lt.s32.totalorder %s17, 1
      %s4101 = scalar_select %p4100, %s17, 1
      %p4102 = scmp.lt.s32.totalorder %s18, 0
      %s4103 = scalar_select %p4102, %s18, 0
      %s4104 = smul.addr %s4101, 32
      %s4105 = sadd.s32 %s4103, %s4104
      %s4106 = smul.addr %s4105, 8
      %s4107 = scalar_lea.vmem %s2, %s4106
      // Predicated region
      $region29: #{tpu_custom_call.1} parent=27 // pred_check
        %p4108 = pneg %p99
      $region30: #{tpu_custom_call.1} parent=27 // pred_check_branch
        %4110 = sbr.rel (%p4108) target = $region32
      $region31: #{tpu_custom_call.1} parent=27 // pred_region
        _
      $region32: #{tpu_custom_call.1} parent=27 // pred_fallthru
        _
    $region28: #{tpu_custom_call.1} parent=5 // pred_fallthru
      _
    %p4111 = scmp.le.s32.totalorder 2, %s8
    // Predicated region
    $region33: #{tpu_custom_call.1} parent=5 // pred_check
      %p4112 = pneg %p4111
    $region34: #{tpu_custom_call.1} parent=5 // pred_check_branch
      %4114 = sbr.rel (%p4112) target = $region36
    $region35: #{tpu_custom_call.1} parent=5 // pred_region
      %s4115 = ssub.s32 %s8, 2
      // Predicated region
      $region37: #{tpu_custom_call.1} parent=35 // pred_check
        %p4116 = pneg %p105
      $region38: #{tpu_custom_call.1} parent=35 // pred_check_branch
        %4118 = sbr.rel (%p4116) target = $region40
      $region39: #{tpu_custom_call.1} parent=35 // pred_region
        %p4119 = scmp.lt.s32.totalorder %s19, 1
        %s4120 = scalar_select %p4119, %s19, 1
        %p4121 = scmp.lt.s32.totalorder %s20, 0
        %s4122 = scalar_select %p4121, %s20, 0
        %s4123 = smul.addr %s4120, 32
        %s4124 = sadd.s32 %s4122, %s4123
        %s4125 = smul.addr %s4124, 8
        %s4126 = scalar_lea.vmem %s2, %s4125
      $region40: #{tpu_custom_call.1} parent=35 // pred_fallthru
        _
    $region36: #{tpu_custom_call.1} parent=5 // pred_fallthru
      _
  $region6: #{tpu_custom_call.1} parent=0 // loop_footer
    %s12 = sadd.s32 1, %s8
  $region7: #{tpu_custom_call.1} parent=0 // loop_footer_branch
    %7 = sbr.rel target = $region3
  $region8: #{tpu_custom_call.1} parent=0 // loop_exit
    _

</llo_original>
